<compile_context>
chip_gen: v7x
topology: tpu7x:2x2x1
jax: 0.10.0
libtpu: 0.0.40
codegen_flags: <defaults>
</compile_context>

<pallas_src>
import functools

import jax
import jax.numpy as jnp
from jax.experimental import pallas as pl
from jax.experimental.pallas import tpu as pltpu


# ---------------------------------------------------------------------------
# Kernel 1: direct conv (shifted-window matmuls) + fused per-channel stats
# ---------------------------------------------------------------------------
def _conv_stats_kernel(xp_ref, w_ref, y_ref, sum_ref, sq_ref, *,
                       kh, kw, stride, dilation, rows, wo):
    n = pl.program_id(0)
    t = pl.program_id(1)

    # Init the resident stats accumulators on the very first grid step.
    @pl.when((n == 0) & (t == 0))
    def _():
        sum_ref[...] = jnp.zeros_like(sum_ref)
        sq_ref[...] = jnp.zeros_like(sq_ref)

    cin = xp_ref.shape[-1]
    coutp = y_ref.shape[-1]
    h0 = t * (rows * stride)              # first padded-input row of this tile

    acc = jnp.zeros((rows * wo, coutp), jnp.float32)
    # Static unroll over the kh*kw kernel taps: each tap is one
    # (rows*Wo, Cin) @ (Cin, Coutp) MXU matmul over a shifted window of the
    # VMEM-resident padded image (no im2col ever touches HBM).
    for r in range(kh * kw):
        i, j = divmod(r, kw)
        hi = h0 + i * dilation            # dynamic start (row-tile dependent)
        wj = j * dilation                 # static start
        if stride == 1:
            slab = xp_ref[0, pl.ds(hi, rows), pl.ds(wj, wo), :]
        else:
            slab = xp_ref[0, pl.ds(hi, rows, stride=stride),
                          pl.ds(wj, wo, stride=stride), :]
        acc = acc + jnp.dot(slab.reshape(rows * wo, cin), w_ref[r],
                            preferred_element_type=jnp.float32)

    y_ref[...] = acc[None].astype(y_ref.dtype)
    # Fused batch-stat reduction (free filler under the matmuls).
    sum_ref[...] += jnp.sum(acc, axis=0, keepdims=True)
    # TODO(synk): E[y^2]-E[y]^2 can cancel for large |mean|; a two-pass /
    # compensated accumulation would be safer for extreme activations.
    sq_ref[...] += jnp.sum(acc * acc, axis=0, keepdims=True)


# ---------------------------------------------------------------------------
# Kernel 2: BN (precomputed scale/shift) + ReLU, lane-dense elementwise pass
# ---------------------------------------------------------------------------
def _bn_relu_kernel(y_ref, ss_ref, o_ref):
    y = y_ref[...].astype(jnp.float32)
    scale = ss_ref[0:1, :]                # (1, Coutp)
    shift = ss_ref[1:2, :]                # (1, Coutp)
    o_ref[...] = jnp.maximum(y * scale + shift, 0.0)


# ---------------------------------------------------------------------------
# Wrapper
# ---------------------------------------------------------------------------
def _pick_rows_per_tile(ho, wo, target_positions=1024):
    """Largest divisor of Ho whose row-group keeps ~<=1024 output positions and
    a legal (multiple-of-8 or full-extent) sublane block."""
    best = None
    for r in range(1, ho + 1):
        if ho % r:
            continue
        legal = (r == ho) or ((r * wo) % 8 == 0)
        if legal and r * wo <= target_positions:
            best = r
    return best if best is not None else ho


def conv_br_forward(x, weight, gamma, beta, *, stride=1, padding=0,
                    dilation=1, eps=1e-5, intermediate_dtype=jnp.bfloat16):
    """x: (N, Cin, H, W) f32; weight: (Cout, Cin, kh, kw) f32 -> (N, Cout, Ho, Wo)."""
    x = x.astype(jnp.float32)
    weight = weight.astype(jnp.float32)
    N, Cin, H, W = x.shape
    Cout, _, kh, kw = weight.shape
    Ho = (H + 2 * padding - dilation * (kh - 1) - 1) // stride + 1
    Wo = (W + 2 * padding - dilation * (kw - 1) - 1) // stride + 1
    Coutp = pl.cdiv(Cout, 128) * 128      # lane-dense output channels

    # NCHW -> NHWC + zero pad (tiny XLA glue).
    # TODO(synk): accept/return NHWC to drop both layout transposes entirely.
    x_nhwc = jnp.transpose(x, (0, 2, 3, 1))
    xp = jnp.pad(x_nhwc, ((0, 0), (padding, padding), (padding, padding), (0, 0)))
    Hp, Wp = xp.shape[1], xp.shape[2]

    # weight (Cout, Cin, kh, kw) -> (kh*kw, Cin, Coutp), Cout padded with zeros.
    w = jnp.transpose(weight, (2, 3, 1, 0)).reshape(kh * kw, Cin, Cout)
    w = jnp.pad(w, ((0, 0), (0, 0), (0, Coutp - Cout)))

    rows = _pick_rows_per_tile(Ho, Wo)
    T = Ho // rows
    bm = rows * Wo                        # output positions per tile

    # --- fused conv + batch-stats ------------------------------------------
    # Whole padded image per batch element stays resident in VMEM (index_map
    # ignores t).  Stats are resident accumulator outputs, hence both grid
    # axes are "arbitrary" (sequential).
    # TODO(synk): for v7x megacore, emit per-core partial sums instead so the
    # N axis can be marked "parallel"; also tile rows/K for images that do not
    # fit the 64 MiB VMEM.
    kernel1 = functools.partial(_conv_stats_kernel, kh=kh, kw=kw, stride=stride,
                                dilation=dilation, rows=rows, wo=Wo)
    y, s, sq = pl.pallas_call(
        kernel1,
        out_shape=(jax.ShapeDtypeStruct((N, Ho * Wo, Coutp), intermediate_dtype),
                   jax.ShapeDtypeStruct((1, Coutp), jnp.float32),
                   jax.ShapeDtypeStruct((1, Coutp), jnp.float32)),
        grid=(N, T),
        in_specs=[pl.BlockSpec((1, Hp, Wp, Cin), lambda n, t: (n, 0, 0, 0)),
                  pl.BlockSpec((kh * kw, Cin, Coutp), lambda n, t: (0, 0, 0))],
        out_specs=(pl.BlockSpec((1, bm, Coutp), lambda n, t: (n, t, 0)),
                   pl.BlockSpec((1, Coutp), lambda n, t: (0, 0)),
                   pl.BlockSpec((1, Coutp), lambda n, t: (0, 0))),
        compiler_params=pltpu.CompilerParams(
            dimension_semantics=("arbitrary", "arbitrary")),
    )(xp, w)

    # --- tiny (Coutp,) scalar math: fold BN into scale/shift ----------------
    count = jnp.float32(N * Ho * Wo)
    mean = s / count
    var = sq / count - mean * mean        # biased variance (training-mode BN)
    gamma_p = jnp.pad(gamma.astype(jnp.float32), (0, Coutp - Cout),
                      constant_values=1.0)
    beta_p = jnp.pad(beta.astype(jnp.float32), (0, Coutp - Cout))
    scale = gamma_p[None, :] * jax.lax.rsqrt(var + eps)
    shift = beta_p[None, :] - mean * scale
    ss = jnp.concatenate([scale, shift], axis=0)          # (2, Coutp)

    # --- BN affine + ReLU (single fused multiply-add per element) -----------
    out_nhwc = pl.pallas_call(
        _bn_relu_kernel,
        out_shape=jax.ShapeDtypeStruct((N, Ho * Wo, Coutp), jnp.float32),
        grid=(N, T),
        in_specs=[pl.BlockSpec((1, bm, Coutp), lambda n, t: (n, t, 0)),
                  pl.BlockSpec((2, Coutp), lambda n, t: (0, 0))],
        out_specs=pl.BlockSpec((1, bm, Coutp), lambda n, t: (n, t, 0)),
        compiler_params=pltpu.CompilerParams(
            dimension_semantics=("parallel", "parallel")),
    )(y, ss)

    # Trim channel padding, back to NCHW (PyTorch convention).
    out = out_nhwc.reshape(N, Ho, Wo, Coutp)[..., :Cout]
    return jnp.transpose(out, (0, 3, 1, 2))


# ---------------------------------------------------------------------------
# Pure-JAX reference (sanity check only)
# ---------------------------------------------------------------------------
def conv_br_reference(x, weight, gamma, beta, *, stride=1, padding=0,
                      dilation=1, eps=1e-5):
    y = jax.lax.conv_general_dilated(
        x, weight, window_strides=(stride, stride),
        padding=((padding, padding), (padding, padding)),
        rhs_dilation=(dilation, dilation),
        dimension_numbers=("NCHW", "OIHW", "NCHW"),
        preferred_element_type=jnp.float32)
    m = y.mean(axis=(0, 2, 3), keepdims=True)
    v = ((y - m) ** 2).mean(axis=(0, 2, 3), keepdims=True)
    g = gamma.reshape(1, -1, 1, 1)
    bta = beta.reshape(1, -1, 1, 1)
    return jnp.maximum((y - m) * jax.lax.rsqrt(v + eps) * g + bta, 0.0)


if __name__ == "__main__":
    key = jax.random.PRNGKey(0)
    kx, kw_, kg, kb = jax.random.split(key, 4)

    N, Cin, H, W = 2, 4, 16, 16
    Cout, ksz, stride, padding, dilation = 8, 3, 1, 1, 1

    x = jax.random.normal(kx, (N, Cin, H, W), dtype=jnp.float32)
    weight = jax.random.normal(kw_, (Cout, Cin, ksz, ksz), dtype=jnp.float32) \
        * (2.0 / (Cin * ksz * ksz)) ** 0.5
    gamma = 1.0 + 0.1 * jax.random.normal(kg, (Cout,), dtype=jnp.float32)
    beta = 0.1 * jax.random.normal(kb, (Cout,), dtype=jnp.float32)

    out = conv_br_forward(x, weight, gamma, beta, stride=stride,
                          padding=padding, dilation=dilation)
    out = jax.block_until_ready(out)

    ref = conv_br_reference(x, weight, gamma, beta, stride=stride,
                            padding=padding, dilation=dilation)
    assert out.shape == (N, Cout, H, W), out.shape
    assert jnp.allclose(out, ref, rtol=1e-2, atol=1e-2), \
        float(jnp.max(jnp.abs(out - ref)))

    print("KERNEL_OK")
</pallas_src>

<mosaic_0001>
module attributes {stable_mosaic.version = 11 : i64} {
  func.func @_conv_stats_kernel(%arg0: i32, %arg1: i32, %arg2: memref<1x18x18x4xf32, #tpu.memory_space<vmem>>, %arg3: memref<9x4x128xf32, #tpu.memory_space<vmem>>, %arg4: memref<1x256x128xbf16, #tpu.memory_space<vmem>>, %arg5: memref<1x128xf32, #tpu.memory_space<vmem>>, %arg6: memref<1x128xf32, #tpu.memory_space<vmem>>) attributes {dimension_semantics = [#tpu.dimension_semantics<arbitrary>, #tpu.dimension_semantics<arbitrary>], iteration_bounds = array<i64: 2, 1>, scalar_prefetch = 0 : i64, scratch_operands = 0 : i64, tpu.core_type = #tpu.core_type<tc>, window_params = [{transform_indices = @transform_0, window_bounds = array<i64: 1, 18, 18, 4>}, {pipeline_mode = #tpu.pipeline_mode<synchronous>, transform_indices = @transform_1, window_bounds = array<i64: 9, 4, 128>}, {transform_indices = @transform_2, window_bounds = array<i64: 1, 256, 128>}, {pipeline_mode = #tpu.pipeline_mode<synchronous>, transform_indices = @transform_3, window_bounds = array<i64: 1, 128>}, {pipeline_mode = #tpu.pipeline_mode<synchronous>, transform_indices = @transform_4, window_bounds = array<i64: 1, 128>}]} {
    %c0_i32 = arith.constant 0 : i32
    %0 = arith.cmpi eq, %arg0, %c0_i32 : i32
    %c0_i32_0 = arith.constant 0 : i32
    %1 = arith.cmpi eq, %arg1, %c0_i32_0 : i32
    %2 = arith.andi %0, %1 : i1
    %3 = arith.extui %2 : i1 to i32
    %c0_i32_1 = arith.constant 0 : i32
    %4 = arith.cmpi ne, %3, %c0_i32_1 : i32
    scf.if %4 {
      %cst_76 = arith.constant 0.000000e+00 : f32
      %102 = vector.broadcast %cst_76 : f32 to vector<1x128xf32>
      %c0_77 = arith.constant 0 : index
      %c0_78 = arith.constant 0 : index
      %103 = vector.load %arg5[%c0_77, %c0_78] : memref<1x128xf32, #tpu.memory_space<vmem>>, vector<1x128xf32>
      tpu.vector_store %arg5[%c0_77, %c0_78], %102 {strides = array<i32>} : memref<1x128xf32, #tpu.memory_space<vmem>>, vector<1x128xf32>,
      %cst_79 = arith.constant 0.000000e+00 : f32
      %104 = vector.broadcast %cst_79 : f32 to vector<1x128xf32>
      %c0_80 = arith.constant 0 : index
      %c0_81 = arith.constant 0 : index
      %105 = vector.load %arg6[%c0_80, %c0_81] : memref<1x128xf32, #tpu.memory_space<vmem>>, vector<1x128xf32>
      tpu.vector_store %arg6[%c0_80, %c0_81], %104 {strides = array<i32>} : memref<1x128xf32, #tpu.memory_space<vmem>>, vector<1x128xf32>,
    } else {
    }
    %c16_i32 = arith.constant 16 : i32
    %5 = arith.muli %arg1, %c16_i32 : i32
    %cst = arith.constant 0.000000e+00 : f32
    %6 = vector.broadcast %cst : f32 to vector<256x128xf32>
    %c0_i32_2 = arith.constant 0 : i32
    %7 = arith.addi %5, %c0_i32_2 : i32
    %c0 = arith.constant 0 : index
    %8 = arith.index_cast %7 : i32 to index
    %c0_3 = arith.constant 0 : index
    %c0_4 = arith.constant 0 : index
    %9 = vector.load %arg2[%c0, %8, %c0_3, %c0_4] : memref<1x18x18x4xf32, #tpu.memory_space<vmem>>, vector<1x16x16x4xf32>
    %10 = vector.shape_cast %9 : vector<1x16x16x4xf32> to vector<16x16x4xf32>
    %11 = vector.shape_cast %10 : vector<16x16x4xf32> to vector<256x4xf32>
    %c0_5 = arith.constant 0 : index
    %c0_6 = arith.constant 0 : index
    %c0_7 = arith.constant 0 : index
    %12 = vector.load %arg3[%c0_5, %c0_6, %c0_7] : memref<9x4x128xf32, #tpu.memory_space<vmem>>, vector<1x4x128xf32>
    %13 = vector.shape_cast %12 : vector<1x4x128xf32> to vector<4x128xf32>
    %cst_8 = arith.constant dense<0.000000e+00> : vector<256x128xf32>
    %14 = tpu.matmul %11, %13, %cst_8 {dimension_numbers = #tpu.dot_dimension_numbers<[1], [0], [0], [1], [0, 0, 1, 1], [], []>} : vector<256x4xf32>, vector<4x128xf32>, vector<256x128xf32> -> vector<256x128xf32>
    %15 = arith.addf %6, %14 : vector<256x128xf32>
    %c0_i32_9 = arith.constant 0 : i32
    %16 = arith.addi %5, %c0_i32_9 : i32
    %c0_10 = arith.constant 0 : index
    %17 = arith.index_cast %16 : i32 to index
    %c1 = arith.constant 1 : index
    %c0_11 = arith.constant 0 : index
    %18 = vector.load %arg2[%c0_10, %17, %c1, %c0_11] : memref<1x18x18x4xf32, #tpu.memory_space<vmem>>, vector<1x16x16x4xf32>
    %19 = vector.shape_cast %18 : vector<1x16x16x4xf32> to vector<16x16x4xf32>
    %20 = vector.shape_cast %19 : vector<16x16x4xf32> to vector<256x4xf32>
    %c1_12 = arith.constant 1 : index
    %c0_13 = arith.constant 0 : index
    %c0_14 = arith.constant 0 : index
    %21 = vector.load %arg3[%c1_12, %c0_13, %c0_14] : memref<9x4x128xf32, #tpu.memory_space<vmem>>, vector<1x4x128xf32>
    %22 = vector.shape_cast %21 : vector<1x4x128xf32> to vector<4x128xf32>
    %cst_15 = arith.constant dense<0.000000e+00> : vector<256x128xf32>
    %23 = tpu.matmul %20, %22, %cst_15 {dimension_numbers = #tpu.dot_dimension_numbers<[1], [0], [0], [1], [0, 0, 1, 1], [], []>} : vector<256x4xf32>, vector<4x128xf32>, vector<256x128xf32> -> vector<256x128xf32>
    %24 = arith.addf %15, %23 : vector<256x128xf32>
    %c0_i32_16 = arith.constant 0 : i32
    %25 = arith.addi %5, %c0_i32_16 : i32
    %c0_17 = arith.constant 0 : index
    %26 = arith.index_cast %25 : i32 to index
    %c2 = arith.constant 2 : index
    %c0_18 = arith.constant 0 : index
    %27 = vector.load %arg2[%c0_17, %26, %c2, %c0_18] : memref<1x18x18x4xf32, #tpu.memory_space<vmem>>, vector<1x16x16x4xf32>
    %28 = vector.shape_cast %27 : vector<1x16x16x4xf32> to vector<16x16x4xf32>
    %29 = vector.shape_cast %28 : vector<16x16x4xf32> to vector<256x4xf32>
    %c2_19 = arith.constant 2 : index
    %c0_20 = arith.constant 0 : index
    %c0_21 = arith.constant 0 : index
    %30 = vector.load %arg3[%c2_19, %c0_20, %c0_21] : memref<9x4x128xf32, #tpu.memory_space<vmem>>, vector<1x4x128xf32>
    %31 = vector.shape_cast %30 : vector<1x4x128xf32> to vector<4x128xf32>
    %cst_22 = arith.constant dense<0.000000e+00> : vector<256x128xf32>
    %32 = tpu.matmul %29, %31, %cst_22 {dimension_numbers = #tpu.dot_dimension_numbers<[1], [0], [0], [1], [0, 0, 1, 1], [], []>} : vector<256x4xf32>, vector<4x128xf32>, vector<256x128xf32> -> vector<256x128xf32>
    %33 = arith.addf %24, %32 : vector<256x128xf32>
    %c1_i32 = arith.constant 1 : i32
    %34 = arith.addi %5, %c1_i32 : i32
    %c0_23 = arith.constant 0 : index
    %35 = arith.index_cast %34 : i32 to index
    %c0_24 = arith.constant 0 : index
    %c0_25 = arith.constant 0 : index
    %36 = vector.load %arg2[%c0_23, %35, %c0_24, %c0_25] : memref<1x18x18x4xf32, #tpu.memory_space<vmem>>, vector<1x16x16x4xf32>
    %37 = vector.shape_cast %36 : vector<1x16x16x4xf32> to vector<16x16x4xf32>
    %38 = vector.shape_cast %37 : vector<16x16x4xf32> to vector<256x4xf32>
    %c3 = arith.constant 3 : index
    %c0_26 = arith.constant 0 : index
    %c0_27 = arith.constant 0 : index
    %39 = vector.load %arg3[%c3, %c0_26, %c0_27] : memref<9x4x128xf32, #tpu.memory_space<vmem>>, vector<1x4x128xf32>
    %40 = vector.shape_cast %39 : vector<1x4x128xf32> to vector<4x128xf32>
    %cst_28 = arith.constant dense<0.000000e+00> : vector<256x128xf32>
    %41 = tpu.matmul %38, %40, %cst_28 {dimension_numbers = #tpu.dot_dimension_numbers<[1], [0], [0], [1], [0, 0, 1, 1], [], []>} : vector<256x4xf32>, vector<4x128xf32>, vector<256x128xf32> -> vector<256x128xf32>
    %42 = arith.addf %33, %41 : vector<256x128xf32>
    %c1_i32_29 = arith.constant 1 : i32
    %43 = arith.addi %5, %c1_i32_29 : i32
    %c0_30 = arith.constant 0 : index
    %44 = arith.index_cast %43 : i32 to index
    %c1_31 = arith.constant 1 : index
    %c0_32 = arith.constant 0 : index
    %45 = vector.load %arg2[%c0_30, %44, %c1_31, %c0_32] : memref<1x18x18x4xf32, #tpu.memory_space<vmem>>, vector<1x16x16x4xf32>
    %46 = vector.shape_cast %45 : vector<1x16x16x4xf32> to vector<16x16x4xf32>
    %47 = vector.shape_cast %46 : vector<16x16x4xf32> to vector<256x4xf32>
    %c4 = arith.constant 4 : index
    %c0_33 = arith.constant 0 : index
    %c0_34 = arith.constant 0 : index
    %48 = vector.load %arg3[%c4, %c0_33, %c0_34] : memref<9x4x128xf32, #tpu.memory_space<vmem>>, vector<1x4x128xf32>
    %49 = vector.shape_cast %48 : vector<1x4x128xf32> to vector<4x128xf32>
    %cst_35 = arith.constant dense<0.000000e+00> : vector<256x128xf32>
    %50 = tpu.matmul %47, %49, %cst_35 {dimension_numbers = #tpu.dot_dimension_numbers<[1], [0], [0], [1], [0, 0, 1, 1], [], []>} : vector<256x4xf32>, vector<4x128xf32>, vector<256x128xf32> -> vector<256x128xf32>
    %51 = arith.addf %42, %50 : vector<256x128xf32>
    %c1_i32_36 = arith.constant 1 : i32
    %52 = arith.addi %5, %c1_i32_36 : i32
    %c0_37 = arith.constant 0 : index
    %53 = arith.index_cast %52 : i32 to index
    %c2_38 = arith.constant 2 : index
    %c0_39 = arith.constant 0 : index
    %54 = vector.load %arg2[%c0_37, %53, %c2_38, %c0_39] : memref<1x18x18x4xf32, #tpu.memory_space<vmem>>, vector<1x16x16x4xf32>
    %55 = vector.shape_cast %54 : vector<1x16x16x4xf32> to vector<16x16x4xf32>
    %56 = vector.shape_cast %55 : vector<16x16x4xf32> to vector<256x4xf32>
    %c5 = arith.constant 5 : index
    %c0_40 = arith.constant 0 : index
    %c0_41 = arith.constant 0 : index
    %57 = vector.load %arg3[%c5, %c0_40, %c0_41] : memref<9x4x128xf32, #tpu.memory_space<vmem>>, vector<1x4x128xf32>
    %58 = vector.shape_cast %57 : vector<1x4x128xf32> to vector<4x128xf32>
    %cst_42 = arith.constant dense<0.000000e+00> : vector<256x128xf32>
    %59 = tpu.matmul %56, %58, %cst_42 {dimension_numbers = #tpu.dot_dimension_numbers<[1], [0], [0], [1], [0, 0, 1, 1], [], []>} : vector<256x4xf32>, vector<4x128xf32>, vector<256x128xf32> -> vector<256x128xf32>
    %60 = arith.addf %51, %59 : vector<256x128xf32>
    %c2_i32 = arith.constant 2 : i32
    %61 = arith.addi %5, %c2_i32 : i32
    %c0_43 = arith.constant 0 : index
    %62 = arith.index_cast %61 : i32 to index
    %c0_44 = arith.constant 0 : index
    %c0_45 = arith.constant 0 : index
    %63 = vector.load %arg2[%c0_43, %62, %c0_44, %c0_45] : memref<1x18x18x4xf32, #tpu.memory_space<vmem>>, vector<1x16x16x4xf32>
    %64 = vector.shape_cast %63 : vector<1x16x16x4xf32> to vector<16x16x4xf32>
    %65 = vector.shape_cast %64 : vector<16x16x4xf32> to vector<256x4xf32>
    %c6 = arith.constant 6 : index
    %c0_46 = arith.constant 0 : index
    %c0_47 = arith.constant 0 : index
    %66 = vector.load %arg3[%c6, %c0_46, %c0_47] : memref<9x4x128xf32, #tpu.memory_space<vmem>>, vector<1x4x128xf32>
    %67 = vector.shape_cast %66 : vector<1x4x128xf32> to vector<4x128xf32>
    %cst_48 = arith.constant dense<0.000000e+00> : vector<256x128xf32>
    %68 = tpu.matmul %65, %67, %cst_48 {dimension_numbers = #tpu.dot_dimension_numbers<[1], [0], [0], [1], [0, 0, 1, 1], [], []>} : vector<256x4xf32>, vector<4x128xf32>, vector<256x128xf32> -> vector<256x128xf32>
    %69 = arith.addf %60, %68 : vector<256x128xf32>
    %c2_i32_49 = arith.constant 2 : i32
    %70 = arith.addi %5, %c2_i32_49 : i32
    %c0_50 = arith.constant 0 : index
    %71 = arith.index_cast %70 : i32 to index
    %c1_51 = arith.constant 1 : index
    %c0_52 = arith.constant 0 : index
    %72 = vector.load %arg2[%c0_50, %71, %c1_51, %c0_52] : memref<1x18x18x4xf32, #tpu.memory_space<vmem>>, vector<1x16x16x4xf32>
    %73 = vector.shape_cast %72 : vector<1x16x16x4xf32> to vector<16x16x4xf32>
    %74 = vector.shape_cast %73 : vector<16x16x4xf32> to vector<256x4xf32>
    %c7 = arith.constant 7 : index
    %c0_53 = arith.constant 0 : index
    %c0_54 = arith.constant 0 : index
    %75 = vector.load %arg3[%c7, %c0_53, %c0_54] : memref<9x4x128xf32, #tpu.memory_space<vmem>>, vector<1x4x128xf32>
    %76 = vector.shape_cast %75 : vector<1x4x128xf32> to vector<4x128xf32>
    %cst_55 = arith.constant dense<0.000000e+00> : vector<256x128xf32>
    %77 = tpu.matmul %74, %76, %cst_55 {dimension_numbers = #tpu.dot_dimension_numbers<[1], [0], [0], [1], [0, 0, 1, 1], [], []>} : vector<256x4xf32>, vector<4x128xf32>, vector<256x128xf32> -> vector<256x128xf32>
    %78 = arith.addf %69, %77 : vector<256x128xf32>
    %c2_i32_56 = arith.constant 2 : i32
    %79 = arith.addi %5, %c2_i32_56 : i32
    %c0_57 = arith.constant 0 : index
    %80 = arith.index_cast %79 : i32 to index
    %c2_58 = arith.constant 2 : index
    %c0_59 = arith.constant 0 : index
    %81 = vector.load %arg2[%c0_57, %80, %c2_58, %c0_59] : memref<1x18x18x4xf32, #tpu.memory_space<vmem>>, vector<1x16x16x4xf32>
    %82 = vector.shape_cast %81 : vector<1x16x16x4xf32> to vector<16x16x4xf32>
    %83 = vector.shape_cast %82 : vector<16x16x4xf32> to vector<256x4xf32>
    %c8 = arith.constant 8 : index
    %c0_60 = arith.constant 0 : index
    %c0_61 = arith.constant 0 : index
    %84 = vector.load %arg3[%c8, %c0_60, %c0_61] : memref<9x4x128xf32, #tpu.memory_space<vmem>>, vector<1x4x128xf32>
    %85 = vector.shape_cast %84 : vector<1x4x128xf32> to vector<4x128xf32>
    %cst_62 = arith.constant dense<0.000000e+00> : vector<256x128xf32>
    %86 = tpu.matmul %83, %85, %cst_62 {dimension_numbers = #tpu.dot_dimension_numbers<[1], [0], [0], [1], [0, 0, 1, 1], [], []>} : vector<256x4xf32>, vector<4x128xf32>, vector<256x128xf32> -> vector<256x128xf32>
    %87 = arith.addf %78, %86 : vector<256x128xf32>
    %88 = vector.shape_cast %87 : vector<256x128xf32> to vector<1x256x128xf32>
    %89 = arith.truncf %88 : vector<1x256x128xf32> to vector<1x256x128xbf16>
    %c0_63 = arith.constant 0 : index
    %c0_64 = arith.constant 0 : index
    %c0_65 = arith.constant 0 : index
    %90 = vector.load %arg4[%c0_63, %c0_64, %c0_65] : memref<1x256x128xbf16, #tpu.memory_space<vmem>>, vector<1x256x128xbf16>
    tpu.vector_store %arg4[%c0_63, %c0_64, %c0_65], %89 {strides = array<i32>} : memref<1x256x128xbf16, #tpu.memory_space<vmem>>, vector<1x256x128xbf16>,
    %c0_66 = arith.constant 0 : index
    %c0_67 = arith.constant 0 : index
    %91 = vector.load %arg5[%c0_66, %c0_67] : memref<1x128xf32, #tpu.memory_space<vmem>>, vector<1x128xf32>
    %cst_68 = arith.constant dense<0.000000e+00> : vector<128xf32>
    %92 = vector.multi_reduction <add>, %87, %cst_68 [0] : vector<256x128xf32> to vector<128xf32>
    %93 = vector.shape_cast %92 : vector<128xf32> to vector<1x128xf32>
    %94 = arith.addf %91, %93 : vector<1x128xf32>
    %c0_69 = arith.constant 0 : index
    %c0_70 = arith.constant 0 : index
    %95 = vector.load %arg5[%c0_69, %c0_70] : memref<1x128xf32, #tpu.memory_space<vmem>>, vector<1x128xf32>
    tpu.vector_store %arg5[%c0_69, %c0_70], %94 {strides = array<i32>} : memref<1x128xf32, #tpu.memory_space<vmem>>, vector<1x128xf32>,
    %c0_71 = arith.constant 0 : index
    %c0_72 = arith.constant 0 : index
    %96 = vector.load %arg6[%c0_71, %c0_72] : memref<1x128xf32, #tpu.memory_space<vmem>>, vector<1x128xf32>
    %97 = arith.mulf %87, %87 : vector<256x128xf32>
    %cst_73 = arith.constant dense<0.000000e+00> : vector<128xf32>
    %98 = vector.multi_reduction <add>, %97, %cst_73 [0] : vector<256x128xf32> to vector<128xf32>
    %99 = vector.shape_cast %98 : vector<128xf32> to vector<1x128xf32>
    %100 = arith.addf %96, %99 : vector<1x128xf32>
    %c0_74 = arith.constant 0 : index
    %c0_75 = arith.constant 0 : index
    %101 = vector.load %arg6[%c0_74, %c0_75] : memref<1x128xf32, #tpu.memory_space<vmem>>, vector<1x128xf32>
    tpu.vector_store %arg6[%c0_74, %c0_75], %100 {strides = array<i32>} : memref<1x128xf32, #tpu.memory_space<vmem>>, vector<1x128xf32>,
    return
  }
  func.func @transform_0(%arg0: i32, %arg1: i32) -> (i32, i32, i32, i32) {
    %c0_i32 = arith.constant 0 : i32
    %c0_i32_0 = arith.constant 0 : i32
    %c0_i32_1 = arith.constant 0 : i32
    %c0_i32_2 = arith.constant 0 : i32
    return %arg0, %c0_i32, %c0_i32_0, %c0_i32_1 : i32, i32, i32, i32
  }
  func.func @transform_1(%arg0: i32, %arg1: i32) -> (i32, i32, i32) {
    %c0_i32 = arith.constant 0 : i32
    %c0_i32_0 = arith.constant 0 : i32
    %c0_i32_1 = arith.constant 0 : i32
    %c0_i32_2 = arith.constant 0 : i32
    return %c0_i32, %c0_i32_0, %c0_i32_1 : i32, i32, i32
  }
  func.func @transform_2(%arg0: i32, %arg1: i32) -> (i32, i32, i32) {
    %c0_i32 = arith.constant 0 : i32
    %c0_i32_0 = arith.constant 0 : i32
    return %arg0, %arg1, %c0_i32 : i32, i32, i32
  }
  func.func @transform_3(%arg0: i32, %arg1: i32) -> (i32, i32) {
    %c0_i32 = arith.constant 0 : i32
    %c0_i32_0 = arith.constant 0 : i32
    %c0_i32_1 = arith.constant 0 : i32
    return %c0_i32, %c0_i32_0 : i32, i32
  }
  func.func @transform_4(%arg0: i32, %arg1: i32) -> (i32, i32) {
    %c0_i32 = arith.constant 0 : i32
    %c0_i32_0 = arith.constant 0 : i32
    %c0_i32_1 = arith.constant 0 : i32
    return %c0_i32, %c0_i32_0 : i32, i32
  }
}

</mosaic_0001>

<llo_original>
// kernel: tpu_custom_call.1
$region0: #{tpu_custom_call.1}
  #allocation0 [shape = 'u32[]', space=smem, size = 0x4, offset = 0x4, fixed_abs, tag = 'smem constant byte address 0x4 - core index']
  #allocation1 [shape = 'u32[144,128]{1,0:T(1,128)}', space=vmem, size = 0x12000, scoped, tag = 'internal scratch']
  %s0 = inlined_call_operand.vmem [shape: f32[2,18,18,4], index: 0, kind: input, shape index: {}]
  %s1 = inlined_call_operand.vmem [shape: f32[9,4,128], index: 1, kind: input, shape index: {}]
  %s2 = inlined_call_operand.hbm [shape: bf16[2,256,128], index: 2, kind: output, shape index: {0}]
  %s3 = inlined_call_operand.hbm [shape: f32[1,128], index: 3, kind: output, shape index: {1}]
  %s4 = inlined_call_operand.hbm [shape: f32[1,128], index: 4, kind: output, shape index: {2}]
  %5 = xla_tuple %s2, %s3, %s4
  %s6 = sld [smem:[#allocation0]]
  $region61: #{tpu_custom_call.1} parent=0
    _
  %s8 = ssub.s32 1, %s6
  %s9 = scalar_select 0, %s8, %s6
  $region1: #{tpu_custom_call.1} parent=0
    #allocation2 [shape = 'u8[131072]{0}', space=vmem, size = 0x20000, scoped, tag = 'output window, operand 0']
    #allocation3 [shape = 's32[2]{0}', space=sflag, size = 0x8, scoped, tag = 'scoped memory for tpu_custom_call.1']
    #allocation4 [shape = 'u8[512]{0}', space=vmem, size = 0x400, scoped, tag = 'output window, operand 1, single buffered']
    #allocation5 [shape = 's32[1]{0}', space=sflag, size = 0x4, scoped, tag = 'scoped memory for tpu_custom_call.1']
    #allocation6 [shape = 'u8[512]{0}', space=vmem, size = 0x400, scoped, tag = 'output window, operand 2, single buffered']
    %10 = vsyncpa [#allocation3], 0
    %s11 = scalar_lea.sflag [#allocation3], 1
    %12 = vsyncpa %s11, 0
    %13 = vsyncpa [#allocation5], 0
    loop: start=0, step=1, limit=4
    $region2: #{tpu_custom_call.1} parent=1 // loop_pre_header
      _
    $region3: #{tpu_custom_call.1} parent=1 // loop_header
      %s15 = sphi 0, %s19
      %p16 = scmp.ge.s32.totalorder %s15, 4
      %s22 = sphi 0, %s34
      %s23 = sphi 0, %s30
      %s24 = sphi 0, %s22
      %s25 = sphi 0, %s23
      %s26 = sphi 0, %s24
      %s27 = sphi 0, %s25
      %s37 = sphi 0, %s39
      %s40 = sphi 0, %s37
      %s41 = sphi 0, %s40
      %s57 = sphi 0, %s41
      %s61 = sphi 0, %s61
      %s63 = sphi 0, %s61
      %s64 = sphi 0, %s63
      %s78 = sphi 0, %s64
      %s86 = sphi 0, %s88
      %s89 = sphi 0, %s86
      %s90 = sphi 0, %s89
      %s106 = sphi 0, %s90
      %s110 = sphi 0, %s110
      %s112 = sphi 0, %s110
      %s113 = sphi 0, %s112
      %s127 = sphi 0, %s113
      %s131 = sphi 0, %s131
      %s133 = sphi 0, %s131
      %s134 = sphi 0, %s133
      %s148 = sphi 0, %s134
    $region4: #{tpu_custom_call.1} parent=1 // loop_header_branch
      %18 = sbr.rel (%p16) target = $region8
    $region5: #{tpu_custom_call.1} parent=1 // loop_body
      %s20 = ssub.s32 %s15, 1
      %s21 = ssub.s32 %s15, 2
      %s28 = sadd.s32 1, %s23
      %p29 = scmp.ge.s32.totalorder %s28, 1
      %s30 = scalar_select %p29, 0, %s28
      %s31 = sadd.s32 1, %s22
      %s32 = scalar_select %p29, %s31, %s22
      %p33 = scmp.ge.s32.totalorder %s32, 2
      %s34 = scalar_select %p33, 0, %s32
      %s35 = ssub.s32 %s22, %s34
      %p36 = scmp.eq.s32.totalorder %s35, 0
      %s38 = sadd.s32 %s37, 1
      %s39 = scalar_select %p36, %s37, %s38
      %p42 = pneg %p36
      %p43 = scmp.eq.s32.totalorder %s15, 1
      %p44 = por %p42, %p43
      %p45 = scmp.ne.s32.totalorder %s37, %s40
      %p46 = scmp.eq.s32.totalorder %s15, 0
      %p47 = por %p45, %p46
      %p48 = scmp.ne.s32.totalorder %s37, %s40
      %p49 = scmp.eq.s32.totalorder %s20, 1
      %p50 = por %p48, %p49
      %p51 = scmp.ne.s32.totalorder %s40, %s41
      %p52 = scmp.eq.s32.totalorder %s20, 0
      %p53 = por %p51, %p52
      %p54 = scmp.ne.s32.totalorder %s40, %s41
      %p55 = scmp.eq.s32.totalorder %s21, 1
      %p56 = por %p54, %p55
      %p58 = scmp.ne.s32.totalorder %s41, %s57
      %p59 = scmp.eq.s32.totalorder %s21, 0
      %p60 = por %p58, %p59
      %s62 = sadd.s32 %s61, 1
      %p65 = scmp.eq.s32.totalorder %s15, 1
      %p66 = scmp.ne.s32.totalorder %s61, %s63
      %p67 = scmp.eq.s32.totalorder %s15, 0
      %p68 = por %p66, %p67
      %p69 = scmp.ne.s32.totalorder %s61, %s63
      %p70 = scmp.eq.s32.totalorder %s20, 1
      %p71 = por %p69, %p70
      %p72 = scmp.ne.s32.totalorder %s63, %s64
      %p73 = scmp.eq.s32.totalorder %s20, 0
      %p74 = por %p72, %p73
      %p75 = scmp.ne.s32.totalorder %s63, %s64
      %p76 = scmp.eq.s32.totalorder %s21, 1
      %p77 = por %p75, %p76
      %p79 = scmp.ne.s32.totalorder %s64, %s78
      %p80 = scmp.eq.s32.totalorder %s21, 0
      %p81 = por %p79, %p80
      %s82 = ssub.s32 %s22, %s34
      %s83 = ssub.s32 %s23, %s30
      %s84 = sor.u32 %s82, %s83
      %p85 = scmp.eq.s32.totalorder %s84, 0
      %s87 = sadd.s32 %s86, 1
      %s88 = scalar_select %p85, %s86, %s87
      %p91 = pneg %p85
      %p92 = scmp.eq.s32.totalorder %s15, 1
      %p93 = por %p91, %p92
      %p94 = scmp.ne.s32.totalorder %s86, %s89
      %p95 = scmp.eq.s32.totalorder %s15, 0
      %p96 = por %p94, %p95
      %p97 = scmp.ne.s32.totalorder %s86, %s89
      %p98 = scmp.eq.s32.totalorder %s20, 1
      %p99 = por %p97, %p98
      %p100 = scmp.ne.s32.totalorder %s89, %s90
      %p101 = scmp.eq.s32.totalorder %s20, 0
      %p102 = por %p100, %p101
      %p103 = scmp.ne.s32.totalorder %s89, %s90
      %p104 = scmp.eq.s32.totalorder %s21, 1
      %p105 = por %p103, %p104
      %p107 = scmp.ne.s32.totalorder %s90, %s106
      %p108 = scmp.eq.s32.totalorder %s21, 0
      %p109 = por %p107, %p108
      %s111 = sadd.s32 %s110, 1
      %p114 = scmp.eq.s32.totalorder %s15, 1
      %p115 = scmp.ne.s32.totalorder %s110, %s112
      %p116 = scmp.eq.s32.totalorder %s15, 0
      %p117 = por %p115, %p116
      %p118 = scmp.ne.s32.totalorder %s110, %s112
      %p119 = scmp.eq.s32.totalorder %s20, 1
      %p120 = por %p118, %p119
      %p121 = scmp.ne.s32.totalorder %s112, %s113
      %p122 = scmp.eq.s32.totalorder %s20, 0
      %p123 = por %p121, %p122
      %p124 = scmp.ne.s32.totalorder %s112, %s113
      %p125 = scmp.eq.s32.totalorder %s21, 1
      %p126 = por %p124, %p125
      %p128 = scmp.ne.s32.totalorder %s113, %s127
      %p129 = scmp.eq.s32.totalorder %s21, 0
      %p130 = por %p128, %p129
      %s132 = sadd.s32 %s131, 1
      %p135 = scmp.eq.s32.totalorder %s15, 1
      %p136 = scmp.ne.s32.totalorder %s131, %s133
      %p137 = scmp.eq.s32.totalorder %s15, 0
      %p138 = por %p136, %p137
      %p139 = scmp.ne.s32.totalorder %s131, %s133
      %p140 = scmp.eq.s32.totalorder %s20, 1
      %p141 = por %p139, %p140
      %p142 = scmp.ne.s32.totalorder %s133, %s134
      %p143 = scmp.eq.s32.totalorder %s20, 0
      %p144 = por %p142, %p143
      %p145 = scmp.ne.s32.totalorder %s133, %s134
      %p146 = scmp.eq.s32.totalorder %s21, 1
      %p147 = por %p145, %p146
      %p149 = scmp.ne.s32.totalorder %s134, %s148
      %p150 = scmp.eq.s32.totalorder %s21, 0
      %p151 = por %p149, %p150
      %p152 = scmp.le.s32.totalorder 1, %s15
      %p153 = scmp.lt.s32.totalorder %s15, 3
      %p154 = pnand %p152, %p153
      %p155 = pneg %p154
      // Predicated region
      $region9: #{tpu_custom_call.1} parent=5 // pred_check
        _
      $region10: #{tpu_custom_call.1} parent=5 // pred_check_branch
        %157 = sbr.rel (%p154) target = $region12
      $region11: #{tpu_custom_call.1} parent=5 // pred_region
        %s158 = ssub.s32 %s15, 1
        // Predicated region
        $region13: #{tpu_custom_call.1} parent=11 // pred_check
          %p159 = pneg %p74
        $region14: #{tpu_custom_call.1} parent=11 // pred_check_branch
          %161 = sbr.rel (%p159) target = $region16
        $region15: #{tpu_custom_call.1} parent=11 // pred_region
          _
        $region16: #{tpu_custom_call.1} parent=11 // pred_fallthru
          _
      $region12: #{tpu_custom_call.1} parent=5 // pred_fallthru
        _
      %p162 = scmp.lt.s32.totalorder %s15, 2
      // Predicated region
      $region17: #{tpu_custom_call.1} parent=5 // pred_check
        %p163 = pneg %p162
      $region18: #{tpu_custom_call.1} parent=5 // pred_check_branch
        %165 = sbr.rel (%p163) target = $region20
      $region19: #{tpu_custom_call.1} parent=5 // pred_region
        // Predicated region
        $region21: #{tpu_custom_call.1} parent=19 // pred_check
          %p166 = pneg %p47
        $region22: #{tpu_custom_call.1} parent=19 // pred_check_branch
          %168 = sbr.rel (%p166) target = $region24
        $region23: #{tpu_custom_call.1} parent=19 // pred_region
          %p169 = scmp.lt.s32.totalorder %s22, 1
          %s170 = scalar_select %p169, %s22, 1
          %s171 = smul.addr %s170, 54
          %s172 = smul.addr %s171, 8
          %s173 = scalar_lea.vmem %s0, %s172
        $region24: #{tpu_custom_call.1} parent=19 // pred_fallthru
          _
      $region20: #{tpu_custom_call.1} parent=5 // pred_fallthru
        _
      %p174 = scmp.le.s32.totalorder 1, %s15
      %p175 = scmp.lt.s32.totalorder %s15, 3
      %p176 = pnand %p174, %p175
      %p177 = pneg %p176
      // Predicated region
      $region25: #{tpu_custom_call.1} parent=5 // pred_check
        _
      $region26: #{tpu_custom_call.1} parent=5 // pred_check_branch
        %179 = sbr.rel (%p176) target = $region28
      $region27: #{tpu_custom_call.1} parent=5 // pred_region
        %s180 = ssub.s32 %s15, 1
        %p181 = scmp.lt.s32.totalorder %s24, 1
        %s182 = scalar_select %p181, %s24, 1
        %s183 = smul.addr %s182, 54
        %s184 = smul.addr %s183, 8
        %s185 = scalar_lea.vmem %s0, %s184
        %p186 = pneg %p53
        %p187 = pneg %p50
        %p188 = pneg %p74
        %p189 = pneg %p71
        %p190 = pneg %p102
        %p191 = pneg %p99
        %s192 = sand.u32 %s89, 1
        %s193 = scalar_lea.sflag [#allocation3], %s192
        %s194 = sand.u32 %s89, 1
        %s195 = smul.addr %s194, 128
        %s196 = scalar_lea.vmem [#allocation2], %s195
        %p197 = pneg %p123
        %p198 = pneg %p120
        %p199 = pneg %p144
        %p200 = pneg %p141
        %p201 = scmp.lt.s32.totalorder %s24, 1
        %s202 = scalar_select %p201, %s24, 1
        %s203 = smul.addr %s202, 54
        %s204 = smul.addr %s203, 8
        %s205 = scalar_lea.vmem %s0, %s204
        %s206 = smul.u32 32, %s25
        %p207 = scmp.eq.s32.totalorder %s24, 0
        %p208 = scmp.eq.s32.totalorder %s25, 0
        %p209 = pnand %p207, %p208
        %p210 = pneg %p209
        // Predicated region
        $region29: #{tpu_custom_call.1} parent=27 // pred_check
          _
        $region30: #{tpu_custom_call.1} parent=27 // pred_check_branch
          %212 = sbr.rel (%p209) target = $region32
        $region31: #{tpu_custom_call.1} parent=27 // pred_region
          %213 = vst [vmem:[#allocation4] sm:$0x1] 0.0
          %214 = vst [vmem:[#allocation6] sm:$0x1] 0.0
        $region32: #{tpu_custom_call.1} parent=27 // pred_fallthru
          _
        %s215 = smul.u32 %s25, 16
        %s216 = smul.u32 %s215, 24
        %s217 = scalar_lea.vmem %s205, %s216
        %v218 = vld [vmem:[%s217] sm:$0xff]
        %v219 = vld [vmem:[%s217 + $0x8] sm:$0xff]
        %v220 = vld [vmem:[%s217 + $0x18] sm:$0xff]
        %v221 = vld [vmem:[%s217 + $0x20] sm:$0xff]
        %v222 = vld [vmem:[%s217 + $0x30] sm:$0xff]
        %v223 = vld [vmem:[%s217 + $0x38] sm:$0xff]
        %v224 = vld [vmem:[%s217 + $0x48] sm:$0xff]
        %v225 = vld [vmem:[%s217 + $0x50] sm:$0xff]
        %v226 = vld [vmem:[%s217 + $0x60] sm:$0xff]
        %v227 = vld [vmem:[%s217 + $0x68] sm:$0xff]
        %v228 = vld [vmem:[%s217 + $0x78] sm:$0xff]
        %v229 = vld [vmem:[%s217 + $0x80] sm:$0xff]
        %v230 = vld [vmem:[%s217 + $0x90] sm:$0xff]
        %v231 = vld [vmem:[%s217 + $0x98] sm:$0xff]
        %v232 = vld [vmem:[%s217 + $0xa8] sm:$0xff]
        %v233 = vld [vmem:[%s217 + $0xb0] sm:$0xff]
        %v234 = vld [vmem:[%s217 + $0xc0] sm:$0xff]
        %v235 = vld [vmem:[%s217 + $0xc8] sm:$0xff]
        %v236 = vld [vmem:[%s217 + $0xd8] sm:$0xff]
        %v237 = vld [vmem:[%s217 + $0xe0] sm:$0xff]
        %v238 = vld [vmem:[%s217 + $0xf0] sm:$0xff]
        %v239 = vld [vmem:[%s217 + $0xf8] sm:$0xff]
        %v240 = vld [vmem:[%s217 + $0x108] sm:$0xff]
        %v241 = vld [vmem:[%s217 + $0x110] sm:$0xff]
        %v242 = vld [vmem:[%s217 + $0x120] sm:$0xff]
        %v243 = vld [vmem:[%s217 + $0x128] sm:$0xff]
        %v244 = vld [vmem:[%s217 + $0x138] sm:$0xff]
        %v245 = vld [vmem:[%s217 + $0x140] sm:$0xff]
        %v246 = vld [vmem:[%s217 + $0x150] sm:$0xff]
        %v247 = vld [vmem:[%s217 + $0x158] sm:$0xff]
        %v248 = vld [vmem:[%s217 + $0x168] sm:$0xff]
        %v249 = vld [vmem:[%s217 + $0x170] sm:$0xff]
        %v250 = vld [vmem:[%s1] sm:$0xf]
        %v251 = vld [vmem:[%s217 + $0x1] sm:$0xff]
        %v252 = vld [vmem:[%s217 + $0x9] sm:$0xff]
        %v253 = vld [vmem:[%s217 + $0x19] sm:$0xff]
        %v254 = vld [vmem:[%s217 + $0x21] sm:$0xff]
        %v255 = vld [vmem:[%s217 + $0x31] sm:$0xff]
        %v256 = vld [vmem:[%s217 + $0x39] sm:$0xff]
        %v257 = vld [vmem:[%s217 + $0x49] sm:$0xff]
        %v258 = vld [vmem:[%s217 + $0x51] sm:$0xff]
        %v259 = vld [vmem:[%s217 + $0x61] sm:$0xff]
        %v260 = vld [vmem:[%s217 + $0x69] sm:$0xff]
        %v261 = vld [vmem:[%s217 + $0x79] sm:$0xff]
        %v262 = vld [vmem:[%s217 + $0x81] sm:$0xff]
        %v263 = vld [vmem:[%s217 + $0x91] sm:$0xff]
        %v264 = vld [vmem:[%s217 + $0x99] sm:$0xff]
        %v265 = vld [vmem:[%s217 + $0xa9] sm:$0xff]
        %v266 = vld [vmem:[%s217 + $0xb1] sm:$0xff]
        %v267 = vld [vmem:[%s217 + $0xc1] sm:$0xff]
        %v268 = vld [vmem:[%s217 + $0xc9] sm:$0xff]
        %v269 = vld [vmem:[%s217 + $0xd9] sm:$0xff]
        %v270 = vld [vmem:[%s217 + $0xe1] sm:$0xff]
        %v271 = vld [vmem:[%s217 + $0xf1] sm:$0xff]
        %v272 = vld [vmem:[%s217 + $0xf9] sm:$0xff]
        %v273 = vld [vmem:[%s217 + $0x109] sm:$0xff]
        %v274 = vld [vmem:[%s217 + $0x111] sm:$0xff]
        %v275 = vld [vmem:[%s217 + $0x121] sm:$0xff]
        %v276 = vld [vmem:[%s217 + $0x129] sm:$0xff]
        %v277 = vld [vmem:[%s217 + $0x139] sm:$0xff]
        %v278 = vld [vmem:[%s217 + $0x141] sm:$0xff]
        %v279 = vld [vmem:[%s217 + $0x151] sm:$0xff]
        %v280 = vld [vmem:[%s217 + $0x159] sm:$0xff]
        %v281 = vld [vmem:[%s217 + $0x169] sm:$0xff]
        %v282 = vld [vmem:[%s217 + $0x171] sm:$0xff]
        %s283 = scalar_lea.vmem %s1, 4
        %v284 = vld [vmem:[%s283] sm:$0xf]
        %vm285 = vcmask 31744
        %v287 = vsel %vm285, %v251, 0
        %v290 = vsel %vm285, %v252, 0
        %v293 = vsel %vm285, %v253, 0
        %v296 = vsel %vm285, %v254, 0
        %v299 = vsel %vm285, %v255, 0
        %v302 = vsel %vm285, %v256, 0
        %v305 = vsel %vm285, %v257, 0
        %v308 = vsel %vm285, %v258, 0
        %v311 = vsel %vm285, %v259, 0
        %v314 = vsel %vm285, %v260, 0
        %v317 = vsel %vm285, %v261, 0
        %v320 = vsel %vm285, %v262, 0
        %v323 = vsel %vm285, %v263, 0
        %v326 = vsel %vm285, %v264, 0
        %v329 = vsel %vm285, %v265, 0
        %v332 = vsel %vm285, %v266, 0
        %v335 = vsel %vm285, %v267, 0
        %v338 = vsel %vm285, %v268, 0
        %v341 = vsel %vm285, %v269, 0
        %v344 = vsel %vm285, %v270, 0
        %v347 = vsel %vm285, %v271, 0
        %v350 = vsel %vm285, %v272, 0
        %v353 = vsel %vm285, %v273, 0
        %v356 = vsel %vm285, %v274, 0
        %v359 = vsel %vm285, %v275, 0
        %v362 = vsel %vm285, %v276, 0
        %v365 = vsel %vm285, %v277, 0
        %v368 = vsel %vm285, %v278, 0
        %v371 = vsel %vm285, %v279, 0
        %v374 = vsel %vm285, %v280, 0
        %v377 = vsel %vm285, %v281, 0
        %v380 = vsel %vm285, %v282, 0
        %vm382 = vcmask 1043456
        %v384 = vsel %vm382, %v284, 0
        %386 = vmatprep.subr.mxu0 0.0
        %387 = vmatpush1.msra.mxu0 %v384
        %388 = vmatprep.subr.mxu0 0.0
        %389 = vmatpush1.msra.mxu0 0.0
        %390 = vmatprep.subr.mxu0 0.0
        %391 = vmatpush1.msra.mxu0 0.0
        %392 = vmatprep.subr.mxu0 0.0
        %393 = vmatpush1.msra.mxu0 0.0
        %394 = vmatprep.subr.mxu0 0.0
        %395 = vmatpush1.msra.mxu0 0.0
        %396 = vmatprep.subr.mxu0 0.0
        %397 = vmatpush1.msra.mxu0 0.0
        %398 = vmatprep.subr.mxu0 0.0
        %399 = vmatpush1.msra.mxu0 0.0
        %400 = vmatprep.subr.mxu0 0.0
        %401 = vmatpush1.msra.mxu0 0.0
        %402 = vmatprep.subr.mxu0 0.0
        %403 = vmatpush1.msra.mxu0 0.0
        %404 = vmatprep.subr.mxu0 0.0
        %405 = vmatpush1.msra.mxu0 0.0
        %406 = vmatprep.subr.mxu0 0.0
        %407 = vmatpush1.msra.mxu0 0.0
        %408 = vmatprep.subr.mxu0 0.0
        %409 = vmatpush1.msra.mxu0 0.0
        %410 = vmatprep.subr.mxu0 0.0
        %411 = vmatpush1.msra.mxu0 0.0
        %412 = vmatprep.subr.mxu0 0.0
        %413 = vmatpush1.msra.mxu0 0.0
        %414 = vmatprep.subr.mxu0 0.0
        %415 = vmatpush1.msra.mxu0 0.0
        %416 = vmatprep.subr.mxu0 0.0
        %417 = vmatpush1.msra.mxu0 0.0
        %418 = vmatprep.subr.mxu0 0.0
        %419 = vmatpush1.msra.mxu0 0.0
        %420 = vmatprep.subr.mxu0 0.0
        %421 = vmatpush1.msra.mxu0 0.0
        %422 = vmatprep.subr.mxu0 0.0
        %423 = vmatpush1.msra.mxu0 0.0
        %424 = vmatprep.subr.mxu0 0.0
        %425 = vmatpush1.msra.mxu0 0.0
        %426 = vmatprep.subr.mxu0 0.0
        %427 = vmatpush1.msra.mxu0 0.0
        %428 = vmatprep.subr.mxu0 0.0
        %429 = vmatpush1.msra.mxu0 0.0
        %430 = vmatprep.subr.mxu0 0.0
        %431 = vmatpush1.msra.mxu0 0.0
        %432 = vmatprep.subr.mxu0 0.0
        %433 = vmatpush1.msra.mxu0 0.0
        %434 = vmatprep.subr.mxu0 0.0
        %435 = vmatpush1.msra.mxu0 0.0
        %436 = vmatprep.subr.mxu0 0.0
        %437 = vmatpush1.msra.mxu0 0.0
        %438 = vmatprep.subr.mxu0 0.0
        %439 = vmatpush1.msra.mxu0 0.0
        %440 = vmatprep.subr.mxu0 0.0
        %441 = vmatpush1.msra.mxu0 0.0
        %442 = vmatprep.subr.mxu0 0.0
        %443 = vmatpush1.msra.mxu0 0.0
        %444 = vmatprep.subr.mxu0 0.0
        %445 = vmatpush1.msra.mxu0 0.0
        %446 = vmatprep.subr.mxu0 0.0
        %447 = vmatpush1.msra.mxu0 0.0
        %448 = vmatprep.subr.mxu0 0.0
        %449 = vmatpush1.msra.mxu0 0.0
        %450 = vmatprep.mubr.f32.mxu0 0.0
        %451 = vmatmul.mubr.f32.gmra.mrb[0].mxu0 %v287
        %v452 = vpop.f32.mrb[0].mxu0
        %v453 = vadd.f32 0.0, %v452
        %v454 = vpop.f32.mrb[0].mxu0
        %455 = vmatprep.mubr.f32.mxu0 0.0
        %456 = vmatmul.mubr.f32.gmra.mrb[0].mxu0 %v290
        %v457 = vpop.f32.mrb[0].mxu0
        %v458 = vadd.f32 0.0, %v457
        %v459 = vpop.f32.mrb[0].mxu0
        %460 = vmatprep.mubr.f32.mxu0 0.0
        %461 = vmatmul.mubr.f32.gmra.mrb[0].mxu0 %v293
        %v462 = vpop.f32.mrb[0].mxu0
        %v463 = vadd.f32 0.0, %v462
        %v464 = vpop.f32.mrb[0].mxu0
        %465 = vmatprep.mubr.f32.mxu0 0.0
        %466 = vmatmul.mubr.f32.gmra.mrb[0].mxu0 %v296
        %v467 = vpop.f32.mrb[0].mxu0
        %v468 = vadd.f32 0.0, %v467
        %v469 = vpop.f32.mrb[0].mxu0
        %470 = vmatprep.mubr.f32.mxu0 0.0
        %471 = vmatmul.mubr.f32.gmra.mrb[0].mxu0 %v299
        %v472 = vpop.f32.mrb[0].mxu0
        %v473 = vadd.f32 0.0, %v472
        %v474 = vpop.f32.mrb[0].mxu0
        %475 = vmatprep.mubr.f32.mxu0 0.0
        %476 = vmatmul.mubr.f32.gmra.mrb[0].mxu0 %v302
        %v477 = vpop.f32.mrb[0].mxu0
        %v478 = vadd.f32 0.0, %v477
        %v479 = vpop.f32.mrb[0].mxu0
        %480 = vmatprep.mubr.f32.mxu0 0.0
        %481 = vmatmul.mubr.f32.gmra.mrb[0].mxu0 %v305
        %v482 = vpop.f32.mrb[0].mxu0
        %v483 = vadd.f32 0.0, %v482
        %v484 = vpop.f32.mrb[0].mxu0
        %485 = vmatprep.mubr.f32.mxu0 0.0
        %486 = vmatmul.mubr.f32.gmra.mrb[0].mxu0 %v308
        %v487 = vpop.f32.mrb[0].mxu0
        %v488 = vadd.f32 0.0, %v487
        %v489 = vpop.f32.mrb[0].mxu0
        %490 = vmatprep.mubr.f32.mxu0 0.0
        %491 = vmatmul.mubr.f32.gmra.mrb[0].mxu0 %v311
        %v492 = vpop.f32.mrb[0].mxu0
        %v493 = vadd.f32 0.0, %v492
        %v494 = vpop.f32.mrb[0].mxu0
        %495 = vmatprep.mubr.f32.mxu0 0.0
        %496 = vmatmul.mubr.f32.gmra.mrb[0].mxu0 %v314
        %v497 = vpop.f32.mrb[0].mxu0
        %v498 = vadd.f32 0.0, %v497
        %v499 = vpop.f32.mrb[0].mxu0
        %500 = vmatprep.mubr.f32.mxu0 0.0
        %501 = vmatmul.mubr.f32.gmra.mrb[0].mxu0 %v317
        %v502 = vpop.f32.mrb[0].mxu0
        %v503 = vadd.f32 0.0, %v502
        %v504 = vpop.f32.mrb[0].mxu0
        %505 = vmatprep.mubr.f32.mxu0 0.0
        %506 = vmatmul.mubr.f32.gmra.mrb[0].mxu0 %v320
        %v507 = vpop.f32.mrb[0].mxu0
        %v508 = vadd.f32 0.0, %v507
        %v509 = vpop.f32.mrb[0].mxu0
        %510 = vmatprep.mubr.f32.mxu0 0.0
        %511 = vmatmul.mubr.f32.gmra.mrb[0].mxu0 %v323
        %v512 = vpop.f32.mrb[0].mxu0
        %v513 = vadd.f32 0.0, %v512
        %v514 = vpop.f32.mrb[0].mxu0
        %515 = vmatprep.mubr.f32.mxu0 0.0
        %516 = vmatmul.mubr.f32.gmra.mrb[0].mxu0 %v326
        %v517 = vpop.f32.mrb[0].mxu0
        %v518 = vadd.f32 0.0, %v517
        %v519 = vpop.f32.mrb[0].mxu0
        %520 = vmatprep.mubr.f32.mxu0 0.0
        %521 = vmatmul.mubr.f32.gmra.mrb[0].mxu0 %v329
        %v522 = vpop.f32.mrb[0].mxu0
        %v523 = vadd.f32 0.0, %v522
        %v524 = vpop.f32.mrb[0].mxu0
        %525 = vmatprep.mubr.f32.mxu0 0.0
        %526 = vmatmul.mubr.f32.gmra.mrb[0].mxu0 %v332
        %v527 = vpop.f32.mrb[0].mxu0
        %v528 = vadd.f32 0.0, %v527
        %v529 = vpop.f32.mrb[0].mxu0
        %530 = vmatprep.mubr.f32.mxu0 0.0
        %531 = vmatmul.mubr.f32.gmra.mrb[0].mxu0 %v335
        %v532 = vpop.f32.mrb[0].mxu0
        %v533 = vadd.f32 0.0, %v532
        %v534 = vpop.f32.mrb[0].mxu0
        %535 = vmatprep.mubr.f32.mxu0 0.0
        %536 = vmatmul.mubr.f32.gmra.mrb[0].mxu0 %v338
        %v537 = vpop.f32.mrb[0].mxu0
        %v538 = vadd.f32 0.0, %v537
        %v539 = vpop.f32.mrb[0].mxu0
        %540 = vmatprep.mubr.f32.mxu0 0.0
        %541 = vmatmul.mubr.f32.gmra.mrb[0].mxu0 %v341
        %v542 = vpop.f32.mrb[0].mxu0
        %v543 = vadd.f32 0.0, %v542
        %v544 = vpop.f32.mrb[0].mxu0
        %545 = vmatprep.mubr.f32.mxu0 0.0
        %546 = vmatmul.mubr.f32.gmra.mrb[0].mxu0 %v344
        %v547 = vpop.f32.mrb[0].mxu0
        %v548 = vadd.f32 0.0, %v547
        %v549 = vpop.f32.mrb[0].mxu0
        %550 = vmatprep.mubr.f32.mxu0 0.0
        %551 = vmatmul.mubr.f32.gmra.mrb[0].mxu0 %v347
        %v552 = vpop.f32.mrb[0].mxu0
        %v553 = vadd.f32 0.0, %v552
        %v554 = vpop.f32.mrb[0].mxu0
        %555 = vmatprep.mubr.f32.mxu0 0.0
        %556 = vmatmul.mubr.f32.gmra.mrb[0].mxu0 %v350
        %v557 = vpop.f32.mrb[0].mxu0
        %v558 = vadd.f32 0.0, %v557
        %v559 = vpop.f32.mrb[0].mxu0
        %560 = vmatprep.mubr.f32.mxu0 0.0
        %561 = vmatmul.mubr.f32.gmra.mrb[0].mxu0 %v353
        %v562 = vpop.f32.mrb[0].mxu0
        %v563 = vadd.f32 0.0, %v562
        %v564 = vpop.f32.mrb[0].mxu0
        %565 = vmatprep.mubr.f32.mxu0 0.0
        %566 = vmatmul.mubr.f32.gmra.mrb[0].mxu0 %v356
        %v567 = vpop.f32.mrb[0].mxu0
        %v568 = vadd.f32 0.0, %v567
        %v569 = vpop.f32.mrb[0].mxu0
        %570 = vmatprep.mubr.f32.mxu0 0.0
        %571 = vmatmul.mubr.f32.gmra.mrb[0].mxu0 %v359
        %v572 = vpop.f32.mrb[0].mxu0
        %v573 = vadd.f32 0.0, %v572
        %v574 = vpop.f32.mrb[0].mxu0
        %575 = vmatprep.mubr.f32.mxu0 0.0
        %576 = vmatmul.mubr.f32.gmra.mrb[0].mxu0 %v362
        %v577 = vpop.f32.mrb[0].mxu0
        %v578 = vadd.f32 0.0, %v577
        %v579 = vpop.f32.mrb[0].mxu0
        %580 = vmatprep.mubr.f32.mxu0 0.0
        %581 = vmatmul.mubr.f32.gmra.mrb[0].mxu0 %v365
        %v582 = vpop.f32.mrb[0].mxu0
        %v583 = vadd.f32 0.0, %v582
        %v584 = vpop.f32.mrb[0].mxu0
        %585 = vmatprep.mubr.f32.mxu0 0.0
        %586 = vmatmul.mubr.f32.gmra.mrb[0].mxu0 %v368
        %v587 = vpop.f32.mrb[0].mxu0
        %v588 = vadd.f32 0.0, %v587
        %v589 = vpop.f32.mrb[0].mxu0
        %590 = vmatprep.mubr.f32.mxu0 0.0
        %591 = vmatmul.mubr.f32.gmra.mrb[0].mxu0 %v371
        %v592 = vpop.f32.mrb[0].mxu0
        %v593 = vadd.f32 0.0, %v592
        %v594 = vpop.f32.mrb[0].mxu0
        %595 = vmatprep.mubr.f32.mxu0 0.0
        %596 = vmatmul.mubr.f32.gmra.mrb[0].mxu0 %v374
        %v597 = vpop.f32.mrb[0].mxu0
        %v598 = vadd.f32 0.0, %v597
        %v599 = vpop.f32.mrb[0].mxu0
        %600 = vmatprep.mubr.f32.mxu0 0.0
        %601 = vmatmul.mubr.f32.gmra.mrb[0].mxu0 %v377
        %v602 = vpop.f32.mrb[0].mxu0
        %v603 = vadd.f32 0.0, %v602
        %v604 = vpop.f32.mrb[0].mxu0
        %605 = vmatprep.mubr.f32.mxu0 0.0
        %606 = vmatmul.mubr.f32.gmra.mrb[0].mxu0 %v380
        %v607 = vpop.f32.mrb[0].mxu0
        %v608 = vadd.f32 0.0, %v607
        %v609 = vpop.f32.mrb[0].mxu0
        %610 = vdwg.mxu0
        %v612 = vsel %vm285, %v218, 0
        %v615 = vsel %vm285, %v219, 0
        %v618 = vsel %vm285, %v220, 0
        %v621 = vsel %vm285, %v221, 0
        %v624 = vsel %vm285, %v222, 0
        %v627 = vsel %vm285, %v223, 0
        %v630 = vsel %vm285, %v224, 0
        %v633 = vsel %vm285, %v225, 0
        %v636 = vsel %vm285, %v226, 0
        %v639 = vsel %vm285, %v227, 0
        %v642 = vsel %vm285, %v228, 0
        %v645 = vsel %vm285, %v229, 0
        %v648 = vsel %vm285, %v230, 0
        %v651 = vsel %vm285, %v231, 0
        %v654 = vsel %vm285, %v232, 0
        %v657 = vsel %vm285, %v233, 0
        %v660 = vsel %vm285, %v234, 0
        %v663 = vsel %vm285, %v235, 0
        %v666 = vsel %vm285, %v236, 0
        %v669 = vsel %vm285, %v237, 0
        %v672 = vsel %vm285, %v238, 0
        %v675 = vsel %vm285, %v239, 0
        %v678 = vsel %vm285, %v240, 0
        %v681 = vsel %vm285, %v241, 0
        %v684 = vsel %vm285, %v242, 0
        %v687 = vsel %vm285, %v243, 0
        %v690 = vsel %vm285, %v244, 0
        %v693 = vsel %vm285, %v245, 0
        %v696 = vsel %vm285, %v246, 0
        %v699 = vsel %vm285, %v247, 0
        %v702 = vsel %vm285, %v248, 0
        %v705 = vsel %vm285, %v249, 0
        %v708 = vsel %vm382, %v250, 0
        %710 = vmatprep.subr.mxu0 0.0
        %711 = vmatpush1.msra.mxu0 %v708
        %712 = vmatprep.subr.mxu0 0.0
        %713 = vmatpush1.msra.mxu0 0.0
        %714 = vmatprep.subr.mxu0 0.0
        %715 = vmatpush1.msra.mxu0 0.0
        %716 = vmatprep.subr.mxu0 0.0
        %717 = vmatpush1.msra.mxu0 0.0
        %718 = vmatprep.subr.mxu0 0.0
        %719 = vmatpush1.msra.mxu0 0.0
        %720 = vmatprep.subr.mxu0 0.0
        %721 = vmatpush1.msra.mxu0 0.0
        %722 = vmatprep.subr.mxu0 0.0
        %723 = vmatpush1.msra.mxu0 0.0
        %724 = vmatprep.subr.mxu0 0.0
        %725 = vmatpush1.msra.mxu0 0.0
        %726 = vmatprep.subr.mxu0 0.0
        %727 = vmatpush1.msra.mxu0 0.0
        %728 = vmatprep.subr.mxu0 0.0
        %729 = vmatpush1.msra.mxu0 0.0
        %730 = vmatprep.subr.mxu0 0.0
        %731 = vmatpush1.msra.mxu0 0.0
        %732 = vmatprep.subr.mxu0 0.0
        %733 = vmatpush1.msra.mxu0 0.0
        %734 = vmatprep.subr.mxu0 0.0
        %735 = vmatpush1.msra.mxu0 0.0
        %736 = vmatprep.subr.mxu0 0.0
        %737 = vmatpush1.msra.mxu0 0.0
        %738 = vmatprep.subr.mxu0 0.0
        %739 = vmatpush1.msra.mxu0 0.0
        %740 = vmatprep.subr.mxu0 0.0
        %741 = vmatpush1.msra.mxu0 0.0
        %742 = vmatprep.subr.mxu0 0.0
        %743 = vmatpush1.msra.mxu0 0.0
        %744 = vmatprep.subr.mxu0 0.0
        %745 = vmatpush1.msra.mxu0 0.0
        %746 = vmatprep.subr.mxu0 0.0
        %747 = vmatpush1.msra.mxu0 0.0
        %748 = vmatprep.subr.mxu0 0.0
        %749 = vmatpush1.msra.mxu0 0.0
        %750 = vmatprep.subr.mxu0 0.0
        %751 = vmatpush1.msra.mxu0 0.0
        %752 = vmatprep.subr.mxu0 0.0
        %753 = vmatpush1.msra.mxu0 0.0
        %754 = vmatprep.subr.mxu0 0.0
        %755 = vmatpush1.msra.mxu0 0.0
        %756 = vmatprep.subr.mxu0 0.0
        %757 = vmatpush1.msra.mxu0 0.0
        %758 = vmatprep.subr.mxu0 0.0
        %759 = vmatpush1.msra.mxu0 0.0
        %760 = vmatprep.subr.mxu0 0.0
        %761 = vmatpush1.msra.mxu0 0.0
        %762 = vmatprep.subr.mxu0 0.0
        %763 = vmatpush1.msra.mxu0 0.0
        %764 = vmatprep.subr.mxu0 0.0
        %765 = vmatpush1.msra.mxu0 0.0
        %766 = vmatprep.subr.mxu0 0.0
        %767 = vmatpush1.msra.mxu0 0.0
        %768 = vmatprep.subr.mxu0 0.0
        %769 = vmatpush1.msra.mxu0 0.0
        %770 = vmatprep.subr.mxu0 0.0
        %771 = vmatpush1.msra.mxu0 0.0
        %772 = vmatprep.subr.mxu0 0.0
        %773 = vmatpush1.msra.mxu0 0.0
        %774 = vmatprep.mubr.f32.mxu0 0.0
        %775 = vmatmul.mubr.f32.gmra.mrb[0].mxu0 %v612
        %v776 = vpop.f32.mrb[0].mxu0
        %v777 = vadd.f32 %v453, %v776
        %v778 = vpop.f32.mrb[0].mxu0
        %779 = vmatprep.mubr.f32.mxu0 0.0
        %780 = vmatmul.mubr.f32.gmra.mrb[0].mxu0 %v615
        %v781 = vpop.f32.mrb[0].mxu0
        %v782 = vadd.f32 %v458, %v781
        %v783 = vpop.f32.mrb[0].mxu0
        %784 = vmatprep.mubr.f32.mxu0 0.0
        %785 = vmatmul.mubr.f32.gmra.mrb[0].mxu0 %v618
        %v786 = vpop.f32.mrb[0].mxu0
        %v787 = vadd.f32 %v463, %v786
        %v788 = vpop.f32.mrb[0].mxu0
        %789 = vmatprep.mubr.f32.mxu0 0.0
        %790 = vmatmul.mubr.f32.gmra.mrb[0].mxu0 %v621
        %v791 = vpop.f32.mrb[0].mxu0
        %v792 = vadd.f32 %v468, %v791
        %v793 = vpop.f32.mrb[0].mxu0
        %794 = vmatprep.mubr.f32.mxu0 0.0
        %795 = vmatmul.mubr.f32.gmra.mrb[0].mxu0 %v624
        %v796 = vpop.f32.mrb[0].mxu0
        %v797 = vadd.f32 %v473, %v796
        %v798 = vpop.f32.mrb[0].mxu0
        %799 = vmatprep.mubr.f32.mxu0 0.0
        %800 = vmatmul.mubr.f32.gmra.mrb[0].mxu0 %v627
        %v801 = vpop.f32.mrb[0].mxu0
        %v802 = vadd.f32 %v478, %v801
        %v803 = vpop.f32.mrb[0].mxu0
        %804 = vmatprep.mubr.f32.mxu0 0.0
        %805 = vmatmul.mubr.f32.gmra.mrb[0].mxu0 %v630
        %v806 = vpop.f32.mrb[0].mxu0
        %v807 = vadd.f32 %v483, %v806
        %v808 = vpop.f32.mrb[0].mxu0
        %809 = vmatprep.mubr.f32.mxu0 0.0
        %810 = vmatmul.mubr.f32.gmra.mrb[0].mxu0 %v633
        %v811 = vpop.f32.mrb[0].mxu0
        %v812 = vadd.f32 %v488, %v811
        %v813 = vpop.f32.mrb[0].mxu0
        %814 = vmatprep.mubr.f32.mxu0 0.0
        %815 = vmatmul.mubr.f32.gmra.mrb[0].mxu0 %v636
        %v816 = vpop.f32.mrb[0].mxu0
        %v817 = vadd.f32 %v493, %v816
        %v818 = vpop.f32.mrb[0].mxu0
        %819 = vmatprep.mubr.f32.mxu0 0.0
        %820 = vmatmul.mubr.f32.gmra.mrb[0].mxu0 %v639
        %v821 = vpop.f32.mrb[0].mxu0
        %v822 = vadd.f32 %v498, %v821
        %v823 = vpop.f32.mrb[0].mxu0
        %824 = vmatprep.mubr.f32.mxu0 0.0
        %825 = vmatmul.mubr.f32.gmra.mrb[0].mxu0 %v642
        %v826 = vpop.f32.mrb[0].mxu0
        %v827 = vadd.f32 %v503, %v826
        %v828 = vpop.f32.mrb[0].mxu0
        %829 = vmatprep.mubr.f32.mxu0 0.0
        %830 = vmatmul.mubr.f32.gmra.mrb[0].mxu0 %v645
        %v831 = vpop.f32.mrb[0].mxu0
        %v832 = vadd.f32 %v508, %v831
        %v833 = vpop.f32.mrb[0].mxu0
        %834 = vmatprep.mubr.f32.mxu0 0.0
        %835 = vmatmul.mubr.f32.gmra.mrb[0].mxu0 %v648
        %v836 = vpop.f32.mrb[0].mxu0
        %v837 = vadd.f32 %v513, %v836
        %v838 = vpop.f32.mrb[0].mxu0
        %839 = vmatprep.mubr.f32.mxu0 0.0
        %840 = vmatmul.mubr.f32.gmra.mrb[0].mxu0 %v651
        %v841 = vpop.f32.mrb[0].mxu0
        %v842 = vadd.f32 %v518, %v841
        %v843 = vpop.f32.mrb[0].mxu0
        %844 = vmatprep.mubr.f32.mxu0 0.0
        %845 = vmatmul.mubr.f32.gmra.mrb[0].mxu0 %v654
        %v846 = vpop.f32.mrb[0].mxu0
        %v847 = vadd.f32 %v523, %v846
        %v848 = vpop.f32.mrb[0].mxu0
        %849 = vmatprep.mubr.f32.mxu0 0.0
        %850 = vmatmul.mubr.f32.gmra.mrb[0].mxu0 %v657
        %v851 = vpop.f32.mrb[0].mxu0
        %v852 = vadd.f32 %v528, %v851
        %v853 = vpop.f32.mrb[0].mxu0
        %854 = vmatprep.mubr.f32.mxu0 0.0
        %855 = vmatmul.mubr.f32.gmra.mrb[0].mxu0 %v660
        %v856 = vpop.f32.mrb[0].mxu0
        %v857 = vadd.f32 %v533, %v856
        %v858 = vpop.f32.mrb[0].mxu0
        %859 = vmatprep.mubr.f32.mxu0 0.0
        %860 = vmatmul.mubr.f32.gmra.mrb[0].mxu0 %v663
        %v861 = vpop.f32.mrb[0].mxu0
        %v862 = vadd.f32 %v538, %v861
        %v863 = vpop.f32.mrb[0].mxu0
        %864 = vmatprep.mubr.f32.mxu0 0.0
        %865 = vmatmul.mubr.f32.gmra.mrb[0].mxu0 %v666
        %v866 = vpop.f32.mrb[0].mxu0
        %v867 = vadd.f32 %v543, %v866
        %v868 = vpop.f32.mrb[0].mxu0
        %869 = vmatprep.mubr.f32.mxu0 0.0
        %870 = vmatmul.mubr.f32.gmra.mrb[0].mxu0 %v669
        %v871 = vpop.f32.mrb[0].mxu0
        %v872 = vadd.f32 %v548, %v871
        %v873 = vpop.f32.mrb[0].mxu0
        %874 = vmatprep.mubr.f32.mxu0 0.0
        %875 = vmatmul.mubr.f32.gmra.mrb[0].mxu0 %v672
        %v876 = vpop.f32.mrb[0].mxu0
        %v877 = vadd.f32 %v553, %v876
        %v878 = vpop.f32.mrb[0].mxu0
        %879 = vmatprep.mubr.f32.mxu0 0.0
        %880 = vmatmul.mubr.f32.gmra.mrb[0].mxu0 %v675
        %v881 = vpop.f32.mrb[0].mxu0
        %v882 = vadd.f32 %v558, %v881
        %v883 = vpop.f32.mrb[0].mxu0
        %884 = vmatprep.mubr.f32.mxu0 0.0
        %885 = vmatmul.mubr.f32.gmra.mrb[0].mxu0 %v678
        %v886 = vpop.f32.mrb[0].mxu0
        %v887 = vadd.f32 %v563, %v886
        %v888 = vpop.f32.mrb[0].mxu0
        %889 = vmatprep.mubr.f32.mxu0 0.0
        %890 = vmatmul.mubr.f32.gmra.mrb[0].mxu0 %v681
        %v891 = vpop.f32.mrb[0].mxu0
        %v892 = vadd.f32 %v568, %v891
        %v893 = vpop.f32.mrb[0].mxu0
        %894 = vmatprep.mubr.f32.mxu0 0.0
        %895 = vmatmul.mubr.f32.gmra.mrb[0].mxu0 %v684
        %v896 = vpop.f32.mrb[0].mxu0
        %v897 = vadd.f32 %v573, %v896
        %v898 = vpop.f32.mrb[0].mxu0
        %899 = vmatprep.mubr.f32.mxu0 0.0
        %900 = vmatmul.mubr.f32.gmra.mrb[0].mxu0 %v687
        %v901 = vpop.f32.mrb[0].mxu0
        %v902 = vadd.f32 %v578, %v901
        %v903 = vpop.f32.mrb[0].mxu0
        %904 = vmatprep.mubr.f32.mxu0 0.0
        %905 = vmatmul.mubr.f32.gmra.mrb[0].mxu0 %v690
        %v906 = vpop.f32.mrb[0].mxu0
        %v907 = vadd.f32 %v583, %v906
        %v908 = vpop.f32.mrb[0].mxu0
        %909 = vmatprep.mubr.f32.mxu0 0.0
        %910 = vmatmul.mubr.f32.gmra.mrb[0].mxu0 %v693
        %v911 = vpop.f32.mrb[0].mxu0
        %v912 = vadd.f32 %v588, %v911
        %v913 = vpop.f32.mrb[0].mxu0
        %914 = vmatprep.mubr.f32.mxu0 0.0
        %915 = vmatmul.mubr.f32.gmra.mrb[0].mxu0 %v696
        %v916 = vpop.f32.mrb[0].mxu0
        %v917 = vadd.f32 %v593, %v916
        %v918 = vpop.f32.mrb[0].mxu0
        %919 = vmatprep.mubr.f32.mxu0 0.0
        %920 = vmatmul.mubr.f32.gmra.mrb[0].mxu0 %v699
        %v921 = vpop.f32.mrb[0].mxu0
        %v922 = vadd.f32 %v598, %v921
        %v923 = vpop.f32.mrb[0].mxu0
        %924 = vmatprep.mubr.f32.mxu0 0.0
        %925 = vmatmul.mubr.f32.gmra.mrb[0].mxu0 %v702
        %v926 = vpop.f32.mrb[0].mxu0
        %v927 = vadd.f32 %v603, %v926
        %v928 = vpop.f32.mrb[0].mxu0
        %929 = vmatprep.mubr.f32.mxu0 0.0
        %930 = vmatmul.mubr.f32.gmra.mrb[0].mxu0 %v705
        %v931 = vpop.f32.mrb[0].mxu0
        %v932 = vadd.f32 %v608, %v931
        %v933 = vpop.f32.mrb[0].mxu0
        %934 = vdwg.mxu0
        %v935 = vld [vmem:[%s217 + $0x2] sm:$0xff]
        %v936 = vld [vmem:[%s217 + $0xa] sm:$0xff]
        %v937 = vld [vmem:[%s217 + $0x1a] sm:$0xff]
        %v938 = vld [vmem:[%s217 + $0x22] sm:$0xff]
        %v939 = vld [vmem:[%s217 + $0x32] sm:$0xff]
        %v940 = vld [vmem:[%s217 + $0x3a] sm:$0xff]
        %v941 = vld [vmem:[%s217 + $0x4a] sm:$0xff]
        %v942 = vld [vmem:[%s217 + $0x52] sm:$0xff]
        %v943 = vld [vmem:[%s217 + $0x62] sm:$0xff]
        %v944 = vld [vmem:[%s217 + $0x6a] sm:$0xff]
        %v945 = vld [vmem:[%s217 + $0x7a] sm:$0xff]
        %v946 = vld [vmem:[%s217 + $0x82] sm:$0xff]
        %v947 = vld [vmem:[%s217 + $0x92] sm:$0xff]
        %v948 = vld [vmem:[%s217 + $0x9a] sm:$0xff]
        %v949 = vld [vmem:[%s217 + $0xaa] sm:$0xff]
        %v950 = vld [vmem:[%s217 + $0xb2] sm:$0xff]
        %v951 = vld [vmem:[%s217 + $0xc2] sm:$0xff]
        %v952 = vld [vmem:[%s217 + $0xca] sm:$0xff]
        %v953 = vld [vmem:[%s217 + $0xda] sm:$0xff]
        %v954 = vld [vmem:[%s217 + $0xe2] sm:$0xff]
        %v955 = vld [vmem:[%s217 + $0xf2] sm:$0xff]
        %v956 = vld [vmem:[%s217 + $0xfa] sm:$0xff]
        %v957 = vld [vmem:[%s217 + $0x10a] sm:$0xff]
        %v958 = vld [vmem:[%s217 + $0x112] sm:$0xff]
        %v959 = vld [vmem:[%s217 + $0x122] sm:$0xff]
        %v960 = vld [vmem:[%s217 + $0x12a] sm:$0xff]
        %v961 = vld [vmem:[%s217 + $0x13a] sm:$0xff]
        %v962 = vld [vmem:[%s217 + $0x142] sm:$0xff]
        %v963 = vld [vmem:[%s217 + $0x152] sm:$0xff]
        %v964 = vld [vmem:[%s217 + $0x15a] sm:$0xff]
        %v965 = vld [vmem:[%s217 + $0x16a] sm:$0xff]
        %v966 = vld [vmem:[%s217 + $0x172] sm:$0xff]
        %s967 = scalar_lea.vmem %s1, 8
        %v968 = vld [vmem:[%s967] sm:$0xf]
        %v970 = vsel %vm285, %v935, 0
        %v973 = vsel %vm285, %v936, 0
        %v976 = vsel %vm285, %v937, 0
        %v979 = vsel %vm285, %v938, 0
        %v982 = vsel %vm285, %v939, 0
        %v985 = vsel %vm285, %v940, 0
        %v988 = vsel %vm285, %v941, 0
        %v991 = vsel %vm285, %v942, 0
        %v994 = vsel %vm285, %v943, 0
        %v997 = vsel %vm285, %v944, 0
        %v1000 = vsel %vm285, %v945, 0
        %v1003 = vsel %vm285, %v946, 0
        %v1006 = vsel %vm285, %v947, 0
        %v1009 = vsel %vm285, %v948, 0
        %v1012 = vsel %vm285, %v949, 0
        %v1015 = vsel %vm285, %v950, 0
        %v1018 = vsel %vm285, %v951, 0
        %v1021 = vsel %vm285, %v952, 0
        %v1024 = vsel %vm285, %v953, 0
        %v1027 = vsel %vm285, %v954, 0
        %v1030 = vsel %vm285, %v955, 0
        %v1033 = vsel %vm285, %v956, 0
        %v1036 = vsel %vm285, %v957, 0
        %v1039 = vsel %vm285, %v958, 0
        %v1042 = vsel %vm285, %v959, 0
        %v1045 = vsel %vm285, %v960, 0
        %v1048 = vsel %vm285, %v961, 0
        %v1051 = vsel %vm285, %v962, 0
        %v1054 = vsel %vm285, %v963, 0
        %v1057 = vsel %vm285, %v964, 0
        %v1060 = vsel %vm285, %v965, 0
        %v1063 = vsel %vm285, %v966, 0
        %v1066 = vsel %vm382, %v968, 0
        %1068 = vmatprep.subr.mxu0 0.0
        %1069 = vmatpush1.msra.mxu0 %v1066
        %1070 = vmatprep.subr.mxu0 0.0
        %1071 = vmatpush1.msra.mxu0 0.0
        %1072 = vmatprep.subr.mxu0 0.0
        %1073 = vmatpush1.msra.mxu0 0.0
        %1074 = vmatprep.subr.mxu0 0.0
        %1075 = vmatpush1.msra.mxu0 0.0
        %1076 = vmatprep.subr.mxu0 0.0
        %1077 = vmatpush1.msra.mxu0 0.0
        %1078 = vmatprep.subr.mxu0 0.0
        %1079 = vmatpush1.msra.mxu0 0.0
        %1080 = vmatprep.subr.mxu0 0.0
        %1081 = vmatpush1.msra.mxu0 0.0
        %1082 = vmatprep.subr.mxu0 0.0
        %1083 = vmatpush1.msra.mxu0 0.0
        %1084 = vmatprep.subr.mxu0 0.0
        %1085 = vmatpush1.msra.mxu0 0.0
        %1086 = vmatprep.subr.mxu0 0.0
        %1087 = vmatpush1.msra.mxu0 0.0
        %1088 = vmatprep.subr.mxu0 0.0
        %1089 = vmatpush1.msra.mxu0 0.0
        %1090 = vmatprep.subr.mxu0 0.0
        %1091 = vmatpush1.msra.mxu0 0.0
        %1092 = vmatprep.subr.mxu0 0.0
        %1093 = vmatpush1.msra.mxu0 0.0
        %1094 = vmatprep.subr.mxu0 0.0
        %1095 = vmatpush1.msra.mxu0 0.0
        %1096 = vmatprep.subr.mxu0 0.0
        %1097 = vmatpush1.msra.mxu0 0.0
        %1098 = vmatprep.subr.mxu0 0.0
        %1099 = vmatpush1.msra.mxu0 0.0
        %1100 = vmatprep.subr.mxu0 0.0
        %1101 = vmatpush1.msra.mxu0 0.0
        %1102 = vmatprep.subr.mxu0 0.0
        %1103 = vmatpush1.msra.mxu0 0.0
        %1104 = vmatprep.subr.mxu0 0.0
        %1105 = vmatpush1.msra.mxu0 0.0
        %1106 = vmatprep.subr.mxu0 0.0
        %1107 = vmatpush1.msra.mxu0 0.0
        %1108 = vmatprep.subr.mxu0 0.0
        %1109 = vmatpush1.msra.mxu0 0.0
        %1110 = vmatprep.subr.mxu0 0.0
        %1111 = vmatpush1.msra.mxu0 0.0
        %1112 = vmatprep.subr.mxu0 0.0
        %1113 = vmatpush1.msra.mxu0 0.0
        %1114 = vmatprep.subr.mxu0 0.0
        %1115 = vmatpush1.msra.mxu0 0.0
        %1116 = vmatprep.subr.mxu0 0.0
        %1117 = vmatpush1.msra.mxu0 0.0
        %1118 = vmatprep.subr.mxu0 0.0
        %1119 = vmatpush1.msra.mxu0 0.0
        %1120 = vmatprep.subr.mxu0 0.0
        %1121 = vmatpush1.msra.mxu0 0.0
        %1122 = vmatprep.subr.mxu0 0.0
        %1123 = vmatpush1.msra.mxu0 0.0
        %1124 = vmatprep.subr.mxu0 0.0
        %1125 = vmatpush1.msra.mxu0 0.0
        %1126 = vmatprep.subr.mxu0 0.0
        %1127 = vmatpush1.msra.mxu0 0.0
        %1128 = vmatprep.subr.mxu0 0.0
        %1129 = vmatpush1.msra.mxu0 0.0
        %1130 = vmatprep.subr.mxu0 0.0
        %1131 = vmatpush1.msra.mxu0 0.0
        %1132 = vmatprep.mubr.f32.mxu0 0.0
        %1133 = vmatmul.mubr.f32.gmra.mrb[0].mxu0 %v970
        %v1134 = vpop.f32.mrb[0].mxu0
        %v1135 = vadd.f32 0.0, %v1134
        %v1136 = vpop.f32.mrb[0].mxu0
        %1137 = vmatprep.mubr.f32.mxu0 0.0
        %1138 = vmatmul.mubr.f32.gmra.mrb[0].mxu0 %v973
        %v1139 = vpop.f32.mrb[0].mxu0
        %v1140 = vadd.f32 0.0, %v1139
        %v1141 = vpop.f32.mrb[0].mxu0
        %1142 = vmatprep.mubr.f32.mxu0 0.0
        %1143 = vmatmul.mubr.f32.gmra.mrb[0].mxu0 %v976
        %v1144 = vpop.f32.mrb[0].mxu0
        %v1145 = vadd.f32 0.0, %v1144
        %v1146 = vpop.f32.mrb[0].mxu0
        %1147 = vmatprep.mubr.f32.mxu0 0.0
        %1148 = vmatmul.mubr.f32.gmra.mrb[0].mxu0 %v979
        %v1149 = vpop.f32.mrb[0].mxu0
        %v1150 = vadd.f32 0.0, %v1149
        %v1151 = vpop.f32.mrb[0].mxu0
        %1152 = vmatprep.mubr.f32.mxu0 0.0
        %1153 = vmatmul.mubr.f32.gmra.mrb[0].mxu0 %v982
        %v1154 = vpop.f32.mrb[0].mxu0
        %v1155 = vadd.f32 0.0, %v1154
        %v1156 = vpop.f32.mrb[0].mxu0
        %1157 = vmatprep.mubr.f32.mxu0 0.0
        %1158 = vmatmul.mubr.f32.gmra.mrb[0].mxu0 %v985
        %v1159 = vpop.f32.mrb[0].mxu0
        %v1160 = vadd.f32 0.0, %v1159
        %v1161 = vpop.f32.mrb[0].mxu0
        %1162 = vmatprep.mubr.f32.mxu0 0.0
        %1163 = vmatmul.mubr.f32.gmra.mrb[0].mxu0 %v988
        %v1164 = vpop.f32.mrb[0].mxu0
        %v1165 = vadd.f32 0.0, %v1164
        %v1166 = vpop.f32.mrb[0].mxu0
        %1167 = vmatprep.mubr.f32.mxu0 0.0
        %1168 = vmatmul.mubr.f32.gmra.mrb[0].mxu0 %v991
        %v1169 = vpop.f32.mrb[0].mxu0
        %v1170 = vadd.f32 0.0, %v1169
        %v1171 = vpop.f32.mrb[0].mxu0
        %1172 = vmatprep.mubr.f32.mxu0 0.0
        %1173 = vmatmul.mubr.f32.gmra.mrb[0].mxu0 %v994
        %v1174 = vpop.f32.mrb[0].mxu0
        %v1175 = vadd.f32 0.0, %v1174
        %v1176 = vpop.f32.mrb[0].mxu0
        %1177 = vmatprep.mubr.f32.mxu0 0.0
        %1178 = vmatmul.mubr.f32.gmra.mrb[0].mxu0 %v997
        %v1179 = vpop.f32.mrb[0].mxu0
        %v1180 = vadd.f32 0.0, %v1179
        %v1181 = vpop.f32.mrb[0].mxu0
        %1182 = vmatprep.mubr.f32.mxu0 0.0
        %1183 = vmatmul.mubr.f32.gmra.mrb[0].mxu0 %v1000
        %v1184 = vpop.f32.mrb[0].mxu0
        %v1185 = vadd.f32 0.0, %v1184
        %v1186 = vpop.f32.mrb[0].mxu0
        %1187 = vmatprep.mubr.f32.mxu0 0.0
        %1188 = vmatmul.mubr.f32.gmra.mrb[0].mxu0 %v1003
        %v1189 = vpop.f32.mrb[0].mxu0
        %v1190 = vadd.f32 0.0, %v1189
        %v1191 = vpop.f32.mrb[0].mxu0
        %1192 = vmatprep.mubr.f32.mxu0 0.0
        %1193 = vmatmul.mubr.f32.gmra.mrb[0].mxu0 %v1006
        %v1194 = vpop.f32.mrb[0].mxu0
        %v1195 = vadd.f32 0.0, %v1194
        %v1196 = vpop.f32.mrb[0].mxu0
        %1197 = vmatprep.mubr.f32.mxu0 0.0
        %1198 = vmatmul.mubr.f32.gmra.mrb[0].mxu0 %v1009
        %v1199 = vpop.f32.mrb[0].mxu0
        %v1200 = vadd.f32 0.0, %v1199
        %v1201 = vpop.f32.mrb[0].mxu0
        %1202 = vmatprep.mubr.f32.mxu0 0.0
        %1203 = vmatmul.mubr.f32.gmra.mrb[0].mxu0 %v1012
        %v1204 = vpop.f32.mrb[0].mxu0
        %v1205 = vadd.f32 0.0, %v1204
        %v1206 = vpop.f32.mrb[0].mxu0
        %1207 = vmatprep.mubr.f32.mxu0 0.0
        %1208 = vmatmul.mubr.f32.gmra.mrb[0].mxu0 %v1015
        %v1209 = vpop.f32.mrb[0].mxu0
        %v1210 = vadd.f32 0.0, %v1209
        %v1211 = vpop.f32.mrb[0].mxu0
        %1212 = vmatprep.mubr.f32.mxu0 0.0
        %1213 = vmatmul.mubr.f32.gmra.mrb[0].mxu0 %v1018
        %v1214 = vpop.f32.mrb[0].mxu0
        %v1215 = vadd.f32 0.0, %v1214
        %v1216 = vpop.f32.mrb[0].mxu0
        %1217 = vmatprep.mubr.f32.mxu0 0.0
        %1218 = vmatmul.mubr.f32.gmra.mrb[0].mxu0 %v1021
        %v1219 = vpop.f32.mrb[0].mxu0
        %v1220 = vadd.f32 0.0, %v1219
        %v1221 = vpop.f32.mrb[0].mxu0
        %1222 = vmatprep.mubr.f32.mxu0 0.0
        %1223 = vmatmul.mubr.f32.gmra.mrb[0].mxu0 %v1024
        %v1224 = vpop.f32.mrb[0].mxu0
        %v1225 = vadd.f32 0.0, %v1224
        %v1226 = vpop.f32.mrb[0].mxu0
        %1227 = vmatprep.mubr.f32.mxu0 0.0
        %1228 = vmatmul.mubr.f32.gmra.mrb[0].mxu0 %v1027
        %v1229 = vpop.f32.mrb[0].mxu0
        %v1230 = vadd.f32 0.0, %v1229
        %v1231 = vpop.f32.mrb[0].mxu0
        %1232 = vmatprep.mubr.f32.mxu0 0.0
        %1233 = vmatmul.mubr.f32.gmra.mrb[0].mxu0 %v1030
        %v1234 = vpop.f32.mrb[0].mxu0
        %v1235 = vadd.f32 0.0, %v1234
        %v1236 = vpop.f32.mrb[0].mxu0
        %1237 = vmatprep.mubr.f32.mxu0 0.0
        %1238 = vmatmul.mubr.f32.gmra.mrb[0].mxu0 %v1033
        %v1239 = vpop.f32.mrb[0].mxu0
        %v1240 = vadd.f32 0.0, %v1239
        %v1241 = vpop.f32.mrb[0].mxu0
        %1242 = vmatprep.mubr.f32.mxu0 0.0
        %1243 = vmatmul.mubr.f32.gmra.mrb[0].mxu0 %v1036
        %v1244 = vpop.f32.mrb[0].mxu0
        %v1245 = vadd.f32 0.0, %v1244
        %v1246 = vpop.f32.mrb[0].mxu0
        %1247 = vmatprep.mubr.f32.mxu0 0.0
        %1248 = vmatmul.mubr.f32.gmra.mrb[0].mxu0 %v1039
        %v1249 = vpop.f32.mrb[0].mxu0
        %v1250 = vadd.f32 0.0, %v1249
        %v1251 = vpop.f32.mrb[0].mxu0
        %1252 = vmatprep.mubr.f32.mxu0 0.0
        %1253 = vmatmul.mubr.f32.gmra.mrb[0].mxu0 %v1042
        %v1254 = vpop.f32.mrb[0].mxu0
        %v1255 = vadd.f32 0.0, %v1254
        %v1256 = vpop.f32.mrb[0].mxu0
        %1257 = vmatprep.mubr.f32.mxu0 0.0
        %1258 = vmatmul.mubr.f32.gmra.mrb[0].mxu0 %v1045
        %v1259 = vpop.f32.mrb[0].mxu0
        %v1260 = vadd.f32 0.0, %v1259
        %v1261 = vpop.f32.mrb[0].mxu0
        %1262 = vmatprep.mubr.f32.mxu0 0.0
        %1263 = vmatmul.mubr.f32.gmra.mrb[0].mxu0 %v1048
        %v1264 = vpop.f32.mrb[0].mxu0
        %v1265 = vadd.f32 0.0, %v1264
        %v1266 = vpop.f32.mrb[0].mxu0
        %1267 = vmatprep.mubr.f32.mxu0 0.0
        %1268 = vmatmul.mubr.f32.gmra.mrb[0].mxu0 %v1051
        %v1269 = vpop.f32.mrb[0].mxu0
        %v1270 = vadd.f32 0.0, %v1269
        %v1271 = vpop.f32.mrb[0].mxu0
        %1272 = vmatprep.mubr.f32.mxu0 0.0
        %1273 = vmatmul.mubr.f32.gmra.mrb[0].mxu0 %v1054
        %v1274 = vpop.f32.mrb[0].mxu0
        %v1275 = vadd.f32 0.0, %v1274
        %v1276 = vpop.f32.mrb[0].mxu0
        %1277 = vmatprep.mubr.f32.mxu0 0.0
        %1278 = vmatmul.mubr.f32.gmra.mrb[0].mxu0 %v1057
        %v1279 = vpop.f32.mrb[0].mxu0
        %v1280 = vadd.f32 0.0, %v1279
        %v1281 = vpop.f32.mrb[0].mxu0
        %1282 = vmatprep.mubr.f32.mxu0 0.0
        %1283 = vmatmul.mubr.f32.gmra.mrb[0].mxu0 %v1060
        %v1284 = vpop.f32.mrb[0].mxu0
        %v1285 = vadd.f32 0.0, %v1284
        %v1286 = vpop.f32.mrb[0].mxu0
        %1287 = vmatprep.mubr.f32.mxu0 0.0
        %1288 = vmatmul.mubr.f32.gmra.mrb[0].mxu0 %v1063
        %v1289 = vpop.f32.mrb[0].mxu0
        %v1290 = vadd.f32 0.0, %v1289
        %v1291 = vpop.f32.mrb[0].mxu0
        %1292 = vdwg.mxu0
        %v1293 = vadd.f32 %v777, %v1135
        %v1294 = vadd.f32 %v782, %v1140
        %v1295 = vadd.f32 %v787, %v1145
        %v1296 = vadd.f32 %v792, %v1150
        %v1297 = vadd.f32 %v797, %v1155
        %v1298 = vadd.f32 %v802, %v1160
        %v1299 = vadd.f32 %v807, %v1165
        %v1300 = vadd.f32 %v812, %v1170
        %v1301 = vadd.f32 %v817, %v1175
        %v1302 = vadd.f32 %v822, %v1180
        %v1303 = vadd.f32 %v827, %v1185
        %v1304 = vadd.f32 %v832, %v1190
        %v1305 = vadd.f32 %v837, %v1195
        %v1306 = vadd.f32 %v842, %v1200
        %v1307 = vadd.f32 %v847, %v1205
        %v1308 = vadd.f32 %v852, %v1210
        %v1309 = vadd.f32 %v857, %v1215
        %v1310 = vadd.f32 %v862, %v1220
        %v1311 = vadd.f32 %v867, %v1225
        %v1312 = vadd.f32 %v872, %v1230
        %v1313 = vadd.f32 %v877, %v1235
        %v1314 = vadd.f32 %v882, %v1240
        %v1315 = vadd.f32 %v887, %v1245
        %v1316 = vadd.f32 %v892, %v1250
        %v1317 = vadd.f32 %v897, %v1255
        %v1318 = vadd.f32 %v902, %v1260
        %v1319 = vadd.f32 %v907, %v1265
        %v1320 = vadd.f32 %v912, %v1270
        %v1321 = vadd.f32 %v917, %v1275
        %v1322 = vadd.f32 %v922, %v1280
        %v1323 = vadd.f32 %v927, %v1285
        %v1324 = vadd.f32 %v932, %v1290
        %s1325 = sadd.s32 %s215, 1
        %s1326 = smul.u32 %s1325, 24
        %s1327 = scalar_lea.vmem %s205, %s1326
        %v1328 = vld [vmem:[%s1327] sm:$0xff]
        %v1329 = vld [vmem:[%s1327 + $0x8] sm:$0xff]
        %v1330 = vld [vmem:[%s1327 + $0x18] sm:$0xff]
        %v1331 = vld [vmem:[%s1327 + $0x20] sm:$0xff]
        %v1332 = vld [vmem:[%s1327 + $0x30] sm:$0xff]
        %v1333 = vld [vmem:[%s1327 + $0x38] sm:$0xff]
        %v1334 = vld [vmem:[%s1327 + $0x48] sm:$0xff]
        %v1335 = vld [vmem:[%s1327 + $0x50] sm:$0xff]
        %v1336 = vld [vmem:[%s1327 + $0x60] sm:$0xff]
        %v1337 = vld [vmem:[%s1327 + $0x68] sm:$0xff]
        %v1338 = vld [vmem:[%s1327 + $0x78] sm:$0xff]
        %v1339 = vld [vmem:[%s1327 + $0x80] sm:$0xff]
        %v1340 = vld [vmem:[%s1327 + $0x90] sm:$0xff]
        %v1341 = vld [vmem:[%s1327 + $0x98] sm:$0xff]
        %v1342 = vld [vmem:[%s1327 + $0xa8] sm:$0xff]
        %v1343 = vld [vmem:[%s1327 + $0xb0] sm:$0xff]
        %v1344 = vld [vmem:[%s1327 + $0xc0] sm:$0xff]
        %v1345 = vld [vmem:[%s1327 + $0xc8] sm:$0xff]
        %v1346 = vld [vmem:[%s1327 + $0xd8] sm:$0xff]
        %v1347 = vld [vmem:[%s1327 + $0xe0] sm:$0xff]
        %v1348 = vld [vmem:[%s1327 + $0xf0] sm:$0xff]
        %v1349 = vld [vmem:[%s1327 + $0xf8] sm:$0xff]
        %v1350 = vld [vmem:[%s1327 + $0x108] sm:$0xff]
        %v1351 = vld [vmem:[%s1327 + $0x110] sm:$0xff]
        %v1352 = vld [vmem:[%s1327 + $0x120] sm:$0xff]
        %v1353 = vld [vmem:[%s1327 + $0x128] sm:$0xff]
        %v1354 = vld [vmem:[%s1327 + $0x138] sm:$0xff]
        %v1355 = vld [vmem:[%s1327 + $0x140] sm:$0xff]
        %v1356 = vld [vmem:[%s1327 + $0x150] sm:$0xff]
        %v1357 = vld [vmem:[%s1327 + $0x158] sm:$0xff]
        %v1358 = vld [vmem:[%s1327 + $0x168] sm:$0xff]
        %v1359 = vld [vmem:[%s1327 + $0x170] sm:$0xff]
        %s1360 = scalar_lea.vmem %s1, 12
        %v1361 = vld [vmem:[%s1360] sm:$0xf]
        %v1363 = vsel %vm285, %v1328, 0
        %v1366 = vsel %vm285, %v1329, 0
        %v1369 = vsel %vm285, %v1330, 0
        %v1372 = vsel %vm285, %v1331, 0
        %v1375 = vsel %vm285, %v1332, 0
        %v1378 = vsel %vm285, %v1333, 0
        %v1381 = vsel %vm285, %v1334, 0
        %v1384 = vsel %vm285, %v1335, 0
        %v1387 = vsel %vm285, %v1336, 0
        %v1390 = vsel %vm285, %v1337, 0
        %v1393 = vsel %vm285, %v1338, 0
        %v1396 = vsel %vm285, %v1339, 0
        %v1399 = vsel %vm285, %v1340, 0
        %v1402 = vsel %vm285, %v1341, 0
        %v1405 = vsel %vm285, %v1342, 0
        %v1408 = vsel %vm285, %v1343, 0
        %v1411 = vsel %vm285, %v1344, 0
        %v1414 = vsel %vm285, %v1345, 0
        %v1417 = vsel %vm285, %v1346, 0
        %v1420 = vsel %vm285, %v1347, 0
        %v1423 = vsel %vm285, %v1348, 0
        %v1426 = vsel %vm285, %v1349, 0
        %v1429 = vsel %vm285, %v1350, 0
        %v1432 = vsel %vm285, %v1351, 0
        %v1435 = vsel %vm285, %v1352, 0
        %v1438 = vsel %vm285, %v1353, 0
        %v1441 = vsel %vm285, %v1354, 0
        %v1444 = vsel %vm285, %v1355, 0
        %v1447 = vsel %vm285, %v1356, 0
        %v1450 = vsel %vm285, %v1357, 0
        %v1453 = vsel %vm285, %v1358, 0
        %v1456 = vsel %vm285, %v1359, 0
        %v1459 = vsel %vm382, %v1361, 0
        %1461 = vmatprep.subr.mxu0 0.0
        %1462 = vmatpush1.msra.mxu0 %v1459
        %1463 = vmatprep.subr.mxu0 0.0
        %1464 = vmatpush1.msra.mxu0 0.0
        %1465 = vmatprep.subr.mxu0 0.0
        %1466 = vmatpush1.msra.mxu0 0.0
        %1467 = vmatprep.subr.mxu0 0.0
        %1468 = vmatpush1.msra.mxu0 0.0
        %1469 = vmatprep.subr.mxu0 0.0
        %1470 = vmatpush1.msra.mxu0 0.0
        %1471 = vmatprep.subr.mxu0 0.0
        %1472 = vmatpush1.msra.mxu0 0.0
        %1473 = vmatprep.subr.mxu0 0.0
        %1474 = vmatpush1.msra.mxu0 0.0
        %1475 = vmatprep.subr.mxu0 0.0
        %1476 = vmatpush1.msra.mxu0 0.0
        %1477 = vmatprep.subr.mxu0 0.0
        %1478 = vmatpush1.msra.mxu0 0.0
        %1479 = vmatprep.subr.mxu0 0.0
        %1480 = vmatpush1.msra.mxu0 0.0
        %1481 = vmatprep.subr.mxu0 0.0
        %1482 = vmatpush1.msra.mxu0 0.0
        %1483 = vmatprep.subr.mxu0 0.0
        %1484 = vmatpush1.msra.mxu0 0.0
        %1485 = vmatprep.subr.mxu0 0.0
        %1486 = vmatpush1.msra.mxu0 0.0
        %1487 = vmatprep.subr.mxu0 0.0
        %1488 = vmatpush1.msra.mxu0 0.0
        %1489 = vmatprep.subr.mxu0 0.0
        %1490 = vmatpush1.msra.mxu0 0.0
        %1491 = vmatprep.subr.mxu0 0.0
        %1492 = vmatpush1.msra.mxu0 0.0
        %1493 = vmatprep.subr.mxu0 0.0
        %1494 = vmatpush1.msra.mxu0 0.0
        %1495 = vmatprep.subr.mxu0 0.0
        %1496 = vmatpush1.msra.mxu0 0.0
        %1497 = vmatprep.subr.mxu0 0.0
        %1498 = vmatpush1.msra.mxu0 0.0
        %1499 = vmatprep.subr.mxu0 0.0
        %1500 = vmatpush1.msra.mxu0 0.0
        %1501 = vmatprep.subr.mxu0 0.0
        %1502 = vmatpush1.msra.mxu0 0.0
        %1503 = vmatprep.subr.mxu0 0.0
        %1504 = vmatpush1.msra.mxu0 0.0
        %1505 = vmatprep.subr.mxu0 0.0
        %1506 = vmatpush1.msra.mxu0 0.0
        %1507 = vmatprep.subr.mxu0 0.0
        %1508 = vmatpush1.msra.mxu0 0.0
        %1509 = vmatprep.subr.mxu0 0.0
        %1510 = vmatpush1.msra.mxu0 0.0
        %1511 = vmatprep.subr.mxu0 0.0
        %1512 = vmatpush1.msra.mxu0 0.0
        %1513 = vmatprep.subr.mxu0 0.0
        %1514 = vmatpush1.msra.mxu0 0.0
        %1515 = vmatprep.subr.mxu0 0.0
        %1516 = vmatpush1.msra.mxu0 0.0
        %1517 = vmatprep.subr.mxu0 0.0
        %1518 = vmatpush1.msra.mxu0 0.0
        %1519 = vmatprep.subr.mxu0 0.0
        %1520 = vmatpush1.msra.mxu0 0.0
        %1521 = vmatprep.subr.mxu0 0.0
        %1522 = vmatpush1.msra.mxu0 0.0
        %1523 = vmatprep.subr.mxu0 0.0
        %1524 = vmatpush1.msra.mxu0 0.0
        %1525 = vmatprep.mubr.f32.mxu0 0.0
        %1526 = vmatmul.mubr.f32.gmra.mrb[0].mxu0 %v1363
        %v1527 = vpop.f32.mrb[0].mxu0
        %v1528 = vadd.f32 0.0, %v1527
        %v1529 = vpop.f32.mrb[0].mxu0
        %1530 = vmatprep.mubr.f32.mxu0 0.0
        %1531 = vmatmul.mubr.f32.gmra.mrb[0].mxu0 %v1366
        %v1532 = vpop.f32.mrb[0].mxu0
        %v1533 = vadd.f32 0.0, %v1532
        %v1534 = vpop.f32.mrb[0].mxu0
        %1535 = vmatprep.mubr.f32.mxu0 0.0
        %1536 = vmatmul.mubr.f32.gmra.mrb[0].mxu0 %v1369
        %v1537 = vpop.f32.mrb[0].mxu0
        %v1538 = vadd.f32 0.0, %v1537
        %v1539 = vpop.f32.mrb[0].mxu0
        %1540 = vmatprep.mubr.f32.mxu0 0.0
        %1541 = vmatmul.mubr.f32.gmra.mrb[0].mxu0 %v1372
        %v1542 = vpop.f32.mrb[0].mxu0
        %v1543 = vadd.f32 0.0, %v1542
        %v1544 = vpop.f32.mrb[0].mxu0
        %1545 = vmatprep.mubr.f32.mxu0 0.0
        %1546 = vmatmul.mubr.f32.gmra.mrb[0].mxu0 %v1375
        %v1547 = vpop.f32.mrb[0].mxu0
        %v1548 = vadd.f32 0.0, %v1547
        %v1549 = vpop.f32.mrb[0].mxu0
        %1550 = vmatprep.mubr.f32.mxu0 0.0
        %1551 = vmatmul.mubr.f32.gmra.mrb[0].mxu0 %v1378
        %v1552 = vpop.f32.mrb[0].mxu0
        %v1553 = vadd.f32 0.0, %v1552
        %v1554 = vpop.f32.mrb[0].mxu0
        %1555 = vmatprep.mubr.f32.mxu0 0.0
        %1556 = vmatmul.mubr.f32.gmra.mrb[0].mxu0 %v1381
        %v1557 = vpop.f32.mrb[0].mxu0
        %v1558 = vadd.f32 0.0, %v1557
        %v1559 = vpop.f32.mrb[0].mxu0
        %1560 = vmatprep.mubr.f32.mxu0 0.0
        %1561 = vmatmul.mubr.f32.gmra.mrb[0].mxu0 %v1384
        %v1562 = vpop.f32.mrb[0].mxu0
        %v1563 = vadd.f32 0.0, %v1562
        %v1564 = vpop.f32.mrb[0].mxu0
        %1565 = vmatprep.mubr.f32.mxu0 0.0
        %1566 = vmatmul.mubr.f32.gmra.mrb[0].mxu0 %v1387
        %v1567 = vpop.f32.mrb[0].mxu0
        %v1568 = vadd.f32 0.0, %v1567
        %v1569 = vpop.f32.mrb[0].mxu0
        %1570 = vmatprep.mubr.f32.mxu0 0.0
        %1571 = vmatmul.mubr.f32.gmra.mrb[0].mxu0 %v1390
        %v1572 = vpop.f32.mrb[0].mxu0
        %v1573 = vadd.f32 0.0, %v1572
        %v1574 = vpop.f32.mrb[0].mxu0
        %1575 = vmatprep.mubr.f32.mxu0 0.0
        %1576 = vmatmul.mubr.f32.gmra.mrb[0].mxu0 %v1393
        %v1577 = vpop.f32.mrb[0].mxu0
        %v1578 = vadd.f32 0.0, %v1577
        %v1579 = vpop.f32.mrb[0].mxu0
        %1580 = vmatprep.mubr.f32.mxu0 0.0
        %1581 = vmatmul.mubr.f32.gmra.mrb[0].mxu0 %v1396
        %v1582 = vpop.f32.mrb[0].mxu0
        %v1583 = vadd.f32 0.0, %v1582
        %v1584 = vpop.f32.mrb[0].mxu0
        %1585 = vmatprep.mubr.f32.mxu0 0.0
        %1586 = vmatmul.mubr.f32.gmra.mrb[0].mxu0 %v1399
        %v1587 = vpop.f32.mrb[0].mxu0
        %v1588 = vadd.f32 0.0, %v1587
        %v1589 = vpop.f32.mrb[0].mxu0
        %1590 = vmatprep.mubr.f32.mxu0 0.0
        %1591 = vmatmul.mubr.f32.gmra.mrb[0].mxu0 %v1402
        %v1592 = vpop.f32.mrb[0].mxu0
        %v1593 = vadd.f32 0.0, %v1592
        %v1594 = vpop.f32.mrb[0].mxu0
        %1595 = vmatprep.mubr.f32.mxu0 0.0
        %1596 = vmatmul.mubr.f32.gmra.mrb[0].mxu0 %v1405
        %v1597 = vpop.f32.mrb[0].mxu0
        %v1598 = vadd.f32 0.0, %v1597
        %v1599 = vpop.f32.mrb[0].mxu0
        %1600 = vmatprep.mubr.f32.mxu0 0.0
        %1601 = vmatmul.mubr.f32.gmra.mrb[0].mxu0 %v1408
        %v1602 = vpop.f32.mrb[0].mxu0
        %v1603 = vadd.f32 0.0, %v1602
        %v1604 = vpop.f32.mrb[0].mxu0
        %1605 = vmatprep.mubr.f32.mxu0 0.0
        %1606 = vmatmul.mubr.f32.gmra.mrb[0].mxu0 %v1411
        %v1607 = vpop.f32.mrb[0].mxu0
        %v1608 = vadd.f32 0.0, %v1607
        %v1609 = vpop.f32.mrb[0].mxu0
        %1610 = vmatprep.mubr.f32.mxu0 0.0
        %1611 = vmatmul.mubr.f32.gmra.mrb[0].mxu0 %v1414
        %v1612 = vpop.f32.mrb[0].mxu0
        %v1613 = vadd.f32 0.0, %v1612
        %v1614 = vpop.f32.mrb[0].mxu0
        %1615 = vmatprep.mubr.f32.mxu0 0.0
        %1616 = vmatmul.mubr.f32.gmra.mrb[0].mxu0 %v1417
        %v1617 = vpop.f32.mrb[0].mxu0
        %v1618 = vadd.f32 0.0, %v1617
        %v1619 = vpop.f32.mrb[0].mxu0
        %1620 = vmatprep.mubr.f32.mxu0 0.0
        %1621 = vmatmul.mubr.f32.gmra.mrb[0].mxu0 %v1420
        %v1622 = vpop.f32.mrb[0].mxu0
        %v1623 = vadd.f32 0.0, %v1622
        %v1624 = vpop.f32.mrb[0].mxu0
        %1625 = vmatprep.mubr.f32.mxu0 0.0
        %1626 = vmatmul.mubr.f32.gmra.mrb[0].mxu0 %v1423
        %v1627 = vpop.f32.mrb[0].mxu0
        %v1628 = vadd.f32 0.0, %v1627
        %v1629 = vpop.f32.mrb[0].mxu0
        %1630 = vmatprep.mubr.f32.mxu0 0.0
        %1631 = vmatmul.mubr.f32.gmra.mrb[0].mxu0 %v1426
        %v1632 = vpop.f32.mrb[0].mxu0
        %v1633 = vadd.f32 0.0, %v1632
        %v1634 = vpop.f32.mrb[0].mxu0
        %1635 = vmatprep.mubr.f32.mxu0 0.0
        %1636 = vmatmul.mubr.f32.gmra.mrb[0].mxu0 %v1429
        %v1637 = vpop.f32.mrb[0].mxu0
        %v1638 = vadd.f32 0.0, %v1637
        %v1639 = vpop.f32.mrb[0].mxu0
        %1640 = vmatprep.mubr.f32.mxu0 0.0
        %1641 = vmatmul.mubr.f32.gmra.mrb[0].mxu0 %v1432
        %v1642 = vpop.f32.mrb[0].mxu0
        %v1643 = vadd.f32 0.0, %v1642
        %v1644 = vpop.f32.mrb[0].mxu0
        %1645 = vmatprep.mubr.f32.mxu0 0.0
        %1646 = vmatmul.mubr.f32.gmra.mrb[0].mxu0 %v1435
        %v1647 = vpop.f32.mrb[0].mxu0
        %v1648 = vadd.f32 0.0, %v1647
        %v1649 = vpop.f32.mrb[0].mxu0
        %1650 = vmatprep.mubr.f32.mxu0 0.0
        %1651 = vmatmul.mubr.f32.gmra.mrb[0].mxu0 %v1438
        %v1652 = vpop.f32.mrb[0].mxu0
        %v1653 = vadd.f32 0.0, %v1652
        %v1654 = vpop.f32.mrb[0].mxu0
        %1655 = vmatprep.mubr.f32.mxu0 0.0
        %1656 = vmatmul.mubr.f32.gmra.mrb[0].mxu0 %v1441
        %v1657 = vpop.f32.mrb[0].mxu0
        %v1658 = vadd.f32 0.0, %v1657
        %v1659 = vpop.f32.mrb[0].mxu0
        %1660 = vmatprep.mubr.f32.mxu0 0.0
        %1661 = vmatmul.mubr.f32.gmra.mrb[0].mxu0 %v1444
        %v1662 = vpop.f32.mrb[0].mxu0
        %v1663 = vadd.f32 0.0, %v1662
        %v1664 = vpop.f32.mrb[0].mxu0
        %1665 = vmatprep.mubr.f32.mxu0 0.0
        %1666 = vmatmul.mubr.f32.gmra.mrb[0].mxu0 %v1447
        %v1667 = vpop.f32.mrb[0].mxu0
        %v1668 = vadd.f32 0.0, %v1667
        %v1669 = vpop.f32.mrb[0].mxu0
        %1670 = vmatprep.mubr.f32.mxu0 0.0
        %1671 = vmatmul.mubr.f32.gmra.mrb[0].mxu0 %v1450
        %v1672 = vpop.f32.mrb[0].mxu0
        %v1673 = vadd.f32 0.0, %v1672
        %v1674 = vpop.f32.mrb[0].mxu0
        %1675 = vmatprep.mubr.f32.mxu0 0.0
        %1676 = vmatmul.mubr.f32.gmra.mrb[0].mxu0 %v1453
        %v1677 = vpop.f32.mrb[0].mxu0
        %v1678 = vadd.f32 0.0, %v1677
        %v1679 = vpop.f32.mrb[0].mxu0
        %1680 = vmatprep.mubr.f32.mxu0 0.0
        %1681 = vmatmul.mubr.f32.gmra.mrb[0].mxu0 %v1456
        %v1682 = vpop.f32.mrb[0].mxu0
        %v1683 = vadd.f32 0.0, %v1682
        %v1684 = vpop.f32.mrb[0].mxu0
        %1685 = vdwg.mxu0
        %v1686 = vadd.f32 %v1293, %v1528
        %v1687 = vadd.f32 %v1294, %v1533
        %v1688 = vadd.f32 %v1295, %v1538
        %v1689 = vadd.f32 %v1296, %v1543
        %v1690 = vadd.f32 %v1297, %v1548
        %v1691 = vadd.f32 %v1298, %v1553
        %v1692 = vadd.f32 %v1299, %v1558
        %v1693 = vadd.f32 %v1300, %v1563
        %v1694 = vadd.f32 %v1301, %v1568
        %v1695 = vadd.f32 %v1302, %v1573
        %v1696 = vadd.f32 %v1303, %v1578
        %v1697 = vadd.f32 %v1304, %v1583
        %v1698 = vadd.f32 %v1305, %v1588
        %v1699 = vadd.f32 %v1306, %v1593
        %v1700 = vadd.f32 %v1307, %v1598
        %v1701 = vadd.f32 %v1308, %v1603
        %v1702 = vadd.f32 %v1309, %v1608
        %v1703 = vadd.f32 %v1310, %v1613
        %v1704 = vadd.f32 %v1311, %v1618
        %v1705 = vadd.f32 %v1312, %v1623
        %v1706 = vadd.f32 %v1313, %v1628
        %v1707 = vadd.f32 %v1314, %v1633
        %v1708 = vadd.f32 %v1315, %v1638
        %v1709 = vadd.f32 %v1316, %v1643
        %v1710 = vadd.f32 %v1317, %v1648
        %v1711 = vadd.f32 %v1318, %v1653
        %v1712 = vadd.f32 %v1319, %v1658
        %v1713 = vadd.f32 %v1320, %v1663
        %v1714 = vadd.f32 %v1321, %v1668
        %v1715 = vadd.f32 %v1322, %v1673
        %v1716 = vadd.f32 %v1323, %v1678
        %v1717 = vadd.f32 %v1324, %v1683
        %v1718 = vld [vmem:[%s1327 + $0x1] sm:$0xff]
        %v1719 = vld [vmem:[%s1327 + $0x9] sm:$0xff]
        %v1720 = vld [vmem:[%s1327 + $0x19] sm:$0xff]
        %v1721 = vld [vmem:[%s1327 + $0x21] sm:$0xff]
        %v1722 = vld [vmem:[%s1327 + $0x31] sm:$0xff]
        %v1723 = vld [vmem:[%s1327 + $0x39] sm:$0xff]
        %v1724 = vld [vmem:[%s1327 + $0x49] sm:$0xff]
        %v1725 = vld [vmem:[%s1327 + $0x51] sm:$0xff]
        %v1726 = vld [vmem:[%s1327 + $0x61] sm:$0xff]
        %v1727 = vld [vmem:[%s1327 + $0x69] sm:$0xff]
        %v1728 = vld [vmem:[%s1327 + $0x79] sm:$0xff]
        %v1729 = vld [vmem:[%s1327 + $0x81] sm:$0xff]
        %v1730 = vld [vmem:[%s1327 + $0x91] sm:$0xff]
        %v1731 = vld [vmem:[%s1327 + $0x99] sm:$0xff]
        %v1732 = vld [vmem:[%s1327 + $0xa9] sm:$0xff]
        %v1733 = vld [vmem:[%s1327 + $0xb1] sm:$0xff]
        %v1734 = vld [vmem:[%s1327 + $0xc1] sm:$0xff]
        %v1735 = vld [vmem:[%s1327 + $0xc9] sm:$0xff]
        %v1736 = vld [vmem:[%s1327 + $0xd9] sm:$0xff]
        %v1737 = vld [vmem:[%s1327 + $0xe1] sm:$0xff]
        %v1738 = vld [vmem:[%s1327 + $0xf1] sm:$0xff]
        %v1739 = vld [vmem:[%s1327 + $0xf9] sm:$0xff]
        %v1740 = vld [vmem:[%s1327 + $0x109] sm:$0xff]
        %v1741 = vld [vmem:[%s1327 + $0x111] sm:$0xff]
        %v1742 = vld [vmem:[%s1327 + $0x121] sm:$0xff]
        %v1743 = vld [vmem:[%s1327 + $0x129] sm:$0xff]
        %v1744 = vld [vmem:[%s1327 + $0x139] sm:$0xff]
        %v1745 = vld [vmem:[%s1327 + $0x141] sm:$0xff]
        %v1746 = vld [vmem:[%s1327 + $0x151] sm:$0xff]
        %v1747 = vld [vmem:[%s1327 + $0x159] sm:$0xff]
        %v1748 = vld [vmem:[%s1327 + $0x169] sm:$0xff]
        %v1749 = vld [vmem:[%s1327 + $0x171] sm:$0xff]
        %s1750 = scalar_lea.vmem %s1, 16
        %v1751 = vld [vmem:[%s1750] sm:$0xf]
        %v1753 = vsel %vm285, %v1718, 0
        %v1756 = vsel %vm285, %v1719, 0
        %v1759 = vsel %vm285, %v1720, 0
        %v1762 = vsel %vm285, %v1721, 0
        %v1765 = vsel %vm285, %v1722, 0
        %v1768 = vsel %vm285, %v1723, 0
        %v1771 = vsel %vm285, %v1724, 0
        %v1774 = vsel %vm285, %v1725, 0
        %v1777 = vsel %vm285, %v1726, 0
        %v1780 = vsel %vm285, %v1727, 0
        %v1783 = vsel %vm285, %v1728, 0
        %v1786 = vsel %vm285, %v1729, 0
        %v1789 = vsel %vm285, %v1730, 0
        %v1792 = vsel %vm285, %v1731, 0
        %v1795 = vsel %vm285, %v1732, 0
        %v1798 = vsel %vm285, %v1733, 0
        %v1801 = vsel %vm285, %v1734, 0
        %v1804 = vsel %vm285, %v1735, 0
        %v1807 = vsel %vm285, %v1736, 0
        %v1810 = vsel %vm285, %v1737, 0
        %v1813 = vsel %vm285, %v1738, 0
        %v1816 = vsel %vm285, %v1739, 0
        %v1819 = vsel %vm285, %v1740, 0
        %v1822 = vsel %vm285, %v1741, 0
        %v1825 = vsel %vm285, %v1742, 0
        %v1828 = vsel %vm285, %v1743, 0
        %v1831 = vsel %vm285, %v1744, 0
        %v1834 = vsel %vm285, %v1745, 0
        %v1837 = vsel %vm285, %v1746, 0
        %v1840 = vsel %vm285, %v1747, 0
        %v1843 = vsel %vm285, %v1748, 0
        %v1846 = vsel %vm285, %v1749, 0
        %v1849 = vsel %vm382, %v1751, 0
        %1851 = vmatprep.subr.mxu0 0.0
        %1852 = vmatpush1.msra.mxu0 %v1849
        %1853 = vmatprep.subr.mxu0 0.0
        %1854 = vmatpush1.msra.mxu0 0.0
        %1855 = vmatprep.subr.mxu0 0.0
        %1856 = vmatpush1.msra.mxu0 0.0
        %1857 = vmatprep.subr.mxu0 0.0
        %1858 = vmatpush1.msra.mxu0 0.0
        %1859 = vmatprep.subr.mxu0 0.0
        %1860 = vmatpush1.msra.mxu0 0.0
        %1861 = vmatprep.subr.mxu0 0.0
        %1862 = vmatpush1.msra.mxu0 0.0
        %1863 = vmatprep.subr.mxu0 0.0
        %1864 = vmatpush1.msra.mxu0 0.0
        %1865 = vmatprep.subr.mxu0 0.0
        %1866 = vmatpush1.msra.mxu0 0.0
        %1867 = vmatprep.subr.mxu0 0.0
        %1868 = vmatpush1.msra.mxu0 0.0
        %1869 = vmatprep.subr.mxu0 0.0
        %1870 = vmatpush1.msra.mxu0 0.0
        %1871 = vmatprep.subr.mxu0 0.0
        %1872 = vmatpush1.msra.mxu0 0.0
        %1873 = vmatprep.subr.mxu0 0.0
        %1874 = vmatpush1.msra.mxu0 0.0
        %1875 = vmatprep.subr.mxu0 0.0
        %1876 = vmatpush1.msra.mxu0 0.0
        %1877 = vmatprep.subr.mxu0 0.0
        %1878 = vmatpush1.msra.mxu0 0.0
        %1879 = vmatprep.subr.mxu0 0.0
        %1880 = vmatpush1.msra.mxu0 0.0
        %1881 = vmatprep.subr.mxu0 0.0
        %1882 = vmatpush1.msra.mxu0 0.0
        %1883 = vmatprep.subr.mxu0 0.0
        %1884 = vmatpush1.msra.mxu0 0.0
        %1885 = vmatprep.subr.mxu0 0.0
        %1886 = vmatpush1.msra.mxu0 0.0
        %1887 = vmatprep.subr.mxu0 0.0
        %1888 = vmatpush1.msra.mxu0 0.0
        %1889 = vmatprep.subr.mxu0 0.0
        %1890 = vmatpush1.msra.mxu0 0.0
        %1891 = vmatprep.subr.mxu0 0.0
        %1892 = vmatpush1.msra.mxu0 0.0
        %1893 = vmatprep.subr.mxu0 0.0
        %1894 = vmatpush1.msra.mxu0 0.0
        %1895 = vmatprep.subr.mxu0 0.0
        %1896 = vmatpush1.msra.mxu0 0.0
        %1897 = vmatprep.subr.mxu0 0.0
        %1898 = vmatpush1.msra.mxu0 0.0
        %1899 = vmatprep.subr.mxu0 0.0
        %1900 = vmatpush1.msra.mxu0 0.0
        %1901 = vmatprep.subr.mxu0 0.0
        %1902 = vmatpush1.msra.mxu0 0.0
        %1903 = vmatprep.subr.mxu0 0.0
        %1904 = vmatpush1.msra.mxu0 0.0
        %1905 = vmatprep.subr.mxu0 0.0
        %1906 = vmatpush1.msra.mxu0 0.0
        %1907 = vmatprep.subr.mxu0 0.0
        %1908 = vmatpush1.msra.mxu0 0.0
        %1909 = vmatprep.subr.mxu0 0.0
        %1910 = vmatpush1.msra.mxu0 0.0
        %1911 = vmatprep.subr.mxu0 0.0
        %1912 = vmatpush1.msra.mxu0 0.0
        %1913 = vmatprep.subr.mxu0 0.0
        %1914 = vmatpush1.msra.mxu0 0.0
        %1915 = vmatprep.mubr.f32.mxu0 0.0
        %1916 = vmatmul.mubr.f32.gmra.mrb[0].mxu0 %v1753
        %v1917 = vpop.f32.mrb[0].mxu0
        %v1918 = vadd.f32 0.0, %v1917
        %v1919 = vpop.f32.mrb[0].mxu0
        %1920 = vmatprep.mubr.f32.mxu0 0.0
        %1921 = vmatmul.mubr.f32.gmra.mrb[0].mxu0 %v1756
        %v1922 = vpop.f32.mrb[0].mxu0
        %v1923 = vadd.f32 0.0, %v1922
        %v1924 = vpop.f32.mrb[0].mxu0
        %1925 = vmatprep.mubr.f32.mxu0 0.0
        %1926 = vmatmul.mubr.f32.gmra.mrb[0].mxu0 %v1759
        %v1927 = vpop.f32.mrb[0].mxu0
        %v1928 = vadd.f32 0.0, %v1927
        %v1929 = vpop.f32.mrb[0].mxu0
        %1930 = vmatprep.mubr.f32.mxu0 0.0
        %1931 = vmatmul.mubr.f32.gmra.mrb[0].mxu0 %v1762
        %v1932 = vpop.f32.mrb[0].mxu0
        %v1933 = vadd.f32 0.0, %v1932
        %v1934 = vpop.f32.mrb[0].mxu0
        %1935 = vmatprep.mubr.f32.mxu0 0.0
        %1936 = vmatmul.mubr.f32.gmra.mrb[0].mxu0 %v1765
        %v1937 = vpop.f32.mrb[0].mxu0
        %v1938 = vadd.f32 0.0, %v1937
        %v1939 = vpop.f32.mrb[0].mxu0
        %1940 = vmatprep.mubr.f32.mxu0 0.0
        %1941 = vmatmul.mubr.f32.gmra.mrb[0].mxu0 %v1768
        %v1942 = vpop.f32.mrb[0].mxu0
        %v1943 = vadd.f32 0.0, %v1942
        %v1944 = vpop.f32.mrb[0].mxu0
        %1945 = vmatprep.mubr.f32.mxu0 0.0
        %1946 = vmatmul.mubr.f32.gmra.mrb[0].mxu0 %v1771
        %v1947 = vpop.f32.mrb[0].mxu0
        %v1948 = vadd.f32 0.0, %v1947
        %v1949 = vpop.f32.mrb[0].mxu0
        %1950 = vmatprep.mubr.f32.mxu0 0.0
        %1951 = vmatmul.mubr.f32.gmra.mrb[0].mxu0 %v1774
        %v1952 = vpop.f32.mrb[0].mxu0
        %v1953 = vadd.f32 0.0, %v1952
        %v1954 = vpop.f32.mrb[0].mxu0
        %1955 = vmatprep.mubr.f32.mxu0 0.0
        %1956 = vmatmul.mubr.f32.gmra.mrb[0].mxu0 %v1777
        %v1957 = vpop.f32.mrb[0].mxu0
        %v1958 = vadd.f32 0.0, %v1957
        %v1959 = vpop.f32.mrb[0].mxu0
        %1960 = vmatprep.mubr.f32.mxu0 0.0
        %1961 = vmatmul.mubr.f32.gmra.mrb[0].mxu0 %v1780
        %v1962 = vpop.f32.mrb[0].mxu0
        %v1963 = vadd.f32 0.0, %v1962
        %v1964 = vpop.f32.mrb[0].mxu0
        %1965 = vmatprep.mubr.f32.mxu0 0.0
        %1966 = vmatmul.mubr.f32.gmra.mrb[0].mxu0 %v1783
        %v1967 = vpop.f32.mrb[0].mxu0
        %v1968 = vadd.f32 0.0, %v1967
        %v1969 = vpop.f32.mrb[0].mxu0
        %1970 = vmatprep.mubr.f32.mxu0 0.0
        %1971 = vmatmul.mubr.f32.gmra.mrb[0].mxu0 %v1786
        %v1972 = vpop.f32.mrb[0].mxu0
        %v1973 = vadd.f32 0.0, %v1972
        %v1974 = vpop.f32.mrb[0].mxu0
        %1975 = vmatprep.mubr.f32.mxu0 0.0
        %1976 = vmatmul.mubr.f32.gmra.mrb[0].mxu0 %v1789
        %v1977 = vpop.f32.mrb[0].mxu0
        %v1978 = vadd.f32 0.0, %v1977
        %v1979 = vpop.f32.mrb[0].mxu0
        %1980 = vmatprep.mubr.f32.mxu0 0.0
        %1981 = vmatmul.mubr.f32.gmra.mrb[0].mxu0 %v1792
        %v1982 = vpop.f32.mrb[0].mxu0
        %v1983 = vadd.f32 0.0, %v1982
        %v1984 = vpop.f32.mrb[0].mxu0
        %1985 = vmatprep.mubr.f32.mxu0 0.0
        %1986 = vmatmul.mubr.f32.gmra.mrb[0].mxu0 %v1795
        %v1987 = vpop.f32.mrb[0].mxu0
        %v1988 = vadd.f32 0.0, %v1987
        %v1989 = vpop.f32.mrb[0].mxu0
        %1990 = vmatprep.mubr.f32.mxu0 0.0
        %1991 = vmatmul.mubr.f32.gmra.mrb[0].mxu0 %v1798
        %v1992 = vpop.f32.mrb[0].mxu0
        %v1993 = vadd.f32 0.0, %v1992
        %v1994 = vpop.f32.mrb[0].mxu0
        %1995 = vmatprep.mubr.f32.mxu0 0.0
        %1996 = vmatmul.mubr.f32.gmra.mrb[0].mxu0 %v1801
        %v1997 = vpop.f32.mrb[0].mxu0
        %v1998 = vadd.f32 0.0, %v1997
        %v1999 = vpop.f32.mrb[0].mxu0
        %2000 = vmatprep.mubr.f32.mxu0 0.0
        %2001 = vmatmul.mubr.f32.gmra.mrb[0].mxu0 %v1804
        %v2002 = vpop.f32.mrb[0].mxu0
        %v2003 = vadd.f32 0.0, %v2002
        %v2004 = vpop.f32.mrb[0].mxu0
        %2005 = vmatprep.mubr.f32.mxu0 0.0
        %2006 = vmatmul.mubr.f32.gmra.mrb[0].mxu0 %v1807
        %v2007 = vpop.f32.mrb[0].mxu0
        %v2008 = vadd.f32 0.0, %v2007
        %v2009 = vpop.f32.mrb[0].mxu0
        %2010 = vmatprep.mubr.f32.mxu0 0.0
        %2011 = vmatmul.mubr.f32.gmra.mrb[0].mxu0 %v1810
        %v2012 = vpop.f32.mrb[0].mxu0
        %v2013 = vadd.f32 0.0, %v2012
        %v2014 = vpop.f32.mrb[0].mxu0
        %2015 = vmatprep.mubr.f32.mxu0 0.0
        %2016 = vmatmul.mubr.f32.gmra.mrb[0].mxu0 %v1813
        %v2017 = vpop.f32.mrb[0].mxu0
        %v2018 = vadd.f32 0.0, %v2017
        %v2019 = vpop.f32.mrb[0].mxu0
        %2020 = vmatprep.mubr.f32.mxu0 0.0
        %2021 = vmatmul.mubr.f32.gmra.mrb[0].mxu0 %v1816
        %v2022 = vpop.f32.mrb[0].mxu0
        %v2023 = vadd.f32 0.0, %v2022
        %v2024 = vpop.f32.mrb[0].mxu0
        %2025 = vmatprep.mubr.f32.mxu0 0.0
        %2026 = vmatmul.mubr.f32.gmra.mrb[0].mxu0 %v1819
        %v2027 = vpop.f32.mrb[0].mxu0
        %v2028 = vadd.f32 0.0, %v2027
        %v2029 = vpop.f32.mrb[0].mxu0
        %2030 = vmatprep.mubr.f32.mxu0 0.0
        %2031 = vmatmul.mubr.f32.gmra.mrb[0].mxu0 %v1822
        %v2032 = vpop.f32.mrb[0].mxu0
        %v2033 = vadd.f32 0.0, %v2032
        %v2034 = vpop.f32.mrb[0].mxu0
        %2035 = vmatprep.mubr.f32.mxu0 0.0
        %2036 = vmatmul.mubr.f32.gmra.mrb[0].mxu0 %v1825
        %v2037 = vpop.f32.mrb[0].mxu0
        %v2038 = vadd.f32 0.0, %v2037
        %v2039 = vpop.f32.mrb[0].mxu0
        %2040 = vmatprep.mubr.f32.mxu0 0.0
        %2041 = vmatmul.mubr.f32.gmra.mrb[0].mxu0 %v1828
        %v2042 = vpop.f32.mrb[0].mxu0
        %v2043 = vadd.f32 0.0, %v2042
        %v2044 = vpop.f32.mrb[0].mxu0
        %2045 = vmatprep.mubr.f32.mxu0 0.0
        %2046 = vmatmul.mubr.f32.gmra.mrb[0].mxu0 %v1831
        %v2047 = vpop.f32.mrb[0].mxu0
        %v2048 = vadd.f32 0.0, %v2047
        %v2049 = vpop.f32.mrb[0].mxu0
        %2050 = vmatprep.mubr.f32.mxu0 0.0
        %2051 = vmatmul.mubr.f32.gmra.mrb[0].mxu0 %v1834
        %v2052 = vpop.f32.mrb[0].mxu0
        %v2053 = vadd.f32 0.0, %v2052
        %v2054 = vpop.f32.mrb[0].mxu0
        %2055 = vmatprep.mubr.f32.mxu0 0.0
        %2056 = vmatmul.mubr.f32.gmra.mrb[0].mxu0 %v1837
        %v2057 = vpop.f32.mrb[0].mxu0
        %v2058 = vadd.f32 0.0, %v2057
        %v2059 = vpop.f32.mrb[0].mxu0
        %2060 = vmatprep.mubr.f32.mxu0 0.0
        %2061 = vmatmul.mubr.f32.gmra.mrb[0].mxu0 %v1840
        %v2062 = vpop.f32.mrb[0].mxu0
        %v2063 = vadd.f32 0.0, %v2062
        %v2064 = vpop.f32.mrb[0].mxu0
        %2065 = vmatprep.mubr.f32.mxu0 0.0
        %2066 = vmatmul.mubr.f32.gmra.mrb[0].mxu0 %v1843
        %v2067 = vpop.f32.mrb[0].mxu0
        %v2068 = vadd.f32 0.0, %v2067
        %v2069 = vpop.f32.mrb[0].mxu0
        %2070 = vmatprep.mubr.f32.mxu0 0.0
        %2071 = vmatmul.mubr.f32.gmra.mrb[0].mxu0 %v1846
        %v2072 = vpop.f32.mrb[0].mxu0
        %v2073 = vadd.f32 0.0, %v2072
        %v2074 = vpop.f32.mrb[0].mxu0
        %2075 = vdwg.mxu0
        %v2076 = vadd.f32 %v1686, %v1918
        %v2077 = vadd.f32 %v1687, %v1923
        %v2078 = vadd.f32 %v1688, %v1928
        %v2079 = vadd.f32 %v1689, %v1933
        %v2080 = vadd.f32 %v1690, %v1938
        %v2081 = vadd.f32 %v1691, %v1943
        %v2082 = vadd.f32 %v1692, %v1948
        %v2083 = vadd.f32 %v1693, %v1953
        %v2084 = vadd.f32 %v1694, %v1958
        %v2085 = vadd.f32 %v1695, %v1963
        %v2086 = vadd.f32 %v1696, %v1968
        %v2087 = vadd.f32 %v1697, %v1973
        %v2088 = vadd.f32 %v1698, %v1978
        %v2089 = vadd.f32 %v1699, %v1983
        %v2090 = vadd.f32 %v1700, %v1988
        %v2091 = vadd.f32 %v1701, %v1993
        %v2092 = vadd.f32 %v1702, %v1998
        %v2093 = vadd.f32 %v1703, %v2003
        %v2094 = vadd.f32 %v1704, %v2008
        %v2095 = vadd.f32 %v1705, %v2013
        %v2096 = vadd.f32 %v1706, %v2018
        %v2097 = vadd.f32 %v1707, %v2023
        %v2098 = vadd.f32 %v1708, %v2028
        %v2099 = vadd.f32 %v1709, %v2033
        %v2100 = vadd.f32 %v1710, %v2038
        %v2101 = vadd.f32 %v1711, %v2043
        %v2102 = vadd.f32 %v1712, %v2048
        %v2103 = vadd.f32 %v1713, %v2053
        %v2104 = vadd.f32 %v1714, %v2058
        %v2105 = vadd.f32 %v1715, %v2063
        %v2106 = vadd.f32 %v1716, %v2068
        %v2107 = vadd.f32 %v1717, %v2073
        %v2108 = vld [vmem:[%s1327 + $0x2] sm:$0xff]
        %v2109 = vld [vmem:[%s1327 + $0xa] sm:$0xff]
        %v2110 = vld [vmem:[%s1327 + $0x1a] sm:$0xff]
        %v2111 = vld [vmem:[%s1327 + $0x22] sm:$0xff]
        %v2112 = vld [vmem:[%s1327 + $0x32] sm:$0xff]
        %v2113 = vld [vmem:[%s1327 + $0x3a] sm:$0xff]
        %v2114 = vld [vmem:[%s1327 + $0x4a] sm:$0xff]
        %v2115 = vld [vmem:[%s1327 + $0x52] sm:$0xff]
        %v2116 = vld [vmem:[%s1327 + $0x62] sm:$0xff]
        %v2117 = vld [vmem:[%s1327 + $0x6a] sm:$0xff]
        %v2118 = vld [vmem:[%s1327 + $0x7a] sm:$0xff]
        %v2119 = vld [vmem:[%s1327 + $0x82] sm:$0xff]
        %v2120 = vld [vmem:[%s1327 + $0x92] sm:$0xff]
        %v2121 = vld [vmem:[%s1327 + $0x9a] sm:$0xff]
        %v2122 = vld [vmem:[%s1327 + $0xaa] sm:$0xff]
        %v2123 = vld [vmem:[%s1327 + $0xb2] sm:$0xff]
        %v2124 = vld [vmem:[%s1327 + $0xc2] sm:$0xff]
        %v2125 = vld [vmem:[%s1327 + $0xca] sm:$0xff]
        %v2126 = vld [vmem:[%s1327 + $0xda] sm:$0xff]
        %v2127 = vld [vmem:[%s1327 + $0xe2] sm:$0xff]
        %v2128 = vld [vmem:[%s1327 + $0xf2] sm:$0xff]
        %v2129 = vld [vmem:[%s1327 + $0xfa] sm:$0xff]
        %v2130 = vld [vmem:[%s1327 + $0x10a] sm:$0xff]
        %v2131 = vld [vmem:[%s1327 + $0x112] sm:$0xff]
        %v2132 = vld [vmem:[%s1327 + $0x122] sm:$0xff]
        %v2133 = vld [vmem:[%s1327 + $0x12a] sm:$0xff]
        %v2134 = vld [vmem:[%s1327 + $0x13a] sm:$0xff]
        %v2135 = vld [vmem:[%s1327 + $0x142] sm:$0xff]
        %v2136 = vld [vmem:[%s1327 + $0x152] sm:$0xff]
        %v2137 = vld [vmem:[%s1327 + $0x15a] sm:$0xff]
        %v2138 = vld [vmem:[%s1327 + $0x16a] sm:$0xff]
        %v2139 = vld [vmem:[%s1327 + $0x172] sm:$0xff]
        %s2140 = scalar_lea.vmem %s1, 20
        %v2141 = vld [vmem:[%s2140] sm:$0xf]
        %v2143 = vsel %vm285, %v2108, 0
        %v2146 = vsel %vm285, %v2109, 0
        %v2149 = vsel %vm285, %v2110, 0
        %v2152 = vsel %vm285, %v2111, 0
        %v2155 = vsel %vm285, %v2112, 0
        %v2158 = vsel %vm285, %v2113, 0
        %v2161 = vsel %vm285, %v2114, 0
        %v2164 = vsel %vm285, %v2115, 0
        %v2167 = vsel %vm285, %v2116, 0
        %v2170 = vsel %vm285, %v2117, 0
        %v2173 = vsel %vm285, %v2118, 0
        %v2176 = vsel %vm285, %v2119, 0
        %v2179 = vsel %vm285, %v2120, 0
        %v2182 = vsel %vm285, %v2121, 0
        %v2185 = vsel %vm285, %v2122, 0
        %v2188 = vsel %vm285, %v2123, 0
        %v2191 = vsel %vm285, %v2124, 0
        %v2194 = vsel %vm285, %v2125, 0
        %v2197 = vsel %vm285, %v2126, 0
        %v2200 = vsel %vm285, %v2127, 0
        %v2203 = vsel %vm285, %v2128, 0
        %v2206 = vsel %vm285, %v2129, 0
        %v2209 = vsel %vm285, %v2130, 0
        %v2212 = vsel %vm285, %v2131, 0
        %v2215 = vsel %vm285, %v2132, 0
        %v2218 = vsel %vm285, %v2133, 0
        %v2221 = vsel %vm285, %v2134, 0
        %v2224 = vsel %vm285, %v2135, 0
        %v2227 = vsel %vm285, %v2136, 0
        %v2230 = vsel %vm285, %v2137, 0
        %v2233 = vsel %vm285, %v2138, 0
        %v2236 = vsel %vm285, %v2139, 0
        %v2239 = vsel %vm382, %v2141, 0
        %2241 = vmatprep.subr.mxu0 0.0
        %2242 = vmatpush1.msra.mxu0 %v2239
        %2243 = vmatprep.subr.mxu0 0.0
        %2244 = vmatpush1.msra.mxu0 0.0
        %2245 = vmatprep.subr.mxu0 0.0
        %2246 = vmatpush1.msra.mxu0 0.0
        %2247 = vmatprep.subr.mxu0 0.0
        %2248 = vmatpush1.msra.mxu0 0.0
        %2249 = vmatprep.subr.mxu0 0.0
        %2250 = vmatpush1.msra.mxu0 0.0
        %2251 = vmatprep.subr.mxu0 0.0
        %2252 = vmatpush1.msra.mxu0 0.0
        %2253 = vmatprep.subr.mxu0 0.0
        %2254 = vmatpush1.msra.mxu0 0.0
        %2255 = vmatprep.subr.mxu0 0.0
        %2256 = vmatpush1.msra.mxu0 0.0
        %2257 = vmatprep.subr.mxu0 0.0
        %2258 = vmatpush1.msra.mxu0 0.0
        %2259 = vmatprep.subr.mxu0 0.0
        %2260 = vmatpush1.msra.mxu0 0.0
        %2261 = vmatprep.subr.mxu0 0.0
        %2262 = vmatpush1.msra.mxu0 0.0
        %2263 = vmatprep.subr.mxu0 0.0
        %2264 = vmatpush1.msra.mxu0 0.0
        %2265 = vmatprep.subr.mxu0 0.0
        %2266 = vmatpush1.msra.mxu0 0.0
        %2267 = vmatprep.subr.mxu0 0.0
        %2268 = vmatpush1.msra.mxu0 0.0
        %2269 = vmatprep.subr.mxu0 0.0
        %2270 = vmatpush1.msra.mxu0 0.0
        %2271 = vmatprep.subr.mxu0 0.0
        %2272 = vmatpush1.msra.mxu0 0.0
        %2273 = vmatprep.subr.mxu0 0.0
        %2274 = vmatpush1.msra.mxu0 0.0
        %2275 = vmatprep.subr.mxu0 0.0
        %2276 = vmatpush1.msra.mxu0 0.0
        %2277 = vmatprep.subr.mxu0 0.0
        %2278 = vmatpush1.msra.mxu0 0.0
        %2279 = vmatprep.subr.mxu0 0.0
        %2280 = vmatpush1.msra.mxu0 0.0
        %2281 = vmatprep.subr.mxu0 0.0
        %2282 = vmatpush1.msra.mxu0 0.0
        %2283 = vmatprep.subr.mxu0 0.0
        %2284 = vmatpush1.msra.mxu0 0.0
        %2285 = vmatprep.subr.mxu0 0.0
        %2286 = vmatpush1.msra.mxu0 0.0
        %2287 = vmatprep.subr.mxu0 0.0
        %2288 = vmatpush1.msra.mxu0 0.0
        %2289 = vmatprep.subr.mxu0 0.0
        %2290 = vmatpush1.msra.mxu0 0.0
        %2291 = vmatprep.subr.mxu0 0.0
        %2292 = vmatpush1.msra.mxu0 0.0
        %2293 = vmatprep.subr.mxu0 0.0
        %2294 = vmatpush1.msra.mxu0 0.0
        %2295 = vmatprep.subr.mxu0 0.0
        %2296 = vmatpush1.msra.mxu0 0.0
        %2297 = vmatprep.subr.mxu0 0.0
        %2298 = vmatpush1.msra.mxu0 0.0
        %2299 = vmatprep.subr.mxu0 0.0
        %2300 = vmatpush1.msra.mxu0 0.0
        %2301 = vmatprep.subr.mxu0 0.0
        %2302 = vmatpush1.msra.mxu0 0.0
        %2303 = vmatprep.subr.mxu0 0.0
        %2304 = vmatpush1.msra.mxu0 0.0
        %2305 = vmatprep.mubr.f32.mxu0 0.0
        %2306 = vmatmul.mubr.f32.gmra.mrb[0].mxu0 %v2143
        %v2307 = vpop.f32.mrb[0].mxu0
        %v2308 = vadd.f32 0.0, %v2307
        %v2309 = vpop.f32.mrb[0].mxu0
        %2310 = vmatprep.mubr.f32.mxu0 0.0
        %2311 = vmatmul.mubr.f32.gmra.mrb[0].mxu0 %v2146
        %v2312 = vpop.f32.mrb[0].mxu0
        %v2313 = vadd.f32 0.0, %v2312
        %v2314 = vpop.f32.mrb[0].mxu0
        %2315 = vmatprep.mubr.f32.mxu0 0.0
        %2316 = vmatmul.mubr.f32.gmra.mrb[0].mxu0 %v2149
        %v2317 = vpop.f32.mrb[0].mxu0
        %v2318 = vadd.f32 0.0, %v2317
        %v2319 = vpop.f32.mrb[0].mxu0
        %2320 = vmatprep.mubr.f32.mxu0 0.0
        %2321 = vmatmul.mubr.f32.gmra.mrb[0].mxu0 %v2152
        %v2322 = vpop.f32.mrb[0].mxu0
        %v2323 = vadd.f32 0.0, %v2322
        %v2324 = vpop.f32.mrb[0].mxu0
        %2325 = vmatprep.mubr.f32.mxu0 0.0
        %2326 = vmatmul.mubr.f32.gmra.mrb[0].mxu0 %v2155
        %v2327 = vpop.f32.mrb[0].mxu0
        %v2328 = vadd.f32 0.0, %v2327
        %v2329 = vpop.f32.mrb[0].mxu0
        %2330 = vmatprep.mubr.f32.mxu0 0.0
        %2331 = vmatmul.mubr.f32.gmra.mrb[0].mxu0 %v2158
        %v2332 = vpop.f32.mrb[0].mxu0
        %v2333 = vadd.f32 0.0, %v2332
        %v2334 = vpop.f32.mrb[0].mxu0
        %2335 = vmatprep.mubr.f32.mxu0 0.0
        %2336 = vmatmul.mubr.f32.gmra.mrb[0].mxu0 %v2161
        %v2337 = vpop.f32.mrb[0].mxu0
        %v2338 = vadd.f32 0.0, %v2337
        %v2339 = vpop.f32.mrb[0].mxu0
        %2340 = vmatprep.mubr.f32.mxu0 0.0
        %2341 = vmatmul.mubr.f32.gmra.mrb[0].mxu0 %v2164
        %v2342 = vpop.f32.mrb[0].mxu0
        %v2343 = vadd.f32 0.0, %v2342
        %v2344 = vpop.f32.mrb[0].mxu0
        %2345 = vmatprep.mubr.f32.mxu0 0.0
        %2346 = vmatmul.mubr.f32.gmra.mrb[0].mxu0 %v2167
        %v2347 = vpop.f32.mrb[0].mxu0
        %v2348 = vadd.f32 0.0, %v2347
        %v2349 = vpop.f32.mrb[0].mxu0
        %2350 = vmatprep.mubr.f32.mxu0 0.0
        %2351 = vmatmul.mubr.f32.gmra.mrb[0].mxu0 %v2170
        %v2352 = vpop.f32.mrb[0].mxu0
        %v2353 = vadd.f32 0.0, %v2352
        %v2354 = vpop.f32.mrb[0].mxu0
        %2355 = vmatprep.mubr.f32.mxu0 0.0
        %2356 = vmatmul.mubr.f32.gmra.mrb[0].mxu0 %v2173
        %v2357 = vpop.f32.mrb[0].mxu0
        %v2358 = vadd.f32 0.0, %v2357
        %v2359 = vpop.f32.mrb[0].mxu0
        %2360 = vmatprep.mubr.f32.mxu0 0.0
        %2361 = vmatmul.mubr.f32.gmra.mrb[0].mxu0 %v2176
        %v2362 = vpop.f32.mrb[0].mxu0
        %v2363 = vadd.f32 0.0, %v2362
        %v2364 = vpop.f32.mrb[0].mxu0
        %2365 = vmatprep.mubr.f32.mxu0 0.0
        %2366 = vmatmul.mubr.f32.gmra.mrb[0].mxu0 %v2179
        %v2367 = vpop.f32.mrb[0].mxu0
        %v2368 = vadd.f32 0.0, %v2367
        %v2369 = vpop.f32.mrb[0].mxu0
        %2370 = vmatprep.mubr.f32.mxu0 0.0
        %2371 = vmatmul.mubr.f32.gmra.mrb[0].mxu0 %v2182
        %v2372 = vpop.f32.mrb[0].mxu0
        %v2373 = vadd.f32 0.0, %v2372
        %v2374 = vpop.f32.mrb[0].mxu0
        %2375 = vmatprep.mubr.f32.mxu0 0.0
        %2376 = vmatmul.mubr.f32.gmra.mrb[0].mxu0 %v2185
        %v2377 = vpop.f32.mrb[0].mxu0
        %v2378 = vadd.f32 0.0, %v2377
        %v2379 = vpop.f32.mrb[0].mxu0
        %2380 = vmatprep.mubr.f32.mxu0 0.0
        %2381 = vmatmul.mubr.f32.gmra.mrb[0].mxu0 %v2188
        %v2382 = vpop.f32.mrb[0].mxu0
        %v2383 = vadd.f32 0.0, %v2382
        %v2384 = vpop.f32.mrb[0].mxu0
        %2385 = vmatprep.mubr.f32.mxu0 0.0
        %2386 = vmatmul.mubr.f32.gmra.mrb[0].mxu0 %v2191
        %v2387 = vpop.f32.mrb[0].mxu0
        %v2388 = vadd.f32 0.0, %v2387
        %v2389 = vpop.f32.mrb[0].mxu0
        %2390 = vmatprep.mubr.f32.mxu0 0.0
        %2391 = vmatmul.mubr.f32.gmra.mrb[0].mxu0 %v2194
        %v2392 = vpop.f32.mrb[0].mxu0
        %v2393 = vadd.f32 0.0, %v2392
        %v2394 = vpop.f32.mrb[0].mxu0
        %2395 = vmatprep.mubr.f32.mxu0 0.0
        %2396 = vmatmul.mubr.f32.gmra.mrb[0].mxu0 %v2197
        %v2397 = vpop.f32.mrb[0].mxu0
        %v2398 = vadd.f32 0.0, %v2397
        %v2399 = vpop.f32.mrb[0].mxu0
        %2400 = vmatprep.mubr.f32.mxu0 0.0
        %2401 = vmatmul.mubr.f32.gmra.mrb[0].mxu0 %v2200
        %v2402 = vpop.f32.mrb[0].mxu0
        %v2403 = vadd.f32 0.0, %v2402
        %v2404 = vpop.f32.mrb[0].mxu0
        %2405 = vmatprep.mubr.f32.mxu0 0.0
        %2406 = vmatmul.mubr.f32.gmra.mrb[0].mxu0 %v2203
        %v2407 = vpop.f32.mrb[0].mxu0
        %v2408 = vadd.f32 0.0, %v2407
        %v2409 = vpop.f32.mrb[0].mxu0
        %2410 = vmatprep.mubr.f32.mxu0 0.0
        %2411 = vmatmul.mubr.f32.gmra.mrb[0].mxu0 %v2206
        %v2412 = vpop.f32.mrb[0].mxu0
        %v2413 = vadd.f32 0.0, %v2412
        %v2414 = vpop.f32.mrb[0].mxu0
        %2415 = vmatprep.mubr.f32.mxu0 0.0
        %2416 = vmatmul.mubr.f32.gmra.mrb[0].mxu0 %v2209
        %v2417 = vpop.f32.mrb[0].mxu0
        %v2418 = vadd.f32 0.0, %v2417
        %v2419 = vpop.f32.mrb[0].mxu0
        %2420 = vmatprep.mubr.f32.mxu0 0.0
        %2421 = vmatmul.mubr.f32.gmra.mrb[0].mxu0 %v2212
        %v2422 = vpop.f32.mrb[0].mxu0
        %v2423 = vadd.f32 0.0, %v2422
        %v2424 = vpop.f32.mrb[0].mxu0
        %2425 = vmatprep.mubr.f32.mxu0 0.0
        %2426 = vmatmul.mubr.f32.gmra.mrb[0].mxu0 %v2215
        %v2427 = vpop.f32.mrb[0].mxu0
        %v2428 = vadd.f32 0.0, %v2427
        %v2429 = vpop.f32.mrb[0].mxu0
        %2430 = vmatprep.mubr.f32.mxu0 0.0
        %2431 = vmatmul.mubr.f32.gmra.mrb[0].mxu0 %v2218
        %v2432 = vpop.f32.mrb[0].mxu0
        %v2433 = vadd.f32 0.0, %v2432
        %v2434 = vpop.f32.mrb[0].mxu0
        %2435 = vmatprep.mubr.f32.mxu0 0.0
        %2436 = vmatmul.mubr.f32.gmra.mrb[0].mxu0 %v2221
        %v2437 = vpop.f32.mrb[0].mxu0
        %v2438 = vadd.f32 0.0, %v2437
        %v2439 = vpop.f32.mrb[0].mxu0
        %2440 = vmatprep.mubr.f32.mxu0 0.0
        %2441 = vmatmul.mubr.f32.gmra.mrb[0].mxu0 %v2224
        %v2442 = vpop.f32.mrb[0].mxu0
        %v2443 = vadd.f32 0.0, %v2442
        %v2444 = vpop.f32.mrb[0].mxu0
        %2445 = vmatprep.mubr.f32.mxu0 0.0
        %2446 = vmatmul.mubr.f32.gmra.mrb[0].mxu0 %v2227
        %v2447 = vpop.f32.mrb[0].mxu0
        %v2448 = vadd.f32 0.0, %v2447
        %v2449 = vpop.f32.mrb[0].mxu0
        %2450 = vmatprep.mubr.f32.mxu0 0.0
        %2451 = vmatmul.mubr.f32.gmra.mrb[0].mxu0 %v2230
        %v2452 = vpop.f32.mrb[0].mxu0
        %v2453 = vadd.f32 0.0, %v2452
        %v2454 = vpop.f32.mrb[0].mxu0
        %2455 = vmatprep.mubr.f32.mxu0 0.0
        %2456 = vmatmul.mubr.f32.gmra.mrb[0].mxu0 %v2233
        %v2457 = vpop.f32.mrb[0].mxu0
        %v2458 = vadd.f32 0.0, %v2457
        %v2459 = vpop.f32.mrb[0].mxu0
        %2460 = vmatprep.mubr.f32.mxu0 0.0
        %2461 = vmatmul.mubr.f32.gmra.mrb[0].mxu0 %v2236
        %v2462 = vpop.f32.mrb[0].mxu0
        %v2463 = vadd.f32 0.0, %v2462
        %v2464 = vpop.f32.mrb[0].mxu0
        %2465 = vdwg.mxu0
        %v2466 = vadd.f32 %v2076, %v2308
        %v2467 = vadd.f32 %v2077, %v2313
        %v2468 = vadd.f32 %v2078, %v2318
        %v2469 = vadd.f32 %v2079, %v2323
        %v2470 = vadd.f32 %v2080, %v2328
        %v2471 = vadd.f32 %v2081, %v2333
        %v2472 = vadd.f32 %v2082, %v2338
        %v2473 = vadd.f32 %v2083, %v2343
        %v2474 = vadd.f32 %v2084, %v2348
        %v2475 = vadd.f32 %v2085, %v2353
        %v2476 = vadd.f32 %v2086, %v2358
        %v2477 = vadd.f32 %v2087, %v2363
        %v2478 = vadd.f32 %v2088, %v2368
        %v2479 = vadd.f32 %v2089, %v2373
        %v2480 = vadd.f32 %v2090, %v2378
        %v2481 = vadd.f32 %v2091, %v2383
        %v2482 = vadd.f32 %v2092, %v2388
        %v2483 = vadd.f32 %v2093, %v2393
        %v2484 = vadd.f32 %v2094, %v2398
        %v2485 = vadd.f32 %v2095, %v2403
        %v2486 = vadd.f32 %v2096, %v2408
        %v2487 = vadd.f32 %v2097, %v2413
        %v2488 = vadd.f32 %v2098, %v2418
        %v2489 = vadd.f32 %v2099, %v2423
        %v2490 = vadd.f32 %v2100, %v2428
        %v2491 = vadd.f32 %v2101, %v2433
        %v2492 = vadd.f32 %v2102, %v2438
        %v2493 = vadd.f32 %v2103, %v2443
        %v2494 = vadd.f32 %v2104, %v2448
        %v2495 = vadd.f32 %v2105, %v2453
        %v2496 = vadd.f32 %v2106, %v2458
        %v2497 = vadd.f32 %v2107, %v2463
        %s2498 = sadd.s32 %s215, 2
        %s2499 = smul.u32 %s2498, 24
        %s2500 = scalar_lea.vmem %s205, %s2499
        %v2501 = vld [vmem:[%s2500] sm:$0xff]
        %v2502 = vld [vmem:[%s2500 + $0x8] sm:$0xff]
        %v2503 = vld [vmem:[%s2500 + $0x18] sm:$0xff]
        %v2504 = vld [vmem:[%s2500 + $0x20] sm:$0xff]
        %v2505 = vld [vmem:[%s2500 + $0x30] sm:$0xff]
        %v2506 = vld [vmem:[%s2500 + $0x38] sm:$0xff]
        %v2507 = vld [vmem:[%s2500 + $0x48] sm:$0xff]
        %v2508 = vld [vmem:[%s2500 + $0x50] sm:$0xff]
        %v2509 = vld [vmem:[%s2500 + $0x60] sm:$0xff]
        %v2510 = vld [vmem:[%s2500 + $0x68] sm:$0xff]
        %v2511 = vld [vmem:[%s2500 + $0x78] sm:$0xff]
        %v2512 = vld [vmem:[%s2500 + $0x80] sm:$0xff]
        %v2513 = vld [vmem:[%s2500 + $0x90] sm:$0xff]
        %v2514 = vld [vmem:[%s2500 + $0x98] sm:$0xff]
        %v2515 = vld [vmem:[%s2500 + $0xa8] sm:$0xff]
        %v2516 = vld [vmem:[%s2500 + $0xb0] sm:$0xff]
        %v2517 = vld [vmem:[%s2500 + $0xc0] sm:$0xff]
        %v2518 = vld [vmem:[%s2500 + $0xc8] sm:$0xff]
        %v2519 = vld [vmem:[%s2500 + $0xd8] sm:$0xff]
        %v2520 = vld [vmem:[%s2500 + $0xe0] sm:$0xff]
        %v2521 = vld [vmem:[%s2500 + $0xf0] sm:$0xff]
        %v2522 = vld [vmem:[%s2500 + $0xf8] sm:$0xff]
        %v2523 = vld [vmem:[%s2500 + $0x108] sm:$0xff]
        %v2524 = vld [vmem:[%s2500 + $0x110] sm:$0xff]
        %v2525 = vld [vmem:[%s2500 + $0x120] sm:$0xff]
        %v2526 = vld [vmem:[%s2500 + $0x128] sm:$0xff]
        %v2527 = vld [vmem:[%s2500 + $0x138] sm:$0xff]
        %v2528 = vld [vmem:[%s2500 + $0x140] sm:$0xff]
        %v2529 = vld [vmem:[%s2500 + $0x150] sm:$0xff]
        %v2530 = vld [vmem:[%s2500 + $0x158] sm:$0xff]
        %v2531 = vld [vmem:[%s2500 + $0x168] sm:$0xff]
        %v2532 = vld [vmem:[%s2500 + $0x170] sm:$0xff]
        %s2533 = scalar_lea.vmem %s1, 24
        %v2534 = vld [vmem:[%s2533] sm:$0xf]
        %v2536 = vsel %vm285, %v2501, 0
        %v2539 = vsel %vm285, %v2502, 0
        %v2542 = vsel %vm285, %v2503, 0
        %v2545 = vsel %vm285, %v2504, 0
        %v2548 = vsel %vm285, %v2505, 0
        %v2551 = vsel %vm285, %v2506, 0
        %v2554 = vsel %vm285, %v2507, 0
        %v2557 = vsel %vm285, %v2508, 0
        %v2560 = vsel %vm285, %v2509, 0
        %v2563 = vsel %vm285, %v2510, 0
        %v2566 = vsel %vm285, %v2511, 0
        %v2569 = vsel %vm285, %v2512, 0
        %v2572 = vsel %vm285, %v2513, 0
        %v2575 = vsel %vm285, %v2514, 0
        %v2578 = vsel %vm285, %v2515, 0
        %v2581 = vsel %vm285, %v2516, 0
        %v2584 = vsel %vm285, %v2517, 0
        %v2587 = vsel %vm285, %v2518, 0
        %v2590 = vsel %vm285, %v2519, 0
        %v2593 = vsel %vm285, %v2520, 0
        %v2596 = vsel %vm285, %v2521, 0
        %v2599 = vsel %vm285, %v2522, 0
        %v2602 = vsel %vm285, %v2523, 0
        %v2605 = vsel %vm285, %v2524, 0
        %v2608 = vsel %vm285, %v2525, 0
        %v2611 = vsel %vm285, %v2526, 0
        %v2614 = vsel %vm285, %v2527, 0
        %v2617 = vsel %vm285, %v2528, 0
        %v2620 = vsel %vm285, %v2529, 0
        %v2623 = vsel %vm285, %v2530, 0
        %v2626 = vsel %vm285, %v2531, 0
        %v2629 = vsel %vm285, %v2532, 0
        %v2632 = vsel %vm382, %v2534, 0
        %2634 = vmatprep.subr.mxu0 0.0
        %2635 = vmatpush1.msra.mxu0 %v2632
        %2636 = vmatprep.subr.mxu0 0.0
        %2637 = vmatpush1.msra.mxu0 0.0
        %2638 = vmatprep.subr.mxu0 0.0
        %2639 = vmatpush1.msra.mxu0 0.0
        %2640 = vmatprep.subr.mxu0 0.0
        %2641 = vmatpush1.msra.mxu0 0.0
        %2642 = vmatprep.subr.mxu0 0.0
        %2643 = vmatpush1.msra.mxu0 0.0
        %2644 = vmatprep.subr.mxu0 0.0
        %2645 = vmatpush1.msra.mxu0 0.0
        %2646 = vmatprep.subr.mxu0 0.0
        %2647 = vmatpush1.msra.mxu0 0.0
        %2648 = vmatprep.subr.mxu0 0.0
        %2649 = vmatpush1.msra.mxu0 0.0
        %2650 = vmatprep.subr.mxu0 0.0
        %2651 = vmatpush1.msra.mxu0 0.0
        %2652 = vmatprep.subr.mxu0 0.0
        %2653 = vmatpush1.msra.mxu0 0.0
        %2654 = vmatprep.subr.mxu0 0.0
        %2655 = vmatpush1.msra.mxu0 0.0
        %2656 = vmatprep.subr.mxu0 0.0
        %2657 = vmatpush1.msra.mxu0 0.0
        %2658 = vmatprep.subr.mxu0 0.0
        %2659 = vmatpush1.msra.mxu0 0.0
        %2660 = vmatprep.subr.mxu0 0.0
        %2661 = vmatpush1.msra.mxu0 0.0
        %2662 = vmatprep.subr.mxu0 0.0
        %2663 = vmatpush1.msra.mxu0 0.0
        %2664 = vmatprep.subr.mxu0 0.0
        %2665 = vmatpush1.msra.mxu0 0.0
        %2666 = vmatprep.subr.mxu0 0.0
        %2667 = vmatpush1.msra.mxu0 0.0
        %2668 = vmatprep.subr.mxu0 0.0
        %2669 = vmatpush1.msra.mxu0 0.0
        %2670 = vmatprep.subr.mxu0 0.0
        %2671 = vmatpush1.msra.mxu0 0.0
        %2672 = vmatprep.subr.mxu0 0.0
        %2673 = vmatpush1.msra.mxu0 0.0
        %2674 = vmatprep.subr.mxu0 0.0
        %2675 = vmatpush1.msra.mxu0 0.0
        %2676 = vmatprep.subr.mxu0 0.0
        %2677 = vmatpush1.msra.mxu0 0.0
        %2678 = vmatprep.subr.mxu0 0.0
        %2679 = vmatpush1.msra.mxu0 0.0
        %2680 = vmatprep.subr.mxu0 0.0
        %2681 = vmatpush1.msra.mxu0 0.0
        %2682 = vmatprep.subr.mxu0 0.0
        %2683 = vmatpush1.msra.mxu0 0.0
        %2684 = vmatprep.subr.mxu0 0.0
        %2685 = vmatpush1.msra.mxu0 0.0
        %2686 = vmatprep.subr.mxu0 0.0
        %2687 = vmatpush1.msra.mxu0 0.0
        %2688 = vmatprep.subr.mxu0 0.0
        %2689 = vmatpush1.msra.mxu0 0.0
        %2690 = vmatprep.subr.mxu0 0.0
        %2691 = vmatpush1.msra.mxu0 0.0
        %2692 = vmatprep.subr.mxu0 0.0
        %2693 = vmatpush1.msra.mxu0 0.0
        %2694 = vmatprep.subr.mxu0 0.0
        %2695 = vmatpush1.msra.mxu0 0.0
        %2696 = vmatprep.subr.mxu0 0.0
        %2697 = vmatpush1.msra.mxu0 0.0
        %2698 = vmatprep.mubr.f32.mxu0 0.0
        %2699 = vmatmul.mubr.f32.gmra.mrb[0].mxu0 %v2536
        %v2700 = vpop.f32.mrb[0].mxu0
        %v2701 = vadd.f32 0.0, %v2700
        %v2702 = vpop.f32.mrb[0].mxu0
        %2703 = vmatprep.mubr.f32.mxu0 0.0
        %2704 = vmatmul.mubr.f32.gmra.mrb[0].mxu0 %v2539
        %v2705 = vpop.f32.mrb[0].mxu0
        %v2706 = vadd.f32 0.0, %v2705
        %v2707 = vpop.f32.mrb[0].mxu0
        %2708 = vmatprep.mubr.f32.mxu0 0.0
        %2709 = vmatmul.mubr.f32.gmra.mrb[0].mxu0 %v2542
        %v2710 = vpop.f32.mrb[0].mxu0
        %v2711 = vadd.f32 0.0, %v2710
        %v2712 = vpop.f32.mrb[0].mxu0
        %2713 = vmatprep.mubr.f32.mxu0 0.0
        %2714 = vmatmul.mubr.f32.gmra.mrb[0].mxu0 %v2545
        %v2715 = vpop.f32.mrb[0].mxu0
        %v2716 = vadd.f32 0.0, %v2715
        %v2717 = vpop.f32.mrb[0].mxu0
        %2718 = vmatprep.mubr.f32.mxu0 0.0
        %2719 = vmatmul.mubr.f32.gmra.mrb[0].mxu0 %v2548
        %v2720 = vpop.f32.mrb[0].mxu0
        %v2721 = vadd.f32 0.0, %v2720
        %v2722 = vpop.f32.mrb[0].mxu0
        %2723 = vmatprep.mubr.f32.mxu0 0.0
        %2724 = vmatmul.mubr.f32.gmra.mrb[0].mxu0 %v2551
        %v2725 = vpop.f32.mrb[0].mxu0
        %v2726 = vadd.f32 0.0, %v2725
        %v2727 = vpop.f32.mrb[0].mxu0
        %2728 = vmatprep.mubr.f32.mxu0 0.0
        %2729 = vmatmul.mubr.f32.gmra.mrb[0].mxu0 %v2554
        %v2730 = vpop.f32.mrb[0].mxu0
        %v2731 = vadd.f32 0.0, %v2730
        %v2732 = vpop.f32.mrb[0].mxu0
        %2733 = vmatprep.mubr.f32.mxu0 0.0
        %2734 = vmatmul.mubr.f32.gmra.mrb[0].mxu0 %v2557
        %v2735 = vpop.f32.mrb[0].mxu0
        %v2736 = vadd.f32 0.0, %v2735
        %v2737 = vpop.f32.mrb[0].mxu0
        %2738 = vmatprep.mubr.f32.mxu0 0.0
        %2739 = vmatmul.mubr.f32.gmra.mrb[0].mxu0 %v2560
        %v2740 = vpop.f32.mrb[0].mxu0
        %v2741 = vadd.f32 0.0, %v2740
        %v2742 = vpop.f32.mrb[0].mxu0
        %2743 = vmatprep.mubr.f32.mxu0 0.0
        %2744 = vmatmul.mubr.f32.gmra.mrb[0].mxu0 %v2563
        %v2745 = vpop.f32.mrb[0].mxu0
        %v2746 = vadd.f32 0.0, %v2745
        %v2747 = vpop.f32.mrb[0].mxu0
        %2748 = vmatprep.mubr.f32.mxu0 0.0
        %2749 = vmatmul.mubr.f32.gmra.mrb[0].mxu0 %v2566
        %v2750 = vpop.f32.mrb[0].mxu0
        %v2751 = vadd.f32 0.0, %v2750
        %v2752 = vpop.f32.mrb[0].mxu0
        %2753 = vmatprep.mubr.f32.mxu0 0.0
        %2754 = vmatmul.mubr.f32.gmra.mrb[0].mxu0 %v2569
        %v2755 = vpop.f32.mrb[0].mxu0
        %v2756 = vadd.f32 0.0, %v2755
        %v2757 = vpop.f32.mrb[0].mxu0
        %2758 = vmatprep.mubr.f32.mxu0 0.0
        %2759 = vmatmul.mubr.f32.gmra.mrb[0].mxu0 %v2572
        %v2760 = vpop.f32.mrb[0].mxu0
        %v2761 = vadd.f32 0.0, %v2760
        %v2762 = vpop.f32.mrb[0].mxu0
        %2763 = vmatprep.mubr.f32.mxu0 0.0
        %2764 = vmatmul.mubr.f32.gmra.mrb[0].mxu0 %v2575
        %v2765 = vpop.f32.mrb[0].mxu0
        %v2766 = vadd.f32 0.0, %v2765
        %v2767 = vpop.f32.mrb[0].mxu0
        %2768 = vmatprep.mubr.f32.mxu0 0.0
        %2769 = vmatmul.mubr.f32.gmra.mrb[0].mxu0 %v2578
        %v2770 = vpop.f32.mrb[0].mxu0
        %v2771 = vadd.f32 0.0, %v2770
        %v2772 = vpop.f32.mrb[0].mxu0
        %2773 = vmatprep.mubr.f32.mxu0 0.0
        %2774 = vmatmul.mubr.f32.gmra.mrb[0].mxu0 %v2581
        %v2775 = vpop.f32.mrb[0].mxu0
        %v2776 = vadd.f32 0.0, %v2775
        %v2777 = vpop.f32.mrb[0].mxu0
        %2778 = vmatprep.mubr.f32.mxu0 0.0
        %2779 = vmatmul.mubr.f32.gmra.mrb[0].mxu0 %v2584
        %v2780 = vpop.f32.mrb[0].mxu0
        %v2781 = vadd.f32 0.0, %v2780
        %v2782 = vpop.f32.mrb[0].mxu0
        %2783 = vmatprep.mubr.f32.mxu0 0.0
        %2784 = vmatmul.mubr.f32.gmra.mrb[0].mxu0 %v2587
        %v2785 = vpop.f32.mrb[0].mxu0
        %v2786 = vadd.f32 0.0, %v2785
        %v2787 = vpop.f32.mrb[0].mxu0
        %2788 = vmatprep.mubr.f32.mxu0 0.0
        %2789 = vmatmul.mubr.f32.gmra.mrb[0].mxu0 %v2590
        %v2790 = vpop.f32.mrb[0].mxu0
        %v2791 = vadd.f32 0.0, %v2790
        %v2792 = vpop.f32.mrb[0].mxu0
        %2793 = vmatprep.mubr.f32.mxu0 0.0
        %2794 = vmatmul.mubr.f32.gmra.mrb[0].mxu0 %v2593
        %v2795 = vpop.f32.mrb[0].mxu0
        %v2796 = vadd.f32 0.0, %v2795
        %v2797 = vpop.f32.mrb[0].mxu0
        %2798 = vmatprep.mubr.f32.mxu0 0.0
        %2799 = vmatmul.mubr.f32.gmra.mrb[0].mxu0 %v2596
        %v2800 = vpop.f32.mrb[0].mxu0
        %v2801 = vadd.f32 0.0, %v2800
        %v2802 = vpop.f32.mrb[0].mxu0
        %2803 = vmatprep.mubr.f32.mxu0 0.0
        %2804 = vmatmul.mubr.f32.gmra.mrb[0].mxu0 %v2599
        %v2805 = vpop.f32.mrb[0].mxu0
        %v2806 = vadd.f32 0.0, %v2805
        %v2807 = vpop.f32.mrb[0].mxu0
        %2808 = vmatprep.mubr.f32.mxu0 0.0
        %2809 = vmatmul.mubr.f32.gmra.mrb[0].mxu0 %v2602
        %v2810 = vpop.f32.mrb[0].mxu0
        %v2811 = vadd.f32 0.0, %v2810
        %v2812 = vpop.f32.mrb[0].mxu0
        %2813 = vmatprep.mubr.f32.mxu0 0.0
        %2814 = vmatmul.mubr.f32.gmra.mrb[0].mxu0 %v2605
        %v2815 = vpop.f32.mrb[0].mxu0
        %v2816 = vadd.f32 0.0, %v2815
        %v2817 = vpop.f32.mrb[0].mxu0
        %2818 = vmatprep.mubr.f32.mxu0 0.0
        %2819 = vmatmul.mubr.f32.gmra.mrb[0].mxu0 %v2608
        %v2820 = vpop.f32.mrb[0].mxu0
        %v2821 = vadd.f32 0.0, %v2820
        %v2822 = vpop.f32.mrb[0].mxu0
        %2823 = vmatprep.mubr.f32.mxu0 0.0
        %2824 = vmatmul.mubr.f32.gmra.mrb[0].mxu0 %v2611
        %v2825 = vpop.f32.mrb[0].mxu0
        %v2826 = vadd.f32 0.0, %v2825
        %v2827 = vpop.f32.mrb[0].mxu0
        %2828 = vmatprep.mubr.f32.mxu0 0.0
        %2829 = vmatmul.mubr.f32.gmra.mrb[0].mxu0 %v2614
        %v2830 = vpop.f32.mrb[0].mxu0
        %v2831 = vadd.f32 0.0, %v2830
        %v2832 = vpop.f32.mrb[0].mxu0
        %2833 = vmatprep.mubr.f32.mxu0 0.0
        %2834 = vmatmul.mubr.f32.gmra.mrb[0].mxu0 %v2617
        %v2835 = vpop.f32.mrb[0].mxu0
        %v2836 = vadd.f32 0.0, %v2835
        %v2837 = vpop.f32.mrb[0].mxu0
        %2838 = vmatprep.mubr.f32.mxu0 0.0
        %2839 = vmatmul.mubr.f32.gmra.mrb[0].mxu0 %v2620
        %v2840 = vpop.f32.mrb[0].mxu0
        %v2841 = vadd.f32 0.0, %v2840
        %v2842 = vpop.f32.mrb[0].mxu0
        %2843 = vmatprep.mubr.f32.mxu0 0.0
        %2844 = vmatmul.mubr.f32.gmra.mrb[0].mxu0 %v2623
        %v2845 = vpop.f32.mrb[0].mxu0
        %v2846 = vadd.f32 0.0, %v2845
        %v2847 = vpop.f32.mrb[0].mxu0
        %2848 = vmatprep.mubr.f32.mxu0 0.0
        %2849 = vmatmul.mubr.f32.gmra.mrb[0].mxu0 %v2626
        %v2850 = vpop.f32.mrb[0].mxu0
        %v2851 = vadd.f32 0.0, %v2850
        %v2852 = vpop.f32.mrb[0].mxu0
        %2853 = vmatprep.mubr.f32.mxu0 0.0
        %2854 = vmatmul.mubr.f32.gmra.mrb[0].mxu0 %v2629
        %v2855 = vpop.f32.mrb[0].mxu0
        %v2856 = vadd.f32 0.0, %v2855
        %v2857 = vpop.f32.mrb[0].mxu0
        %2858 = vdwg.mxu0
        %v2859 = vadd.f32 %v2466, %v2701
        %v2860 = vadd.f32 %v2467, %v2706
        %v2861 = vadd.f32 %v2468, %v2711
        %v2862 = vadd.f32 %v2469, %v2716
        %v2863 = vadd.f32 %v2470, %v2721
        %v2864 = vadd.f32 %v2471, %v2726
        %v2865 = vadd.f32 %v2472, %v2731
        %v2866 = vadd.f32 %v2473, %v2736
        %v2867 = vadd.f32 %v2474, %v2741
        %v2868 = vadd.f32 %v2475, %v2746
        %v2869 = vadd.f32 %v2476, %v2751
        %v2870 = vadd.f32 %v2477, %v2756
        %v2871 = vadd.f32 %v2478, %v2761
        %v2872 = vadd.f32 %v2479, %v2766
        %v2873 = vadd.f32 %v2480, %v2771
        %v2874 = vadd.f32 %v2481, %v2776
        %v2875 = vadd.f32 %v2482, %v2781
        %v2876 = vadd.f32 %v2483, %v2786
        %v2877 = vadd.f32 %v2484, %v2791
        %v2878 = vadd.f32 %v2485, %v2796
        %v2879 = vadd.f32 %v2486, %v2801
        %v2880 = vadd.f32 %v2487, %v2806
        %v2881 = vadd.f32 %v2488, %v2811
        %v2882 = vadd.f32 %v2489, %v2816
        %v2883 = vadd.f32 %v2490, %v2821
        %v2884 = vadd.f32 %v2491, %v2826
        %v2885 = vadd.f32 %v2492, %v2831
        %v2886 = vadd.f32 %v2493, %v2836
        %v2887 = vadd.f32 %v2494, %v2841
        %v2888 = vadd.f32 %v2495, %v2846
        %v2889 = vadd.f32 %v2496, %v2851
        %v2890 = vadd.f32 %v2497, %v2856
        %v2891 = vld [vmem:[%s2500 + $0x1] sm:$0xff]
        %v2892 = vld [vmem:[%s2500 + $0x9] sm:$0xff]
        %v2893 = vld [vmem:[%s2500 + $0x19] sm:$0xff]
        %v2894 = vld [vmem:[%s2500 + $0x21] sm:$0xff]
        %v2895 = vld [vmem:[%s2500 + $0x31] sm:$0xff]
        %v2896 = vld [vmem:[%s2500 + $0x39] sm:$0xff]
        %v2897 = vld [vmem:[%s2500 + $0x49] sm:$0xff]
        %v2898 = vld [vmem:[%s2500 + $0x51] sm:$0xff]
        %v2899 = vld [vmem:[%s2500 + $0x61] sm:$0xff]
        %v2900 = vld [vmem:[%s2500 + $0x69] sm:$0xff]
        %v2901 = vld [vmem:[%s2500 + $0x79] sm:$0xff]
        %v2902 = vld [vmem:[%s2500 + $0x81] sm:$0xff]
        %v2903 = vld [vmem:[%s2500 + $0x91] sm:$0xff]
        %v2904 = vld [vmem:[%s2500 + $0x99] sm:$0xff]
        %v2905 = vld [vmem:[%s2500 + $0xa9] sm:$0xff]
        %v2906 = vld [vmem:[%s2500 + $0xb1] sm:$0xff]
        %v2907 = vld [vmem:[%s2500 + $0xc1] sm:$0xff]
        %v2908 = vld [vmem:[%s2500 + $0xc9] sm:$0xff]
        %v2909 = vld [vmem:[%s2500 + $0xd9] sm:$0xff]
        %v2910 = vld [vmem:[%s2500 + $0xe1] sm:$0xff]
        %v2911 = vld [vmem:[%s2500 + $0xf1] sm:$0xff]
        %v2912 = vld [vmem:[%s2500 + $0xf9] sm:$0xff]
        %v2913 = vld [vmem:[%s2500 + $0x109] sm:$0xff]
        %v2914 = vld [vmem:[%s2500 + $0x111] sm:$0xff]
        %v2915 = vld [vmem:[%s2500 + $0x121] sm:$0xff]
        %v2916 = vld [vmem:[%s2500 + $0x129] sm:$0xff]
        %v2917 = vld [vmem:[%s2500 + $0x139] sm:$0xff]
        %v2918 = vld [vmem:[%s2500 + $0x141] sm:$0xff]
        %v2919 = vld [vmem:[%s2500 + $0x151] sm:$0xff]
        %v2920 = vld [vmem:[%s2500 + $0x159] sm:$0xff]
        %v2921 = vld [vmem:[%s2500 + $0x169] sm:$0xff]
        %v2922 = vld [vmem:[%s2500 + $0x171] sm:$0xff]
        %s2923 = scalar_lea.vmem %s1, 28
        %v2924 = vld [vmem:[%s2923] sm:$0xf]
        %v2926 = vsel %vm285, %v2891, 0
        %v2929 = vsel %vm285, %v2892, 0
        %v2932 = vsel %vm285, %v2893, 0
        %v2935 = vsel %vm285, %v2894, 0
        %v2938 = vsel %vm285, %v2895, 0
        %v2941 = vsel %vm285, %v2896, 0
        %v2944 = vsel %vm285, %v2897, 0
        %v2947 = vsel %vm285, %v2898, 0
        %v2950 = vsel %vm285, %v2899, 0
        %v2953 = vsel %vm285, %v2900, 0
        %v2956 = vsel %vm285, %v2901, 0
        %v2959 = vsel %vm285, %v2902, 0
        %v2962 = vsel %vm285, %v2903, 0
        %v2965 = vsel %vm285, %v2904, 0
        %v2968 = vsel %vm285, %v2905, 0
        %v2971 = vsel %vm285, %v2906, 0
        %v2974 = vsel %vm285, %v2907, 0
        %v2977 = vsel %vm285, %v2908, 0
        %v2980 = vsel %vm285, %v2909, 0
        %v2983 = vsel %vm285, %v2910, 0
        %v2986 = vsel %vm285, %v2911, 0
        %v2989 = vsel %vm285, %v2912, 0
        %v2992 = vsel %vm285, %v2913, 0
        %v2995 = vsel %vm285, %v2914, 0
        %v2998 = vsel %vm285, %v2915, 0
        %v3001 = vsel %vm285, %v2916, 0
        %v3004 = vsel %vm285, %v2917, 0
        %v3007 = vsel %vm285, %v2918, 0
        %v3010 = vsel %vm285, %v2919, 0
        %v3013 = vsel %vm285, %v2920, 0
        %v3016 = vsel %vm285, %v2921, 0
        %v3019 = vsel %vm285, %v2922, 0
        %v3022 = vsel %vm382, %v2924, 0
        %3024 = vmatprep.subr.mxu0 0.0
        %3025 = vmatpush1.msra.mxu0 %v3022
        %3026 = vmatprep.subr.mxu0 0.0
        %3027 = vmatpush1.msra.mxu0 0.0
        %3028 = vmatprep.subr.mxu0 0.0
        %3029 = vmatpush1.msra.mxu0 0.0
        %3030 = vmatprep.subr.mxu0 0.0
        %3031 = vmatpush1.msra.mxu0 0.0
        %3032 = vmatprep.subr.mxu0 0.0
        %3033 = vmatpush1.msra.mxu0 0.0
        %3034 = vmatprep.subr.mxu0 0.0
        %3035 = vmatpush1.msra.mxu0 0.0
        %3036 = vmatprep.subr.mxu0 0.0
        %3037 = vmatpush1.msra.mxu0 0.0
        %3038 = vmatprep.subr.mxu0 0.0
        %3039 = vmatpush1.msra.mxu0 0.0
        %3040 = vmatprep.subr.mxu0 0.0
        %3041 = vmatpush1.msra.mxu0 0.0
        %3042 = vmatprep.subr.mxu0 0.0
        %3043 = vmatpush1.msra.mxu0 0.0
        %3044 = vmatprep.subr.mxu0 0.0
        %3045 = vmatpush1.msra.mxu0 0.0
        %3046 = vmatprep.subr.mxu0 0.0
        %3047 = vmatpush1.msra.mxu0 0.0
        %3048 = vmatprep.subr.mxu0 0.0
        %3049 = vmatpush1.msra.mxu0 0.0
        %3050 = vmatprep.subr.mxu0 0.0
        %3051 = vmatpush1.msra.mxu0 0.0
        %3052 = vmatprep.subr.mxu0 0.0
        %3053 = vmatpush1.msra.mxu0 0.0
        %3054 = vmatprep.subr.mxu0 0.0
        %3055 = vmatpush1.msra.mxu0 0.0
        %3056 = vmatprep.subr.mxu0 0.0
        %3057 = vmatpush1.msra.mxu0 0.0
        %3058 = vmatprep.subr.mxu0 0.0
        %3059 = vmatpush1.msra.mxu0 0.0
        %3060 = vmatprep.subr.mxu0 0.0
        %3061 = vmatpush1.msra.mxu0 0.0
        %3062 = vmatprep.subr.mxu0 0.0
        %3063 = vmatpush1.msra.mxu0 0.0
        %3064 = vmatprep.subr.mxu0 0.0
        %3065 = vmatpush1.msra.mxu0 0.0
        %3066 = vmatprep.subr.mxu0 0.0
        %3067 = vmatpush1.msra.mxu0 0.0
        %3068 = vmatprep.subr.mxu0 0.0
        %3069 = vmatpush1.msra.mxu0 0.0
        %3070 = vmatprep.subr.mxu0 0.0
        %3071 = vmatpush1.msra.mxu0 0.0
        %3072 = vmatprep.subr.mxu0 0.0
        %3073 = vmatpush1.msra.mxu0 0.0
        %3074 = vmatprep.subr.mxu0 0.0
        %3075 = vmatpush1.msra.mxu0 0.0
        %3076 = vmatprep.subr.mxu0 0.0
        %3077 = vmatpush1.msra.mxu0 0.0
        %3078 = vmatprep.subr.mxu0 0.0
        %3079 = vmatpush1.msra.mxu0 0.0
        %3080 = vmatprep.subr.mxu0 0.0
        %3081 = vmatpush1.msra.mxu0 0.0
        %3082 = vmatprep.subr.mxu0 0.0
        %3083 = vmatpush1.msra.mxu0 0.0
        %3084 = vmatprep.subr.mxu0 0.0
        %3085 = vmatpush1.msra.mxu0 0.0
        %3086 = vmatprep.subr.mxu0 0.0
        %3087 = vmatpush1.msra.mxu0 0.0
        %3088 = vmatprep.mubr.f32.mxu0 0.0
        %3089 = vmatmul.mubr.f32.gmra.mrb[0].mxu0 %v2926
        %v3090 = vpop.f32.mrb[0].mxu0
        %v3091 = vadd.f32 0.0, %v3090
        %v3092 = vpop.f32.mrb[0].mxu0
        %3093 = vmatprep.mubr.f32.mxu0 0.0
        %3094 = vmatmul.mubr.f32.gmra.mrb[0].mxu0 %v2929
        %v3095 = vpop.f32.mrb[0].mxu0
        %v3096 = vadd.f32 0.0, %v3095
        %v3097 = vpop.f32.mrb[0].mxu0
        %3098 = vmatprep.mubr.f32.mxu0 0.0
        %3099 = vmatmul.mubr.f32.gmra.mrb[0].mxu0 %v2932
        %v3100 = vpop.f32.mrb[0].mxu0
        %v3101 = vadd.f32 0.0, %v3100
        %v3102 = vpop.f32.mrb[0].mxu0
        %3103 = vmatprep.mubr.f32.mxu0 0.0
        %3104 = vmatmul.mubr.f32.gmra.mrb[0].mxu0 %v2935
        %v3105 = vpop.f32.mrb[0].mxu0
        %v3106 = vadd.f32 0.0, %v3105
        %v3107 = vpop.f32.mrb[0].mxu0
        %3108 = vmatprep.mubr.f32.mxu0 0.0
        %3109 = vmatmul.mubr.f32.gmra.mrb[0].mxu0 %v2938
        %v3110 = vpop.f32.mrb[0].mxu0
        %v3111 = vadd.f32 0.0, %v3110
        %v3112 = vpop.f32.mrb[0].mxu0
        %3113 = vmatprep.mubr.f32.mxu0 0.0
        %3114 = vmatmul.mubr.f32.gmra.mrb[0].mxu0 %v2941
        %v3115 = vpop.f32.mrb[0].mxu0
        %v3116 = vadd.f32 0.0, %v3115
        %v3117 = vpop.f32.mrb[0].mxu0
        %3118 = vmatprep.mubr.f32.mxu0 0.0
        %3119 = vmatmul.mubr.f32.gmra.mrb[0].mxu0 %v2944
        %v3120 = vpop.f32.mrb[0].mxu0
        %v3121 = vadd.f32 0.0, %v3120
        %v3122 = vpop.f32.mrb[0].mxu0
        %3123 = vmatprep.mubr.f32.mxu0 0.0
        %3124 = vmatmul.mubr.f32.gmra.mrb[0].mxu0 %v2947
        %v3125 = vpop.f32.mrb[0].mxu0
        %v3126 = vadd.f32 0.0, %v3125
        %v3127 = vpop.f32.mrb[0].mxu0
        %3128 = vmatprep.mubr.f32.mxu0 0.0
        %3129 = vmatmul.mubr.f32.gmra.mrb[0].mxu0 %v2950
        %v3130 = vpop.f32.mrb[0].mxu0
        %v3131 = vadd.f32 0.0, %v3130
        %v3132 = vpop.f32.mrb[0].mxu0
        %3133 = vmatprep.mubr.f32.mxu0 0.0
        %3134 = vmatmul.mubr.f32.gmra.mrb[0].mxu0 %v2953
        %v3135 = vpop.f32.mrb[0].mxu0
        %v3136 = vadd.f32 0.0, %v3135
        %v3137 = vpop.f32.mrb[0].mxu0
        %3138 = vmatprep.mubr.f32.mxu0 0.0
        %3139 = vmatmul.mubr.f32.gmra.mrb[0].mxu0 %v2956
        %v3140 = vpop.f32.mrb[0].mxu0
        %v3141 = vadd.f32 0.0, %v3140
        %v3142 = vpop.f32.mrb[0].mxu0
        %3143 = vmatprep.mubr.f32.mxu0 0.0
        %3144 = vmatmul.mubr.f32.gmra.mrb[0].mxu0 %v2959
        %v3145 = vpop.f32.mrb[0].mxu0
        %v3146 = vadd.f32 0.0, %v3145
        %v3147 = vpop.f32.mrb[0].mxu0
        %3148 = vmatprep.mubr.f32.mxu0 0.0
        %3149 = vmatmul.mubr.f32.gmra.mrb[0].mxu0 %v2962
        %v3150 = vpop.f32.mrb[0].mxu0
        %v3151 = vadd.f32 0.0, %v3150
        %v3152 = vpop.f32.mrb[0].mxu0
        %3153 = vmatprep.mubr.f32.mxu0 0.0
        %3154 = vmatmul.mubr.f32.gmra.mrb[0].mxu0 %v2965
        %v3155 = vpop.f32.mrb[0].mxu0
        %v3156 = vadd.f32 0.0, %v3155
        %v3157 = vpop.f32.mrb[0].mxu0
        %3158 = vmatprep.mubr.f32.mxu0 0.0
        %3159 = vmatmul.mubr.f32.gmra.mrb[0].mxu0 %v2968
        %v3160 = vpop.f32.mrb[0].mxu0
        %v3161 = vadd.f32 0.0, %v3160
        %v3162 = vpop.f32.mrb[0].mxu0
        %3163 = vmatprep.mubr.f32.mxu0 0.0
        %3164 = vmatmul.mubr.f32.gmra.mrb[0].mxu0 %v2971
        %v3165 = vpop.f32.mrb[0].mxu0
        %v3166 = vadd.f32 0.0, %v3165
        %v3167 = vpop.f32.mrb[0].mxu0
        %3168 = vmatprep.mubr.f32.mxu0 0.0
        %3169 = vmatmul.mubr.f32.gmra.mrb[0].mxu0 %v2974
        %v3170 = vpop.f32.mrb[0].mxu0
        %v3171 = vadd.f32 0.0, %v3170
        %v3172 = vpop.f32.mrb[0].mxu0
        %3173 = vmatprep.mubr.f32.mxu0 0.0
        %3174 = vmatmul.mubr.f32.gmra.mrb[0].mxu0 %v2977
        %v3175 = vpop.f32.mrb[0].mxu0
        %v3176 = vadd.f32 0.0, %v3175
        %v3177 = vpop.f32.mrb[0].mxu0
        %3178 = vmatprep.mubr.f32.mxu0 0.0
        %3179 = vmatmul.mubr.f32.gmra.mrb[0].mxu0 %v2980
        %v3180 = vpop.f32.mrb[0].mxu0
        %v3181 = vadd.f32 0.0, %v3180
        %v3182 = vpop.f32.mrb[0].mxu0
        %3183 = vmatprep.mubr.f32.mxu0 0.0
        %3184 = vmatmul.mubr.f32.gmra.mrb[0].mxu0 %v2983
        %v3185 = vpop.f32.mrb[0].mxu0
        %v3186 = vadd.f32 0.0, %v3185
        %v3187 = vpop.f32.mrb[0].mxu0
        %3188 = vmatprep.mubr.f32.mxu0 0.0
        %3189 = vmatmul.mubr.f32.gmra.mrb[0].mxu0 %v2986
        %v3190 = vpop.f32.mrb[0].mxu0
        %v3191 = vadd.f32 0.0, %v3190
        %v3192 = vpop.f32.mrb[0].mxu0
        %3193 = vmatprep.mubr.f32.mxu0 0.0
        %3194 = vmatmul.mubr.f32.gmra.mrb[0].mxu0 %v2989
        %v3195 = vpop.f32.mrb[0].mxu0
        %v3196 = vadd.f32 0.0, %v3195
        %v3197 = vpop.f32.mrb[0].mxu0
        %3198 = vmatprep.mubr.f32.mxu0 0.0
        %3199 = vmatmul.mubr.f32.gmra.mrb[0].mxu0 %v2992
        %v3200 = vpop.f32.mrb[0].mxu0
        %v3201 = vadd.f32 0.0, %v3200
        %v3202 = vpop.f32.mrb[0].mxu0
        %3203 = vmatprep.mubr.f32.mxu0 0.0
        %3204 = vmatmul.mubr.f32.gmra.mrb[0].mxu0 %v2995
        %v3205 = vpop.f32.mrb[0].mxu0
        %v3206 = vadd.f32 0.0, %v3205
        %v3207 = vpop.f32.mrb[0].mxu0
        %3208 = vmatprep.mubr.f32.mxu0 0.0
        %3209 = vmatmul.mubr.f32.gmra.mrb[0].mxu0 %v2998
        %v3210 = vpop.f32.mrb[0].mxu0
        %v3211 = vadd.f32 0.0, %v3210
        %v3212 = vpop.f32.mrb[0].mxu0
        %3213 = vmatprep.mubr.f32.mxu0 0.0
        %3214 = vmatmul.mubr.f32.gmra.mrb[0].mxu0 %v3001
        %v3215 = vpop.f32.mrb[0].mxu0
        %v3216 = vadd.f32 0.0, %v3215
        %v3217 = vpop.f32.mrb[0].mxu0
        %3218 = vmatprep.mubr.f32.mxu0 0.0
        %3219 = vmatmul.mubr.f32.gmra.mrb[0].mxu0 %v3004
        %v3220 = vpop.f32.mrb[0].mxu0
        %v3221 = vadd.f32 0.0, %v3220
        %v3222 = vpop.f32.mrb[0].mxu0
        %3223 = vmatprep.mubr.f32.mxu0 0.0
        %3224 = vmatmul.mubr.f32.gmra.mrb[0].mxu0 %v3007
        %v3225 = vpop.f32.mrb[0].mxu0
        %v3226 = vadd.f32 0.0, %v3225
        %v3227 = vpop.f32.mrb[0].mxu0
        %3228 = vmatprep.mubr.f32.mxu0 0.0
        %3229 = vmatmul.mubr.f32.gmra.mrb[0].mxu0 %v3010
        %v3230 = vpop.f32.mrb[0].mxu0
        %v3231 = vadd.f32 0.0, %v3230
        %v3232 = vpop.f32.mrb[0].mxu0
        %3233 = vmatprep.mubr.f32.mxu0 0.0
        %3234 = vmatmul.mubr.f32.gmra.mrb[0].mxu0 %v3013
        %v3235 = vpop.f32.mrb[0].mxu0
        %v3236 = vadd.f32 0.0, %v3235
        %v3237 = vpop.f32.mrb[0].mxu0
        %3238 = vmatprep.mubr.f32.mxu0 0.0
        %3239 = vmatmul.mubr.f32.gmra.mrb[0].mxu0 %v3016
        %v3240 = vpop.f32.mrb[0].mxu0
        %v3241 = vadd.f32 0.0, %v3240
        %v3242 = vpop.f32.mrb[0].mxu0
        %3243 = vmatprep.mubr.f32.mxu0 0.0
        %3244 = vmatmul.mubr.f32.gmra.mrb[0].mxu0 %v3019
        %v3245 = vpop.f32.mrb[0].mxu0
        %v3246 = vadd.f32 0.0, %v3245
        %v3247 = vpop.f32.mrb[0].mxu0
        %3248 = vdwg.mxu0
        %v3249 = vadd.f32 %v2859, %v3091
        %v3250 = vadd.f32 %v2860, %v3096
        %v3251 = vadd.f32 %v2861, %v3101
        %v3252 = vadd.f32 %v2862, %v3106
        %v3253 = vadd.f32 %v2863, %v3111
        %v3254 = vadd.f32 %v2864, %v3116
        %v3255 = vadd.f32 %v2865, %v3121
        %v3256 = vadd.f32 %v2866, %v3126
        %v3257 = vadd.f32 %v2867, %v3131
        %v3258 = vadd.f32 %v2868, %v3136
        %v3259 = vadd.f32 %v2869, %v3141
        %v3260 = vadd.f32 %v2870, %v3146
        %v3261 = vadd.f32 %v2871, %v3151
        %v3262 = vadd.f32 %v2872, %v3156
        %v3263 = vadd.f32 %v2873, %v3161
        %v3264 = vadd.f32 %v2874, %v3166
        %v3265 = vadd.f32 %v2875, %v3171
        %v3266 = vadd.f32 %v2876, %v3176
        %v3267 = vadd.f32 %v2877, %v3181
        %v3268 = vadd.f32 %v2878, %v3186
        %v3269 = vadd.f32 %v2879, %v3191
        %v3270 = vadd.f32 %v2880, %v3196
        %v3271 = vadd.f32 %v2881, %v3201
        %v3272 = vadd.f32 %v2882, %v3206
        %v3273 = vadd.f32 %v2883, %v3211
        %v3274 = vadd.f32 %v2884, %v3216
        %v3275 = vadd.f32 %v2885, %v3221
        %v3276 = vadd.f32 %v2886, %v3226
        %v3277 = vadd.f32 %v2887, %v3231
        %v3278 = vadd.f32 %v2888, %v3236
        %v3279 = vadd.f32 %v2889, %v3241
        %v3280 = vadd.f32 %v2890, %v3246
        %v3281 = vld [vmem:[%s2500 + $0x2] sm:$0xff]
        %v3282 = vld [vmem:[%s2500 + $0xa] sm:$0xff]
        %v3283 = vld [vmem:[%s2500 + $0x1a] sm:$0xff]
        %v3284 = vld [vmem:[%s2500 + $0x22] sm:$0xff]
        %v3285 = vld [vmem:[%s2500 + $0x32] sm:$0xff]
        %v3286 = vld [vmem:[%s2500 + $0x3a] sm:$0xff]
        %v3287 = vld [vmem:[%s2500 + $0x4a] sm:$0xff]
        %v3288 = vld [vmem:[%s2500 + $0x52] sm:$0xff]
        %v3289 = vld [vmem:[%s2500 + $0x62] sm:$0xff]
        %v3290 = vld [vmem:[%s2500 + $0x6a] sm:$0xff]
        %v3291 = vld [vmem:[%s2500 + $0x7a] sm:$0xff]
        %v3292 = vld [vmem:[%s2500 + $0x82] sm:$0xff]
        %v3293 = vld [vmem:[%s2500 + $0x92] sm:$0xff]
        %v3294 = vld [vmem:[%s2500 + $0x9a] sm:$0xff]
        %v3295 = vld [vmem:[%s2500 + $0xaa] sm:$0xff]
        %v3296 = vld [vmem:[%s2500 + $0xb2] sm:$0xff]
        %v3297 = vld [vmem:[%s2500 + $0xc2] sm:$0xff]
        %v3298 = vld [vmem:[%s2500 + $0xca] sm:$0xff]
        %v3299 = vld [vmem:[%s2500 + $0xda] sm:$0xff]
        %v3300 = vld [vmem:[%s2500 + $0xe2] sm:$0xff]
        %v3301 = vld [vmem:[%s2500 + $0xf2] sm:$0xff]
        %v3302 = vld [vmem:[%s2500 + $0xfa] sm:$0xff]
        %v3303 = vld [vmem:[%s2500 + $0x10a] sm:$0xff]
        %v3304 = vld [vmem:[%s2500 + $0x112] sm:$0xff]
        %v3305 = vld [vmem:[%s2500 + $0x122] sm:$0xff]
        %v3306 = vld [vmem:[%s2500 + $0x12a] sm:$0xff]
        %v3307 = vld [vmem:[%s2500 + $0x13a] sm:$0xff]
        %v3308 = vld [vmem:[%s2500 + $0x142] sm:$0xff]
        %v3309 = vld [vmem:[%s2500 + $0x152] sm:$0xff]
        %v3310 = vld [vmem:[%s2500 + $0x15a] sm:$0xff]
        %v3311 = vld [vmem:[%s2500 + $0x16a] sm:$0xff]
        %v3312 = vld [vmem:[%s2500 + $0x172] sm:$0xff]
        %s3313 = scalar_lea.vmem %s1, 32
        %v3314 = vld [vmem:[%s3313] sm:$0xf]
        %v3316 = vsel %vm285, %v3281, 0
        %v3319 = vsel %vm285, %v3282, 0
        %v3322 = vsel %vm285, %v3283, 0
        %v3325 = vsel %vm285, %v3284, 0
        %v3328 = vsel %vm285, %v3285, 0
        %v3331 = vsel %vm285, %v3286, 0
        %v3334 = vsel %vm285, %v3287, 0
        %v3337 = vsel %vm285, %v3288, 0
        %v3340 = vsel %vm285, %v3289, 0
        %v3343 = vsel %vm285, %v3290, 0
        %v3346 = vsel %vm285, %v3291, 0
        %v3349 = vsel %vm285, %v3292, 0
        %v3352 = vsel %vm285, %v3293, 0
        %v3355 = vsel %vm285, %v3294, 0
        %v3358 = vsel %vm285, %v3295, 0
        %v3361 = vsel %vm285, %v3296, 0
        %v3364 = vsel %vm285, %v3297, 0
        %v3367 = vsel %vm285, %v3298, 0
        %v3370 = vsel %vm285, %v3299, 0
        %v3373 = vsel %vm285, %v3300, 0
        %v3376 = vsel %vm285, %v3301, 0
        %v3379 = vsel %vm285, %v3302, 0
        %v3382 = vsel %vm285, %v3303, 0
        %v3385 = vsel %vm285, %v3304, 0
        %v3388 = vsel %vm285, %v3305, 0
        %v3391 = vsel %vm285, %v3306, 0
        %v3394 = vsel %vm285, %v3307, 0
        %v3397 = vsel %vm285, %v3308, 0
        %v3400 = vsel %vm285, %v3309, 0
        %v3403 = vsel %vm285, %v3310, 0
        %v3406 = vsel %vm285, %v3311, 0
        %v3409 = vsel %vm285, %v3312, 0
        %v3412 = vsel %vm382, %v3314, 0
        %3414 = vmatprep.subr.mxu0 0.0
        %3415 = vmatpush1.msra.mxu0 %v3412
        %3416 = vmatprep.subr.mxu0 0.0
        %3417 = vmatpush1.msra.mxu0 0.0
        %3418 = vmatprep.subr.mxu0 0.0
        %3419 = vmatpush1.msra.mxu0 0.0
        %3420 = vmatprep.subr.mxu0 0.0
        %3421 = vmatpush1.msra.mxu0 0.0
        %3422 = vmatprep.subr.mxu0 0.0
        %3423 = vmatpush1.msra.mxu0 0.0
        %3424 = vmatprep.subr.mxu0 0.0
        %3425 = vmatpush1.msra.mxu0 0.0
        %3426 = vmatprep.subr.mxu0 0.0
        %3427 = vmatpush1.msra.mxu0 0.0
        %3428 = vmatprep.subr.mxu0 0.0
        %3429 = vmatpush1.msra.mxu0 0.0
        %3430 = vmatprep.subr.mxu0 0.0
        %3431 = vmatpush1.msra.mxu0 0.0
        %3432 = vmatprep.subr.mxu0 0.0
        %3433 = vmatpush1.msra.mxu0 0.0
        %3434 = vmatprep.subr.mxu0 0.0
        %3435 = vmatpush1.msra.mxu0 0.0
        %3436 = vmatprep.subr.mxu0 0.0
        %3437 = vmatpush1.msra.mxu0 0.0
        %3438 = vmatprep.subr.mxu0 0.0
        %3439 = vmatpush1.msra.mxu0 0.0
        %3440 = vmatprep.subr.mxu0 0.0
        %3441 = vmatpush1.msra.mxu0 0.0
        %3442 = vmatprep.subr.mxu0 0.0
        %3443 = vmatpush1.msra.mxu0 0.0
        %3444 = vmatprep.subr.mxu0 0.0
        %3445 = vmatpush1.msra.mxu0 0.0
        %3446 = vmatprep.subr.mxu0 0.0
        %3447 = vmatpush1.msra.mxu0 0.0
        %3448 = vmatprep.subr.mxu0 0.0
        %3449 = vmatpush1.msra.mxu0 0.0
        %3450 = vmatprep.subr.mxu0 0.0
        %3451 = vmatpush1.msra.mxu0 0.0
        %3452 = vmatprep.subr.mxu0 0.0
        %3453 = vmatpush1.msra.mxu0 0.0
        %3454 = vmatprep.subr.mxu0 0.0
        %3455 = vmatpush1.msra.mxu0 0.0
        %3456 = vmatprep.subr.mxu0 0.0
        %3457 = vmatpush1.msra.mxu0 0.0
        %3458 = vmatprep.subr.mxu0 0.0
        %3459 = vmatpush1.msra.mxu0 0.0
        %3460 = vmatprep.subr.mxu0 0.0
        %3461 = vmatpush1.msra.mxu0 0.0
        %3462 = vmatprep.subr.mxu0 0.0
        %3463 = vmatpush1.msra.mxu0 0.0
        %3464 = vmatprep.subr.mxu0 0.0
        %3465 = vmatpush1.msra.mxu0 0.0
        %3466 = vmatprep.subr.mxu0 0.0
        %3467 = vmatpush1.msra.mxu0 0.0
        %3468 = vmatprep.subr.mxu0 0.0
        %3469 = vmatpush1.msra.mxu0 0.0
        %3470 = vmatprep.subr.mxu0 0.0
        %3471 = vmatpush1.msra.mxu0 0.0
        %3472 = vmatprep.subr.mxu0 0.0
        %3473 = vmatpush1.msra.mxu0 0.0
        %3474 = vmatprep.subr.mxu0 0.0
        %3475 = vmatpush1.msra.mxu0 0.0
        %3476 = vmatprep.subr.mxu0 0.0
        %3477 = vmatpush1.msra.mxu0 0.0
        %3478 = vmatprep.mubr.f32.mxu0 0.0
        %3479 = vmatmul.mubr.f32.gmra.mrb[0].mxu0 %v3316
        %v3480 = vpop.f32.mrb[0].mxu0
        %v3481 = vadd.f32 0.0, %v3480
        %v3482 = vpop.f32.mrb[0].mxu0
        %3483 = vmatprep.mubr.f32.mxu0 0.0
        %3484 = vmatmul.mubr.f32.gmra.mrb[0].mxu0 %v3319
        %v3485 = vpop.f32.mrb[0].mxu0
        %v3486 = vadd.f32 0.0, %v3485
        %v3487 = vpop.f32.mrb[0].mxu0
        %3488 = vmatprep.mubr.f32.mxu0 0.0
        %3489 = vmatmul.mubr.f32.gmra.mrb[0].mxu0 %v3322
        %v3490 = vpop.f32.mrb[0].mxu0
        %v3491 = vadd.f32 0.0, %v3490
        %v3492 = vpop.f32.mrb[0].mxu0
        %3493 = vmatprep.mubr.f32.mxu0 0.0
        %3494 = vmatmul.mubr.f32.gmra.mrb[0].mxu0 %v3325
        %v3495 = vpop.f32.mrb[0].mxu0
        %v3496 = vadd.f32 0.0, %v3495
        %v3497 = vpop.f32.mrb[0].mxu0
        %3498 = vmatprep.mubr.f32.mxu0 0.0
        %3499 = vmatmul.mubr.f32.gmra.mrb[0].mxu0 %v3328
        %v3500 = vpop.f32.mrb[0].mxu0
        %v3501 = vadd.f32 0.0, %v3500
        %v3502 = vpop.f32.mrb[0].mxu0
        %3503 = vmatprep.mubr.f32.mxu0 0.0
        %3504 = vmatmul.mubr.f32.gmra.mrb[0].mxu0 %v3331
        %v3505 = vpop.f32.mrb[0].mxu0
        %v3506 = vadd.f32 0.0, %v3505
        %v3507 = vpop.f32.mrb[0].mxu0
        %3508 = vmatprep.mubr.f32.mxu0 0.0
        %3509 = vmatmul.mubr.f32.gmra.mrb[0].mxu0 %v3334
        %v3510 = vpop.f32.mrb[0].mxu0
        %v3511 = vadd.f32 0.0, %v3510
        %v3512 = vpop.f32.mrb[0].mxu0
        %3513 = vmatprep.mubr.f32.mxu0 0.0
        %3514 = vmatmul.mubr.f32.gmra.mrb[0].mxu0 %v3337
        %v3515 = vpop.f32.mrb[0].mxu0
        %v3516 = vadd.f32 0.0, %v3515
        %v3517 = vpop.f32.mrb[0].mxu0
        %3518 = vmatprep.mubr.f32.mxu0 0.0
        %3519 = vmatmul.mubr.f32.gmra.mrb[0].mxu0 %v3340
        %v3520 = vpop.f32.mrb[0].mxu0
        %v3521 = vadd.f32 0.0, %v3520
        %v3522 = vpop.f32.mrb[0].mxu0
        %3523 = vmatprep.mubr.f32.mxu0 0.0
        %3524 = vmatmul.mubr.f32.gmra.mrb[0].mxu0 %v3343
        %v3525 = vpop.f32.mrb[0].mxu0
        %v3526 = vadd.f32 0.0, %v3525
        %v3527 = vpop.f32.mrb[0].mxu0
        %3528 = vmatprep.mubr.f32.mxu0 0.0
        %3529 = vmatmul.mubr.f32.gmra.mrb[0].mxu0 %v3346
        %v3530 = vpop.f32.mrb[0].mxu0
        %v3531 = vadd.f32 0.0, %v3530
        %v3532 = vpop.f32.mrb[0].mxu0
        %3533 = vmatprep.mubr.f32.mxu0 0.0
        %3534 = vmatmul.mubr.f32.gmra.mrb[0].mxu0 %v3349
        %v3535 = vpop.f32.mrb[0].mxu0
        %v3536 = vadd.f32 0.0, %v3535
        %v3537 = vpop.f32.mrb[0].mxu0
        %3538 = vmatprep.mubr.f32.mxu0 0.0
        %3539 = vmatmul.mubr.f32.gmra.mrb[0].mxu0 %v3352
        %v3540 = vpop.f32.mrb[0].mxu0
        %v3541 = vadd.f32 0.0, %v3540
        %v3542 = vpop.f32.mrb[0].mxu0
        %3543 = vmatprep.mubr.f32.mxu0 0.0
        %3544 = vmatmul.mubr.f32.gmra.mrb[0].mxu0 %v3355
        %v3545 = vpop.f32.mrb[0].mxu0
        %v3546 = vadd.f32 0.0, %v3545
        %v3547 = vpop.f32.mrb[0].mxu0
        %3548 = vmatprep.mubr.f32.mxu0 0.0
        %3549 = vmatmul.mubr.f32.gmra.mrb[0].mxu0 %v3358
        %v3550 = vpop.f32.mrb[0].mxu0
        %v3551 = vadd.f32 0.0, %v3550
        %v3552 = vpop.f32.mrb[0].mxu0
        %3553 = vmatprep.mubr.f32.mxu0 0.0
        %3554 = vmatmul.mubr.f32.gmra.mrb[0].mxu0 %v3361
        %v3555 = vpop.f32.mrb[0].mxu0
        %v3556 = vadd.f32 0.0, %v3555
        %v3557 = vpop.f32.mrb[0].mxu0
        %3558 = vmatprep.mubr.f32.mxu0 0.0
        %3559 = vmatmul.mubr.f32.gmra.mrb[0].mxu0 %v3364
        %v3560 = vpop.f32.mrb[0].mxu0
        %v3561 = vadd.f32 0.0, %v3560
        %v3562 = vpop.f32.mrb[0].mxu0
        %3563 = vmatprep.mubr.f32.mxu0 0.0
        %3564 = vmatmul.mubr.f32.gmra.mrb[0].mxu0 %v3367
        %v3565 = vpop.f32.mrb[0].mxu0
        %v3566 = vadd.f32 0.0, %v3565
        %v3567 = vpop.f32.mrb[0].mxu0
        %3568 = vmatprep.mubr.f32.mxu0 0.0
        %3569 = vmatmul.mubr.f32.gmra.mrb[0].mxu0 %v3370
        %v3570 = vpop.f32.mrb[0].mxu0
        %v3571 = vadd.f32 0.0, %v3570
        %v3572 = vpop.f32.mrb[0].mxu0
        %3573 = vmatprep.mubr.f32.mxu0 0.0
        %3574 = vmatmul.mubr.f32.gmra.mrb[0].mxu0 %v3373
        %v3575 = vpop.f32.mrb[0].mxu0
        %v3576 = vadd.f32 0.0, %v3575
        %v3577 = vpop.f32.mrb[0].mxu0
        %3578 = vmatprep.mubr.f32.mxu0 0.0
        %3579 = vmatmul.mubr.f32.gmra.mrb[0].mxu0 %v3376
        %v3580 = vpop.f32.mrb[0].mxu0
        %v3581 = vadd.f32 0.0, %v3580
        %v3582 = vpop.f32.mrb[0].mxu0
        %3583 = vmatprep.mubr.f32.mxu0 0.0
        %3584 = vmatmul.mubr.f32.gmra.mrb[0].mxu0 %v3379
        %v3585 = vpop.f32.mrb[0].mxu0
        %v3586 = vadd.f32 0.0, %v3585
        %v3587 = vpop.f32.mrb[0].mxu0
        %3588 = vmatprep.mubr.f32.mxu0 0.0
        %3589 = vmatmul.mubr.f32.gmra.mrb[0].mxu0 %v3382
        %v3590 = vpop.f32.mrb[0].mxu0
        %v3591 = vadd.f32 0.0, %v3590
        %v3592 = vpop.f32.mrb[0].mxu0
        %3593 = vmatprep.mubr.f32.mxu0 0.0
        %3594 = vmatmul.mubr.f32.gmra.mrb[0].mxu0 %v3385
        %v3595 = vpop.f32.mrb[0].mxu0
        %v3596 = vadd.f32 0.0, %v3595
        %v3597 = vpop.f32.mrb[0].mxu0
        %3598 = vmatprep.mubr.f32.mxu0 0.0
        %3599 = vmatmul.mubr.f32.gmra.mrb[0].mxu0 %v3388
        %v3600 = vpop.f32.mrb[0].mxu0
        %v3601 = vadd.f32 0.0, %v3600
        %v3602 = vpop.f32.mrb[0].mxu0
        %3603 = vmatprep.mubr.f32.mxu0 0.0
        %3604 = vmatmul.mubr.f32.gmra.mrb[0].mxu0 %v3391
        %v3605 = vpop.f32.mrb[0].mxu0
        %v3606 = vadd.f32 0.0, %v3605
        %v3607 = vpop.f32.mrb[0].mxu0
        %3608 = vmatprep.mubr.f32.mxu0 0.0
        %3609 = vmatmul.mubr.f32.gmra.mrb[0].mxu0 %v3394
        %v3610 = vpop.f32.mrb[0].mxu0
        %v3611 = vadd.f32 0.0, %v3610
        %v3612 = vpop.f32.mrb[0].mxu0
        %3613 = vmatprep.mubr.f32.mxu0 0.0
        %3614 = vmatmul.mubr.f32.gmra.mrb[0].mxu0 %v3397
        %v3615 = vpop.f32.mrb[0].mxu0
        %v3616 = vadd.f32 0.0, %v3615
        %v3617 = vpop.f32.mrb[0].mxu0
        %3618 = vmatprep.mubr.f32.mxu0 0.0
        %3619 = vmatmul.mubr.f32.gmra.mrb[0].mxu0 %v3400
        %v3620 = vpop.f32.mrb[0].mxu0
        %v3621 = vadd.f32 0.0, %v3620
        %v3622 = vpop.f32.mrb[0].mxu0
        %3623 = vmatprep.mubr.f32.mxu0 0.0
        %3624 = vmatmul.mubr.f32.gmra.mrb[0].mxu0 %v3403
        %v3625 = vpop.f32.mrb[0].mxu0
        %v3626 = vadd.f32 0.0, %v3625
        %v3627 = vpop.f32.mrb[0].mxu0
        %3628 = vmatprep.mubr.f32.mxu0 0.0
        %3629 = vmatmul.mubr.f32.gmra.mrb[0].mxu0 %v3406
        %v3630 = vpop.f32.mrb[0].mxu0
        %v3631 = vadd.f32 0.0, %v3630
        %v3632 = vpop.f32.mrb[0].mxu0
        %3633 = vmatprep.mubr.f32.mxu0 0.0
        %3634 = vmatmul.mubr.f32.gmra.mrb[0].mxu0 %v3409
        %v3635 = vpop.f32.mrb[0].mxu0
        %v3636 = vadd.f32 0.0, %v3635
        %v3637 = vpop.f32.mrb[0].mxu0
        %3638 = vdwg.mxu0
        %v3639 = vadd.f32 %v3249, %v3481
        %v3640 = vadd.f32 %v3250, %v3486
        %v3641 = vadd.f32 %v3251, %v3491
        %v3642 = vadd.f32 %v3252, %v3496
        %v3643 = vadd.f32 %v3253, %v3501
        %v3644 = vadd.f32 %v3254, %v3506
        %v3645 = vadd.f32 %v3255, %v3511
        %v3646 = vadd.f32 %v3256, %v3516
        %v3647 = vadd.f32 %v3257, %v3521
        %v3648 = vadd.f32 %v3258, %v3526
        %v3649 = vadd.f32 %v3259, %v3531
        %v3650 = vadd.f32 %v3260, %v3536
        %v3651 = vadd.f32 %v3261, %v3541
        %v3652 = vadd.f32 %v3262, %v3546
        %v3653 = vadd.f32 %v3263, %v3551
        %v3654 = vadd.f32 %v3264, %v3556
        %v3655 = vadd.f32 %v3265, %v3561
        %v3656 = vadd.f32 %v3266, %v3566
        %v3657 = vadd.f32 %v3267, %v3571
        %v3658 = vadd.f32 %v3268, %v3576
        %v3659 = vadd.f32 %v3269, %v3581
        %v3660 = vadd.f32 %v3270, %v3586
        %v3661 = vadd.f32 %v3271, %v3591
        %v3662 = vadd.f32 %v3272, %v3596
        %v3663 = vadd.f32 %v3273, %v3601
        %v3664 = vadd.f32 %v3274, %v3606
        %v3665 = vadd.f32 %v3275, %v3611
        %v3666 = vadd.f32 %v3276, %v3616
        %v3667 = vadd.f32 %v3277, %v3621
        %v3668 = vadd.f32 %v3278, %v3626
        %v3669 = vadd.f32 %v3279, %v3631
        %v3670 = vadd.f32 %v3280, %v3636
        %v3671 = vpack.c.bf16 %v3640, %v3639
        %v3672 = vpack.c.bf16 %v3642, %v3641
        %v3673 = vpack.c.bf16 %v3644, %v3643
        %v3674 = vpack.c.bf16 %v3646, %v3645
        %v3675 = vpack.c.bf16 %v3648, %v3647
        %v3676 = vpack.c.bf16 %v3650, %v3649
        %v3677 = vpack.c.bf16 %v3652, %v3651
        %v3678 = vpack.c.bf16 %v3654, %v3653
        %v3679 = vpack.c.bf16 %v3656, %v3655
        %v3680 = vpack.c.bf16 %v3658, %v3657
        %v3681 = vpack.c.bf16 %v3660, %v3659
        %v3682 = vpack.c.bf16 %v3662, %v3661
        %v3683 = vpack.c.bf16 %v3664, %v3663
        %v3684 = vpack.c.bf16 %v3666, %v3665
        %v3685 = vpack.c.bf16 %v3668, %v3667
        %v3686 = vpack.c.bf16 %v3670, %v3669
        %v3703 = vunpack.c.l.b16 %v3671
        %v3704 = vunpack.c.h.b16 %v3671
        %v3705 = vunpack.c.l.b16 %v3672
        %v3706 = vunpack.c.h.b16 %v3672
        %v3707 = vunpack.c.l.b16 %v3673
        %v3708 = vunpack.c.h.b16 %v3673
        %v3709 = vunpack.c.l.b16 %v3674
        %v3710 = vunpack.c.h.b16 %v3674
        %v3711 = vunpack.c.l.b16 %v3675
        %v3712 = vunpack.c.h.b16 %v3675
        %v3713 = vunpack.c.l.b16 %v3676
        %v3714 = vunpack.c.h.b16 %v3676
        %v3715 = vunpack.c.l.b16 %v3677
        %v3716 = vunpack.c.h.b16 %v3677
        %v3717 = vunpack.c.l.b16 %v3678
        %v3718 = vunpack.c.h.b16 %v3678
        %v3719 = vunpack.c.l.b16 %v3679
        %v3720 = vunpack.c.h.b16 %v3679
        %v3721 = vunpack.c.l.b16 %v3680
        %v3722 = vunpack.c.h.b16 %v3680
        %v3723 = vunpack.c.l.b16 %v3681
        %v3724 = vunpack.c.h.b16 %v3681
        %v3725 = vunpack.c.l.b16 %v3682
        %v3726 = vunpack.c.h.b16 %v3682
        %v3727 = vunpack.c.l.b16 %v3683
        %v3728 = vunpack.c.h.b16 %v3683
        %v3729 = vunpack.c.l.b16 %v3684
        %v3730 = vunpack.c.h.b16 %v3684
        %v3731 = vunpack.c.l.b16 %v3685
        %v3732 = vunpack.c.h.b16 %v3685
        %v3733 = vunpack.c.l.b16 %v3686
        %v3734 = vunpack.c.h.b16 %v3686
        %v3735 = vpack.c.b16 %v3703, %v3703
        %v3736 = vpack.c.b16 %v3704, %v3704
        %v3737 = vpack.c.b16 %v3705, %v3705
        %v3738 = vpack.c.b16 %v3706, %v3706
        %v3739 = vpack.c.b16 %v3707, %v3707
        %v3740 = vpack.c.b16 %v3708, %v3708
        %v3741 = vpack.c.b16 %v3709, %v3709
        %v3742 = vpack.c.b16 %v3710, %v3710
        %v3743 = vpack.c.b16 %v3711, %v3711
        %v3744 = vpack.c.b16 %v3712, %v3712
        %v3745 = vpack.c.b16 %v3713, %v3713
        %v3746 = vpack.c.b16 %v3714, %v3714
        %v3747 = vpack.c.b16 %v3715, %v3715
        %v3748 = vpack.c.b16 %v3716, %v3716
        %v3749 = vpack.c.b16 %v3717, %v3717
        %v3750 = vpack.c.b16 %v3718, %v3718
        %v3751 = vpack.c.b16 %v3719, %v3719
        %v3752 = vpack.c.b16 %v3720, %v3720
        %v3753 = vpack.c.b16 %v3721, %v3721
        %v3754 = vpack.c.b16 %v3722, %v3722
        %v3755 = vpack.c.b16 %v3723, %v3723
        %v3756 = vpack.c.b16 %v3724, %v3724
        %v3757 = vpack.c.b16 %v3725, %v3725
        %v3758 = vpack.c.b16 %v3726, %v3726
        %v3759 = vpack.c.b16 %v3727, %v3727
        %v3760 = vpack.c.b16 %v3728, %v3728
        %v3761 = vpack.c.b16 %v3729, %v3729
        %v3762 = vpack.c.b16 %v3730, %v3730
        %v3763 = vpack.c.b16 %v3731, %v3731
        %v3764 = vpack.c.b16 %v3732, %v3732
        %v3765 = vpack.c.b16 %v3733, %v3733
        %v3766 = vpack.c.b16 %v3734, %v3734
        %3799 = vst [vmem:[%s196] sm:$0xf] %v3735
        %3800 = vst [vmem:[%s196 + $0x4] sm:$0xf] %v3736
        %3801 = vst [vmem:[%s196 + $0x8] sm:$0xf] %v3737
        %3802 = vst [vmem:[%s196 + $0xc] sm:$0xf] %v3738
        %3803 = vst [vmem:[%s196 + $0x10] sm:$0xf] %v3739
        %3804 = vst [vmem:[%s196 + $0x14] sm:$0xf] %v3740
        %3805 = vst [vmem:[%s196 + $0x18] sm:$0xf] %v3741
        %3806 = vst [vmem:[%s196 + $0x1c] sm:$0xf] %v3742
        %3807 = vst [vmem:[%s196 + $0x20] sm:$0xf] %v3743
        %3808 = vst [vmem:[%s196 + $0x24] sm:$0xf] %v3744
        %3809 = vst [vmem:[%s196 + $0x28] sm:$0xf] %v3745
        %3810 = vst [vmem:[%s196 + $0x2c] sm:$0xf] %v3746
        %3811 = vst [vmem:[%s196 + $0x30] sm:$0xf] %v3747
        %3812 = vst [vmem:[%s196 + $0x34] sm:$0xf] %v3748
        %3813 = vst [vmem:[%s196 + $0x38] sm:$0xf] %v3749
        %3814 = vst [vmem:[%s196 + $0x3c] sm:$0xf] %v3750
        %3815 = vst [vmem:[%s196 + $0x40] sm:$0xf] %v3751
        %3816 = vst [vmem:[%s196 + $0x44] sm:$0xf] %v3752
        %3817 = vst [vmem:[%s196 + $0x48] sm:$0xf] %v3753
        %3818 = vst [vmem:[%s196 + $0x4c] sm:$0xf] %v3754
        %3819 = vst [vmem:[%s196 + $0x50] sm:$0xf] %v3755
        %3820 = vst [vmem:[%s196 + $0x54] sm:$0xf] %v3756
        %3821 = vst [vmem:[%s196 + $0x58] sm:$0xf] %v3757
        %3822 = vst [vmem:[%s196 + $0x5c] sm:$0xf] %v3758
        %3823 = vst [vmem:[%s196 + $0x60] sm:$0xf] %v3759
        %3824 = vst [vmem:[%s196 + $0x64] sm:$0xf] %v3760
        %3825 = vst [vmem:[%s196 + $0x68] sm:$0xf] %v3761
        %3826 = vst [vmem:[%s196 + $0x6c] sm:$0xf] %v3762
        %3827 = vst [vmem:[%s196 + $0x70] sm:$0xf] %v3763
        %3828 = vst [vmem:[%s196 + $0x74] sm:$0xf] %v3764
        %3829 = vst [vmem:[%s196 + $0x78] sm:$0xf] %v3765
        %3830 = vst [vmem:[%s196 + $0x7c] sm:$0xf] %v3766
        %v3831 = vld [vmem:[#allocation4] sm:$0x1]
        %v3832 = vadd.f32 %v3639, %v3640
        %v3833 = vadd.f32 %v3832, %v3641
        %v3834 = vadd.f32 %v3833, %v3642
        %v3835 = vadd.f32 %v3834, %v3643
        %v3836 = vadd.f32 %v3835, %v3644
        %v3837 = vadd.f32 %v3836, %v3645
        %v3838 = vadd.f32 %v3837, %v3646
        %v3839 = vadd.f32 %v3838, %v3647
        %v3840 = vadd.f32 %v3839, %v3648
        %v3841 = vadd.f32 %v3840, %v3649
        %v3842 = vadd.f32 %v3841, %v3650
        %v3843 = vadd.f32 %v3842, %v3651
        %v3844 = vadd.f32 %v3843, %v3652
        %v3845 = vadd.f32 %v3844, %v3653
        %v3846 = vadd.f32 %v3845, %v3654
        %v3847 = vadd.f32 %v3846, %v3655
        %v3848 = vadd.f32 %v3847, %v3656
        %v3849 = vadd.f32 %v3848, %v3657
        %v3850 = vadd.f32 %v3849, %v3658
        %v3851 = vadd.f32 %v3850, %v3659
        %v3852 = vadd.f32 %v3851, %v3660
        %v3853 = vadd.f32 %v3852, %v3661
        %v3854 = vadd.f32 %v3853, %v3662
        %v3855 = vadd.f32 %v3854, %v3663
        %v3856 = vadd.f32 %v3855, %v3664
        %v3857 = vadd.f32 %v3856, %v3665
        %v3858 = vadd.f32 %v3857, %v3666
        %v3859 = vadd.f32 %v3858, %v3667
        %v3860 = vadd.f32 %v3859, %v3668
        %v3861 = vadd.f32 %v3860, %v3669
        %v3862 = vadd.f32 %v3861, %v3670
        %v3863 = vrot.slane %v3862, 4
        %v3864 = vadd.f32 %v3862, %v3863
        %v3865 = vrot.slane %v3864, 2
        %v3866 = vadd.f32 %v3864, %v3865
        %v3867 = vrot.slane %v3866, 1
        %v3868 = vadd.f32 %v3866, %v3867
        %v3869 = vadd.f32 %v3831, %v3868
        %3870 = vst [vmem:[#allocation4] sm:$0x1] %v3869
        %v3871 = vld [vmem:[#allocation6] sm:$0x1]
        %v3872 = vmul.f32 %v3639, %v3639
        %v3873 = vmul.f32 %v3640, %v3640
        %v3874 = vmul.f32 %v3641, %v3641
        %v3875 = vmul.f32 %v3642, %v3642
        %v3876 = vmul.f32 %v3643, %v3643
        %v3877 = vmul.f32 %v3644, %v3644
        %v3878 = vmul.f32 %v3645, %v3645
        %v3879 = vmul.f32 %v3646, %v3646
        %v3880 = vmul.f32 %v3647, %v3647
        %v3881 = vmul.f32 %v3648, %v3648
        %v3882 = vmul.f32 %v3649, %v3649
        %v3883 = vmul.f32 %v3650, %v3650
        %v3884 = vmul.f32 %v3651, %v3651
        %v3885 = vmul.f32 %v3652, %v3652
        %v3886 = vmul.f32 %v3653, %v3653
        %v3887 = vmul.f32 %v3654, %v3654
        %v3888 = vmul.f32 %v3655, %v3655
        %v3889 = vmul.f32 %v3656, %v3656
        %v3890 = vmul.f32 %v3657, %v3657
        %v3891 = vmul.f32 %v3658, %v3658
        %v3892 = vmul.f32 %v3659, %v3659
        %v3893 = vmul.f32 %v3660, %v3660
        %v3894 = vmul.f32 %v3661, %v3661
        %v3895 = vmul.f32 %v3662, %v3662
        %v3896 = vmul.f32 %v3663, %v3663
        %v3897 = vmul.f32 %v3664, %v3664
        %v3898 = vmul.f32 %v3665, %v3665
        %v3899 = vmul.f32 %v3666, %v3666
        %v3900 = vmul.f32 %v3667, %v3667
        %v3901 = vmul.f32 %v3668, %v3668
        %v3902 = vmul.f32 %v3669, %v3669
        %v3903 = vmul.f32 %v3670, %v3670
        %v3904 = vadd.f32 %v3872, %v3873
        %v3905 = vadd.f32 %v3904, %v3874
        %v3906 = vadd.f32 %v3905, %v3875
        %v3907 = vadd.f32 %v3906, %v3876
        %v3908 = vadd.f32 %v3907, %v3877
        %v3909 = vadd.f32 %v3908, %v3878
        %v3910 = vadd.f32 %v3909, %v3879
        %v3911 = vadd.f32 %v3910, %v3880
        %v3912 = vadd.f32 %v3911, %v3881
        %v3913 = vadd.f32 %v3912, %v3882
        %v3914 = vadd.f32 %v3913, %v3883
        %v3915 = vadd.f32 %v3914, %v3884
        %v3916 = vadd.f32 %v3915, %v3885
        %v3917 = vadd.f32 %v3916, %v3886
        %v3918 = vadd.f32 %v3917, %v3887
        %v3919 = vadd.f32 %v3918, %v3888
        %v3920 = vadd.f32 %v3919, %v3889
        %v3921 = vadd.f32 %v3920, %v3890
        %v3922 = vadd.f32 %v3921, %v3891
        %v3923 = vadd.f32 %v3922, %v3892
        %v3924 = vadd.f32 %v3923, %v3893
        %v3925 = vadd.f32 %v3924, %v3894
        %v3926 = vadd.f32 %v3925, %v3895
        %v3927 = vadd.f32 %v3926, %v3896
        %v3928 = vadd.f32 %v3927, %v3897
        %v3929 = vadd.f32 %v3928, %v3898
        %v3930 = vadd.f32 %v3929, %v3899
        %v3931 = vadd.f32 %v3930, %v3900
        %v3932 = vadd.f32 %v3931, %v3901
        %v3933 = vadd.f32 %v3932, %v3902
        %v3934 = vadd.f32 %v3933, %v3903
        %v3935 = vrot.slane %v3934, 4
        %v3936 = vadd.f32 %v3934, %v3935
        %v3937 = vrot.slane %v3936, 2
        %v3938 = vadd.f32 %v3936, %v3937
        %v3939 = vrot.slane %v3938, 1
        %v3940 = vadd.f32 %v3938, %v3939
        %v3941 = vadd.f32 %v3871, %v3940
        %3942 = vst [vmem:[#allocation6] sm:$0x1] %v3941
        %s3943 = sand.u32 %s89, 1
        %s3944 = scalar_lea.sflag [#allocation3], %s3943
        %s3945 = sand.u32 %s89, 1
        %s3946 = smul.addr %s3945, 128
        %s3947 = scalar_lea.vmem [#allocation2], %s3946
        // Predicated region
        $region33: #{tpu_custom_call.1} parent=27 // pred_check
          %p3948 = pneg %p99
        $region34: #{tpu_custom_call.1} parent=27 // pred_check_branch
          %3950 = sbr.rel (%p3948) target = $region36
        $region35: #{tpu_custom_call.1} parent=27 // pred_region
          %s3951 = smul.u32 32, %s25
          %s3953 = ssub.s32 2048, 2048
          %3954 = vsyncadd %s3944, %s3953
          %s3955 = smul.addr %s24, 32
          %s3956 = sadd.s32 %s3951, %s3955
          %s3957 = smul.addr %s3956, 64
          %s3958 = scalar_lea.hbm %s2, %s3957
          %s3959 = sshll.u32 %s3947, 4
          %s3960 = int_to_ptr.vmem [resolvable:$true] %s3959
          %3965 = dma.vmem_to_hbm [thread:$0]  %s3960, 2048, %s3958, %s3944, 64, 64, 4
        $region36: #{tpu_custom_call.1} parent=27 // pred_fallthru
          _
        // Predicated region
        $region37: #{tpu_custom_call.1} parent=27 // pred_check
          %p3966 = pneg %p120
        $region38: #{tpu_custom_call.1} parent=27 // pred_check_branch
          %3968 = sbr.rel (%p3966) target = $region40
        $region39: #{tpu_custom_call.1} parent=27 // pred_region
          %s3970 = ssub.s32 16, 16
          %3971 = vsyncadd [#allocation5], %s3970
          %s3973 = sshll.u32 [#allocation4], 4
          %s3974 = int_to_ptr.vmem [resolvable:$true] %s3973
          %3976 = dma.vmem_to_hbm [thread:$0]  %s3974, 16, %s3, [#allocation5]
        $region40: #{tpu_custom_call.1} parent=27 // pred_fallthru
          _
        // Predicated region
        $region41: #{tpu_custom_call.1} parent=27 // pred_check
          %p3977 = pneg %p141
        $region42: #{tpu_custom_call.1} parent=27 // pred_check_branch
          %3979 = sbr.rel (%p3977) target = $region44
        $region43: #{tpu_custom_call.1} parent=27 // pred_region
          %s3981 = ssub.s32 16, 16
          %3982 = vsyncadd [#allocation5], %s3981
          %s3984 = sshll.u32 [#allocation6], 4
          %s3985 = int_to_ptr.vmem [resolvable:$true] %s3984
          %3987 = dma.vmem_to_hbm [thread:$0]  %s3985, 16, %s4, [#allocation5]
        $region44: #{tpu_custom_call.1} parent=27 // pred_fallthru
          _
        // Predicated region
        $region45: #{tpu_custom_call.1} parent=27 // pred_check
          %p3988 = pneg %p120
        $region46: #{tpu_custom_call.1} parent=27 // pred_check_branch
          %3990 = sbr.rel (%p3988) target = $region48
        $region47: #{tpu_custom_call.1} parent=27 // pred_region
          %3991 = dma.done [#allocation5], 16
        $region48: #{tpu_custom_call.1} parent=27 // pred_fallthru
          _
        // Predicated region
        $region49: #{tpu_custom_call.1} parent=27 // pred_check
          %p3992 = pneg %p141
        $region50: #{tpu_custom_call.1} parent=27 // pred_check_branch
          %3994 = sbr.rel (%p3992) target = $region52
        $region51: #{tpu_custom_call.1} parent=27 // pred_region
          %3995 = dma.done [#allocation5], 16
        $region52: #{tpu_custom_call.1} parent=27 // pred_fallthru
          _
      $region28: #{tpu_custom_call.1} parent=5 // pred_fallthru
        _
      %p3996 = scmp.le.s32.totalorder 2, %s15
      // Predicated region
      $region53: #{tpu_custom_call.1} parent=5 // pred_check
        %p3997 = pneg %p3996
      $region54: #{tpu_custom_call.1} parent=5 // pred_check_branch
        %3999 = sbr.rel (%p3997) target = $region56
      $region55: #{tpu_custom_call.1} parent=5 // pred_region
        %s4000 = ssub.s32 %s15, 2
        // Predicated region
        $region57: #{tpu_custom_call.1} parent=55 // pred_check
          %p4001 = pneg %p105
        $region58: #{tpu_custom_call.1} parent=55 // pred_check_branch
          %4003 = sbr.rel (%p4001) target = $region60
        $region59: #{tpu_custom_call.1} parent=55 // pred_region
          %s4004 = sand.u32 %s90, 1
          %s4005 = scalar_lea.sflag [#allocation3], %s4004
          %s4006 = sand.u32 %s90, 1
          %s4007 = smul.addr %s4006, 128
          %s4008 = scalar_lea.vmem [#allocation2], %s4007
          %4009 = dma.done %s4005, 2048
        $region60: #{tpu_custom_call.1} parent=55 // pred_fallthru
          _
      $region56: #{tpu_custom_call.1} parent=5 // pred_fallthru
        _
    $region6: #{tpu_custom_call.1} parent=1 // loop_footer
      %s19 = sadd.s32 1, %s15
    $region7: #{tpu_custom_call.1} parent=1 // loop_footer_branch
      %14 = sbr.rel target = $region3
    $region8: #{tpu_custom_call.1} parent=1 // loop_exit
      _
    %4010 = vsyncpa [#allocation3], 1
    %s4011 = scalar_lea.sflag [#allocation3], 1
    %4012 = vsyncpa %s4011, 1
    %4013 = vsyncpa [#allocation5], 1

</llo_original>
